<compile_context>
chip_gen: v7x
topology: tpu7x:2x2x1
jax: 0.10.0
libtpu: 0.0.40
codegen_flags: <defaults>
</compile_context>

<pallas_src>
import functools

import jax
import jax.numpy as jnp
from jax import lax
from jax.experimental import pallas as pl
from jax.experimental.pallas import tpu as pltpu


# ----------------------------- Pallas kernel -------------------------------

def _encoder_kernel(x_ref, wf_ref, wtg_ref, wos_ref, out_ref, xpad_ref, *,
                    K, dilations, T, HALO, C, G, S):
    # x_ref   : (1, T, Cin)  f32
    # wf_ref  : (Cin, C)     f32      first 1x1 conv
    # wtg_ref : (L*K, C, 2G) bf16     packed tanh|gate tap weights
    # wos_ref : (L, G, C+S)  bf16     packed out|skip 1x1 weights
    # out_ref : (1, T, S)    f32      skip accumulator (output block)
    # xpad_ref: (T+2*HALO, C) f32     zero-padded residual-stream scratch

    # Zero the scratch: the halo stays zero, which reproduces per-layer
    # Conv1d zero padding exactly (all convs are bias-free).
    xpad_ref[...] = jnp.zeros_like(xpad_ref)

    # First 1x1 conv (Cin is tiny, keep f32 operands).
    x0 = jnp.dot(x_ref[0], wf_ref[...], preferred_element_type=jnp.float32)
    xpad_ref[pl.ds(HALO, T), :] = x0

    # Skip accumulator lives directly in the VMEM-resident output block.
    out_ref[0] = jnp.zeros((T, S), jnp.float32)

    for l, d in enumerate(dilations):                 # static unroll: layers
        pad = (K - 1) // 2 * d
        base = HALO - pad

        # Dilated conv for tanh+gate in one 256-wide matmul per tap.
        acc = jnp.zeros((T, 2 * G), jnp.float32)
        for k in range(K):                            # static unroll: taps
            xk = xpad_ref[pl.ds(base + k * d, T), :].astype(jnp.bfloat16)
            acc = acc + jnp.dot(xk, wtg_ref[l * K + k],
                                preferred_element_type=jnp.float32)

        # Gated activation in f32 (EUP work, free next to MXU).
        h = jnp.tanh(acc[:, :G]) * jax.nn.sigmoid(acc[:, G:])

        # Fused out(1x1) | skip(1x1) projection -> (T, C+S).
        proj = jnp.dot(h.astype(jnp.bfloat16), wos_ref[l],
                       preferred_element_type=jnp.float32)

        # Residual update kept in f32 inside the scratch.
        res = xpad_ref[pl.ds(HALO, T), :]
        xpad_ref[pl.ds(HALO, T), :] = proj[:, :C] + res

        # In-kernel skip accumulation (no XLA HBM read-modify-write).
        out_ref[0] = out_ref[0] + proj[:, C:]


# ------------------------- parameters & forward ----------------------------

def init_encoder_params(key, in_channels, residual_channels=128,
                        gate_channels=128, skip_out_channels=128,
                        kernel_size=5, dilate_rate=(1, 2, 5, 2, 2, 5)):
    n_layers = len(dilate_rate)
    keys = jax.random.split(key, 1 + 4 * n_layers)
    params = {
        "first_w": (1.0 / jnp.sqrt(in_channels)) *
                   jax.random.normal(keys[0], (in_channels, residual_channels),
                                     jnp.float32)
    }
    layers = []
    ki = 1
    st = 1.0 / jnp.sqrt(residual_channels * kernel_size)
    s1 = 1.0 / jnp.sqrt(gate_channels)
    for d in dilate_rate:
        wt = st * jax.random.normal(keys[ki], (kernel_size, residual_channels,
                                               gate_channels), jnp.float32); ki += 1
        wg = st * jax.random.normal(keys[ki], (kernel_size, residual_channels,
                                               gate_channels), jnp.float32); ki += 1
        wo = s1 * jax.random.normal(keys[ki], (gate_channels,
                                               residual_channels), jnp.float32); ki += 1
        ws = s1 * jax.random.normal(keys[ki], (gate_channels,
                                               skip_out_channels), jnp.float32); ki += 1
        layers.append({"wt": wt, "wg": wg, "wo": wo, "ws": ws, "dilation": int(d)})
    params["layers"] = layers
    return params


def encoder_forward(x_bct, params):
    """x_bct: (B, in_channels, T)  ->  (B, skip_out_channels, T)"""
    B, Cin, T = x_bct.shape
    layers = params["layers"]
    L = len(layers)
    K, C, G = layers[0]["wt"].shape
    S = layers[0]["ws"].shape[1]
    dilations = tuple(int(l["dilation"]) for l in layers)
    maxpad = max((K - 1) // 2 * d for d in dilations)
    HALO = -(-maxpad // 8) * 8                     # sublane-aligned halo

    # Pack weights: taps -> (L*K, C, 2G); 1x1 out|skip -> (L, G, C+S). bf16
    # MXU inputs, 256-wide outputs fill the v6e/v7x MXU.
    wtg = jnp.stack(
        [jnp.concatenate([l["wt"], l["wg"]], axis=-1) for l in layers], axis=0)
    wtg = wtg.reshape(L * K, C, 2 * G).astype(jnp.bfloat16)
    wos = jnp.stack(
        [jnp.concatenate([l["wo"], l["ws"]], axis=-1) for l in layers],
        axis=0).astype(jnp.bfloat16)
    wf = params["first_w"].astype(jnp.float32)

    # Single boundary transposes (kernel itself stays in B x T x C).
    x_btc = jnp.transpose(x_bct, (0, 2, 1)).astype(jnp.float32)

    kernel = functools.partial(_encoder_kernel, K=K, dilations=dilations, T=T,
                               HALO=HALO, C=C, G=G, S=S)

    # Explicit scoped-VMEM sizing: resident weights (x2 buffers) + IO blocks
    # (x2 double-buffer) + activation scratch + headroom, capped for v7x.
    w_bytes = wtg.size * 2 + wos.size * 2 + wf.size * 4
    io_bytes = (T * Cin * 4 + T * S * 4) * 2
    scratch_bytes = (T + 2 * HALO) * C * 4
    vmem_limit = int(min(max(2 * w_bytes + io_bytes + scratch_bytes + (8 << 20),
                             32 << 20), 56 << 20))

    out_bts = pl.pallas_call(
        kernel,
        out_shape=jax.ShapeDtypeStruct((B, T, S), jnp.float32),
        grid=(B,),
        in_specs=[
            pl.BlockSpec((1, T, Cin), lambda b: (b, 0, 0)),
            pl.BlockSpec((Cin, C), lambda b: (0, 0)),
            pl.BlockSpec((L * K, C, 2 * G), lambda b: (0, 0, 0)),
            pl.BlockSpec((L, G, C + S), lambda b: (0, 0, 0)),
        ],
        out_specs=pl.BlockSpec((1, T, S), lambda b: (b, 0, 0)),
        scratch_shapes=[pltpu.VMEM((T + 2 * HALO, C), jnp.float32)],
        compiler_params=pltpu.CompilerParams(
            dimension_semantics=("parallel",),
            vmem_limit_bytes=vmem_limit),
    )(x_btc, wf, wtg, wos)

    return jnp.transpose(out_bts, (0, 2, 1))


# --------------------------- pure-JAX reference -----------------------------

def encoder_reference(x_bct, params):
    dn = ("NCH", "OIH", "NCH")

    def conv1x1(inp, w_io):  # w: (Cin, Cout)
        return lax.conv_general_dilated(
            inp, jnp.transpose(w_io, (1, 0))[:, :, None], (1,), [(0, 0)],
            dimension_numbers=dn, precision=lax.Precision.HIGHEST)

    def dconv(inp, w_kio, d):  # w: (K, Cin, Cout)
        K = w_kio.shape[0]
        pad = (K - 1) // 2 * d
        return lax.conv_general_dilated(
            inp, jnp.transpose(w_kio, (2, 1, 0)), (1,), [(pad, pad)],
            rhs_dilation=(d,), dimension_numbers=dn,
            precision=lax.Precision.HIGHEST)

    x = conv1x1(x_bct.astype(jnp.float32), params["first_w"])
    skips = 0.0
    for layer in params["layers"]:
        d = layer["dilation"]
        h = jnp.tanh(dconv(x, layer["wt"], d)) * jax.nn.sigmoid(
            dconv(x, layer["wg"], d))
        skips = skips + conv1x1(h, layer["ws"])
        x = conv1x1(h, layer["wo"]) + x
    return skips


# --------------------------------- main -------------------------------------

if __name__ == "__main__":
    key = jax.random.PRNGKey(0)
    k_param, k_x = jax.random.split(key)

    B, in_channels, T = 2, 4, 16
    params = init_encoder_params(k_param, in_channels)
    x = jax.random.normal(k_x, (B, in_channels, T), jnp.float32)

    out = jax.block_until_ready(encoder_forward(x, params))
    ref = jax.block_until_ready(encoder_reference(x, params))

    assert out.shape == (B, 128, T), out.shape
    assert jnp.allclose(out, ref, atol=5e-2, rtol=5e-2), (
        float(jnp.max(jnp.abs(out - ref))))
    print("KERNEL_OK")
</pallas_src>

<mosaic_0001>
module attributes {stable_mosaic.version = 11 : i64} {
  func.func @_encoder_kernel(%arg0: i32, %arg1: memref<1x16x4xf32, #tpu.memory_space<vmem>>, %arg2: memref<4x128xf32, #tpu.memory_space<vmem>>, %arg3: memref<30x128x256xbf16, #tpu.memory_space<vmem>>, %arg4: memref<6x128x256xbf16, #tpu.memory_space<vmem>>, %arg5: memref<1x16x128xf32, #tpu.memory_space<vmem>>, %arg6: memref<48x128xf32, #tpu.memory_space<vmem>>) attributes {dimension_semantics = [#tpu.dimension_semantics<parallel>], iteration_bounds = array<i64: 2>, scalar_prefetch = 0 : i64, scratch_operands = 1 : i64, tpu.core_type = #tpu.core_type<tc>, window_params = [{transform_indices = @transform_0, window_bounds = array<i64: 1, 16, 4>}, {pipeline_mode = #tpu.pipeline_mode<synchronous>, transform_indices = @transform_1, window_bounds = array<i64: 4, 128>}, {pipeline_mode = #tpu.pipeline_mode<synchronous>, transform_indices = @transform_2, window_bounds = array<i64: 30, 128, 256>}, {pipeline_mode = #tpu.pipeline_mode<synchronous>, transform_indices = @transform_3, window_bounds = array<i64: 6, 128, 256>}, {transform_indices = @transform_4, window_bounds = array<i64: 1, 16, 128>}]} {
    %cst = arith.constant 0.000000e+00 : f32
    %0 = vector.broadcast %cst : f32 to vector<48x128xf32>
    %c0 = arith.constant 0 : index
    %c0_0 = arith.constant 0 : index
    %1 = vector.load %arg6[%c0, %c0_0] : memref<48x128xf32, #tpu.memory_space<vmem>>, vector<48x128xf32>
    tpu.vector_store %arg6[%c0, %c0_0], %0 {strides = array<i32>} : memref<48x128xf32, #tpu.memory_space<vmem>>, vector<48x128xf32>,
    %c0_1 = arith.constant 0 : index
    %c0_2 = arith.constant 0 : index
    %c0_3 = arith.constant 0 : index
    %2 = vector.load %arg1[%c0_1, %c0_2, %c0_3] : memref<1x16x4xf32, #tpu.memory_space<vmem>>, vector<1x16x4xf32>
    %3 = vector.shape_cast %2 : vector<1x16x4xf32> to vector<16x4xf32>
    %c0_4 = arith.constant 0 : index
    %c0_5 = arith.constant 0 : index
    %4 = vector.load %arg2[%c0_4, %c0_5] : memref<4x128xf32, #tpu.memory_space<vmem>>, vector<4x128xf32>
    %cst_6 = arith.constant dense<0.000000e+00> : vector<16x128xf32>
    %5 = tpu.matmul %3, %4, %cst_6 {dimension_numbers = #tpu.dot_dimension_numbers<[1], [0], [0], [1], [0, 0, 1, 1], [], []>} : vector<16x4xf32>, vector<4x128xf32>, vector<16x128xf32> -> vector<16x128xf32>
    %c16 = arith.constant 16 : index
    %c0_7 = arith.constant 0 : index
    %6 = vector.load %arg6[%c16, %c0_7] : memref<48x128xf32, #tpu.memory_space<vmem>>, vector<16x128xf32>
    tpu.vector_store %arg6[%c16, %c0_7], %5 {strides = array<i32>} : memref<48x128xf32, #tpu.memory_space<vmem>>, vector<16x128xf32>,
    %cst_8 = arith.constant 0.000000e+00 : f32
    %7 = vector.broadcast %cst_8 : f32 to vector<16x128xf32>
    %c0_9 = arith.constant 0 : index
    %c0_10 = arith.constant 0 : index
    %c0_11 = arith.constant 0 : index
    %8 = vector.load %arg5[%c0_9, %c0_10, %c0_11] : memref<1x16x128xf32, #tpu.memory_space<vmem>>, vector<1x16x128xf32>
    %9 = vector.shape_cast %8 : vector<1x16x128xf32> to vector<16x128xf32>
    %10 = vector.shape_cast %7 : vector<16x128xf32> to vector<1x16x128xf32>
    tpu.vector_store %arg5[%c0_9, %c0_10, %c0_11], %10 {strides = array<i32>} : memref<1x16x128xf32, #tpu.memory_space<vmem>>, vector<1x16x128xf32>,
    %cst_12 = arith.constant 0.000000e+00 : f32
    %11 = vector.broadcast %cst_12 : f32 to vector<16x256xf32>
    %c14 = arith.constant 14 : index
    %c0_13 = arith.constant 0 : index
    %12 = vector.load %arg6[%c14, %c0_13] : memref<48x128xf32, #tpu.memory_space<vmem>>, vector<16x128xf32>
    %13 = arith.truncf %12 : vector<16x128xf32> to vector<16x128xbf16>
    %c0_14 = arith.constant 0 : index
    %c0_15 = arith.constant 0 : index
    %c0_16 = arith.constant 0 : index
    %14 = vector.load %arg3[%c0_14, %c0_15, %c0_16] : memref<30x128x256xbf16, #tpu.memory_space<vmem>>, vector<1x128x256xbf16>
    %15 = vector.shape_cast %14 : vector<1x128x256xbf16> to vector<128x256xbf16>
    %cst_17 = arith.constant dense<0.000000e+00> : vector<16x256xf32>
    %16 = tpu.matmul %13, %15, %cst_17 {dimension_numbers = #tpu.dot_dimension_numbers<[1], [0], [0], [1], [0, 0, 1, 1], [], []>} : vector<16x128xbf16>, vector<128x256xbf16>, vector<16x256xf32> -> vector<16x256xf32>
    %17 = arith.addf %11, %16 : vector<16x256xf32>
    %c15 = arith.constant 15 : index
    %c0_18 = arith.constant 0 : index
    %18 = vector.load %arg6[%c15, %c0_18] : memref<48x128xf32, #tpu.memory_space<vmem>>, vector<16x128xf32>
    %19 = arith.truncf %18 : vector<16x128xf32> to vector<16x128xbf16>
    %c1 = arith.constant 1 : index
    %c0_19 = arith.constant 0 : index
    %c0_20 = arith.constant 0 : index
    %20 = vector.load %arg3[%c1, %c0_19, %c0_20] : memref<30x128x256xbf16, #tpu.memory_space<vmem>>, vector<1x128x256xbf16>
    %21 = vector.shape_cast %20 : vector<1x128x256xbf16> to vector<128x256xbf16>
    %cst_21 = arith.constant dense<0.000000e+00> : vector<16x256xf32>
    %22 = tpu.matmul %19, %21, %cst_21 {dimension_numbers = #tpu.dot_dimension_numbers<[1], [0], [0], [1], [0, 0, 1, 1], [], []>} : vector<16x128xbf16>, vector<128x256xbf16>, vector<16x256xf32> -> vector<16x256xf32>
    %23 = arith.addf %17, %22 : vector<16x256xf32>
    %c16_22 = arith.constant 16 : index
    %c0_23 = arith.constant 0 : index
    %24 = vector.load %arg6[%c16_22, %c0_23] : memref<48x128xf32, #tpu.memory_space<vmem>>, vector<16x128xf32>
    %25 = arith.truncf %24 : vector<16x128xf32> to vector<16x128xbf16>
    %c2 = arith.constant 2 : index
    %c0_24 = arith.constant 0 : index
    %c0_25 = arith.constant 0 : index
    %26 = vector.load %arg3[%c2, %c0_24, %c0_25] : memref<30x128x256xbf16, #tpu.memory_space<vmem>>, vector<1x128x256xbf16>
    %27 = vector.shape_cast %26 : vector<1x128x256xbf16> to vector<128x256xbf16>
    %cst_26 = arith.constant dense<0.000000e+00> : vector<16x256xf32>
    %28 = tpu.matmul %25, %27, %cst_26 {dimension_numbers = #tpu.dot_dimension_numbers<[1], [0], [0], [1], [0, 0, 1, 1], [], []>} : vector<16x128xbf16>, vector<128x256xbf16>, vector<16x256xf32> -> vector<16x256xf32>
    %29 = arith.addf %23, %28 : vector<16x256xf32>
    %c17 = arith.constant 17 : index
    %c0_27 = arith.constant 0 : index
    %30 = vector.load %arg6[%c17, %c0_27] : memref<48x128xf32, #tpu.memory_space<vmem>>, vector<16x128xf32>
    %31 = arith.truncf %30 : vector<16x128xf32> to vector<16x128xbf16>
    %c3 = arith.constant 3 : index
    %c0_28 = arith.constant 0 : index
    %c0_29 = arith.constant 0 : index
    %32 = vector.load %arg3[%c3, %c0_28, %c0_29] : memref<30x128x256xbf16, #tpu.memory_space<vmem>>, vector<1x128x256xbf16>
    %33 = vector.shape_cast %32 : vector<1x128x256xbf16> to vector<128x256xbf16>
    %cst_30 = arith.constant dense<0.000000e+00> : vector<16x256xf32>
    %34 = tpu.matmul %31, %33, %cst_30 {dimension_numbers = #tpu.dot_dimension_numbers<[1], [0], [0], [1], [0, 0, 1, 1], [], []>} : vector<16x128xbf16>, vector<128x256xbf16>, vector<16x256xf32> -> vector<16x256xf32>
    %35 = arith.addf %29, %34 : vector<16x256xf32>
    %c18 = arith.constant 18 : index
    %c0_31 = arith.constant 0 : index
    %36 = vector.load %arg6[%c18, %c0_31] : memref<48x128xf32, #tpu.memory_space<vmem>>, vector<16x128xf32>
    %37 = arith.truncf %36 : vector<16x128xf32> to vector<16x128xbf16>
    %c4 = arith.constant 4 : index
    %c0_32 = arith.constant 0 : index
    %c0_33 = arith.constant 0 : index
    %38 = vector.load %arg3[%c4, %c0_32, %c0_33] : memref<30x128x256xbf16, #tpu.memory_space<vmem>>, vector<1x128x256xbf16>
    %39 = vector.shape_cast %38 : vector<1x128x256xbf16> to vector<128x256xbf16>
    %cst_34 = arith.constant dense<0.000000e+00> : vector<16x256xf32>
    %40 = tpu.matmul %37, %39, %cst_34 {dimension_numbers = #tpu.dot_dimension_numbers<[1], [0], [0], [1], [0, 0, 1, 1], [], []>} : vector<16x128xbf16>, vector<128x256xbf16>, vector<16x256xf32> -> vector<16x256xf32>
    %41 = arith.addf %35, %40 : vector<16x256xf32>
    %42 = vector.extract_strided_slice %41 {offsets = [0, 0], sizes = [16, 128], strides = [1, 1]} : vector<16x256xf32> to vector<16x128xf32>
    %43 = math.tanh %42 : vector<16x128xf32>
    %44 = vector.extract_strided_slice %41 {offsets = [0, 128], sizes = [16, 128], strides = [1, 1]} : vector<16x256xf32> to vector<16x128xf32>
    %45 = arith.negf %44 : vector<16x128xf32>
    %46 = math.exp %45 : vector<16x128xf32>
    %cst_35 = arith.constant 1.000000e+00 : f32
    %47 = vector.broadcast %cst_35 : f32 to vector<16x128xf32>
    %48 = arith.addf %47, %46 : vector<16x128xf32>
    %49 = arith.divf %47, %48 : vector<16x128xf32>
    %50 = arith.mulf %43, %49 : vector<16x128xf32>
    %51 = arith.truncf %50 : vector<16x128xf32> to vector<16x128xbf16>
    %c0_36 = arith.constant 0 : index
    %c0_37 = arith.constant 0 : index
    %c0_38 = arith.constant 0 : index
    %52 = vector.load %arg4[%c0_36, %c0_37, %c0_38] : memref<6x128x256xbf16, #tpu.memory_space<vmem>>, vector<1x128x256xbf16>
    %53 = vector.shape_cast %52 : vector<1x128x256xbf16> to vector<128x256xbf16>
    %cst_39 = arith.constant dense<0.000000e+00> : vector<16x256xf32>
    %54 = tpu.matmul %51, %53, %cst_39 {dimension_numbers = #tpu.dot_dimension_numbers<[1], [0], [0], [1], [0, 0, 1, 1], [], []>} : vector<16x128xbf16>, vector<128x256xbf16>, vector<16x256xf32> -> vector<16x256xf32>
    %c16_40 = arith.constant 16 : index
    %c0_41 = arith.constant 0 : index
    %55 = vector.load %arg6[%c16_40, %c0_41] : memref<48x128xf32, #tpu.memory_space<vmem>>, vector<16x128xf32>
    %56 = vector.extract_strided_slice %54 {offsets = [0, 0], sizes = [16, 128], strides = [1, 1]} : vector<16x256xf32> to vector<16x128xf32>
    %57 = arith.addf %56, %55 : vector<16x128xf32>
    %c16_42 = arith.constant 16 : index
    %c0_43 = arith.constant 0 : index
    %58 = vector.load %arg6[%c16_42, %c0_43] : memref<48x128xf32, #tpu.memory_space<vmem>>, vector<16x128xf32>
    tpu.vector_store %arg6[%c16_42, %c0_43], %57 {strides = array<i32>} : memref<48x128xf32, #tpu.memory_space<vmem>>, vector<16x128xf32>,
    %c0_44 = arith.constant 0 : index
    %c0_45 = arith.constant 0 : index
    %c0_46 = arith.constant 0 : index
    %59 = vector.load %arg5[%c0_44, %c0_45, %c0_46] : memref<1x16x128xf32, #tpu.memory_space<vmem>>, vector<1x16x128xf32>
    %60 = vector.shape_cast %59 : vector<1x16x128xf32> to vector<16x128xf32>
    %61 = vector.extract_strided_slice %54 {offsets = [0, 128], sizes = [16, 128], strides = [1, 1]} : vector<16x256xf32> to vector<16x128xf32>
    %62 = arith.addf %60, %61 : vector<16x128xf32>
    %c0_47 = arith.constant 0 : index
    %c0_48 = arith.constant 0 : index
    %c0_49 = arith.constant 0 : index
    %63 = vector.load %arg5[%c0_47, %c0_48, %c0_49] : memref<1x16x128xf32, #tpu.memory_space<vmem>>, vector<1x16x128xf32>
    %64 = vector.shape_cast %63 : vector<1x16x128xf32> to vector<16x128xf32>
    %65 = vector.shape_cast %62 : vector<16x128xf32> to vector<1x16x128xf32>
    tpu.vector_store %arg5[%c0_47, %c0_48, %c0_49], %65 {strides = array<i32>} : memref<1x16x128xf32, #tpu.memory_space<vmem>>, vector<1x16x128xf32>,
    %cst_50 = arith.constant 0.000000e+00 : f32
    %66 = vector.broadcast %cst_50 : f32 to vector<16x256xf32>
    %c12 = arith.constant 12 : index
    %c0_51 = arith.constant 0 : index
    %67 = vector.load %arg6[%c12, %c0_51] : memref<48x128xf32, #tpu.memory_space<vmem>>, vector<16x128xf32>
    %68 = arith.truncf %67 : vector<16x128xf32> to vector<16x128xbf16>
    %c5 = arith.constant 5 : index
    %c0_52 = arith.constant 0 : index
    %c0_53 = arith.constant 0 : index
    %69 = vector.load %arg3[%c5, %c0_52, %c0_53] : memref<30x128x256xbf16, #tpu.memory_space<vmem>>, vector<1x128x256xbf16>
    %70 = vector.shape_cast %69 : vector<1x128x256xbf16> to vector<128x256xbf16>
    %cst_54 = arith.constant dense<0.000000e+00> : vector<16x256xf32>
    %71 = tpu.matmul %68, %70, %cst_54 {dimension_numbers = #tpu.dot_dimension_numbers<[1], [0], [0], [1], [0, 0, 1, 1], [], []>} : vector<16x128xbf16>, vector<128x256xbf16>, vector<16x256xf32> -> vector<16x256xf32>
    %72 = arith.addf %66, %71 : vector<16x256xf32>
    %c14_55 = arith.constant 14 : index
    %c0_56 = arith.constant 0 : index
    %73 = vector.load %arg6[%c14_55, %c0_56] : memref<48x128xf32, #tpu.memory_space<vmem>>, vector<16x128xf32>
    %74 = arith.truncf %73 : vector<16x128xf32> to vector<16x128xbf16>
    %c6 = arith.constant 6 : index
    %c0_57 = arith.constant 0 : index
    %c0_58 = arith.constant 0 : index
    %75 = vector.load %arg3[%c6, %c0_57, %c0_58] : memref<30x128x256xbf16, #tpu.memory_space<vmem>>, vector<1x128x256xbf16>
    %76 = vector.shape_cast %75 : vector<1x128x256xbf16> to vector<128x256xbf16>
    %cst_59 = arith.constant dense<0.000000e+00> : vector<16x256xf32>
    %77 = tpu.matmul %74, %76, %cst_59 {dimension_numbers = #tpu.dot_dimension_numbers<[1], [0], [0], [1], [0, 0, 1, 1], [], []>} : vector<16x128xbf16>, vector<128x256xbf16>, vector<16x256xf32> -> vector<16x256xf32>
    %78 = arith.addf %72, %77 : vector<16x256xf32>
    %c16_60 = arith.constant 16 : index
    %c0_61 = arith.constant 0 : index
    %79 = vector.load %arg6[%c16_60, %c0_61] : memref<48x128xf32, #tpu.memory_space<vmem>>, vector<16x128xf32>
    %80 = arith.truncf %79 : vector<16x128xf32> to vector<16x128xbf16>
    %c7 = arith.constant 7 : index
    %c0_62 = arith.constant 0 : index
    %c0_63 = arith.constant 0 : index
    %81 = vector.load %arg3[%c7, %c0_62, %c0_63] : memref<30x128x256xbf16, #tpu.memory_space<vmem>>, vector<1x128x256xbf16>
    %82 = vector.shape_cast %81 : vector<1x128x256xbf16> to vector<128x256xbf16>
    %cst_64 = arith.constant dense<0.000000e+00> : vector<16x256xf32>
    %83 = tpu.matmul %80, %82, %cst_64 {dimension_numbers = #tpu.dot_dimension_numbers<[1], [0], [0], [1], [0, 0, 1, 1], [], []>} : vector<16x128xbf16>, vector<128x256xbf16>, vector<16x256xf32> -> vector<16x256xf32>
    %84 = arith.addf %78, %83 : vector<16x256xf32>
    %c18_65 = arith.constant 18 : index
    %c0_66 = arith.constant 0 : index
    %85 = vector.load %arg6[%c18_65, %c0_66] : memref<48x128xf32, #tpu.memory_space<vmem>>, vector<16x128xf32>
    %86 = arith.truncf %85 : vector<16x128xf32> to vector<16x128xbf16>
    %c8 = arith.constant 8 : index
    %c0_67 = arith.constant 0 : index
    %c0_68 = arith.constant 0 : index
    %87 = vector.load %arg3[%c8, %c0_67, %c0_68] : memref<30x128x256xbf16, #tpu.memory_space<vmem>>, vector<1x128x256xbf16>
    %88 = vector.shape_cast %87 : vector<1x128x256xbf16> to vector<128x256xbf16>
    %cst_69 = arith.constant dense<0.000000e+00> : vector<16x256xf32>
    %89 = tpu.matmul %86, %88, %cst_69 {dimension_numbers = #tpu.dot_dimension_numbers<[1], [0], [0], [1], [0, 0, 1, 1], [], []>} : vector<16x128xbf16>, vector<128x256xbf16>, vector<16x256xf32> -> vector<16x256xf32>
    %90 = arith.addf %84, %89 : vector<16x256xf32>
    %c20 = arith.constant 20 : index
    %c0_70 = arith.constant 0 : index
    %91 = vector.load %arg6[%c20, %c0_70] : memref<48x128xf32, #tpu.memory_space<vmem>>, vector<16x128xf32>
    %92 = arith.truncf %91 : vector<16x128xf32> to vector<16x128xbf16>
    %c9 = arith.constant 9 : index
    %c0_71 = arith.constant 0 : index
    %c0_72 = arith.constant 0 : index
    %93 = vector.load %arg3[%c9, %c0_71, %c0_72] : memref<30x128x256xbf16, #tpu.memory_space<vmem>>, vector<1x128x256xbf16>
    %94 = vector.shape_cast %93 : vector<1x128x256xbf16> to vector<128x256xbf16>
    %cst_73 = arith.constant dense<0.000000e+00> : vector<16x256xf32>
    %95 = tpu.matmul %92, %94, %cst_73 {dimension_numbers = #tpu.dot_dimension_numbers<[1], [0], [0], [1], [0, 0, 1, 1], [], []>} : vector<16x128xbf16>, vector<128x256xbf16>, vector<16x256xf32> -> vector<16x256xf32>
    %96 = arith.addf %90, %95 : vector<16x256xf32>
    %97 = vector.extract_strided_slice %96 {offsets = [0, 0], sizes = [16, 128], strides = [1, 1]} : vector<16x256xf32> to vector<16x128xf32>
    %98 = math.tanh %97 : vector<16x128xf32>
    %99 = vector.extract_strided_slice %96 {offsets = [0, 128], sizes = [16, 128], strides = [1, 1]} : vector<16x256xf32> to vector<16x128xf32>
    %100 = arith.negf %99 : vector<16x128xf32>
    %101 = math.exp %100 : vector<16x128xf32>
    %cst_74 = arith.constant 1.000000e+00 : f32
    %102 = vector.broadcast %cst_74 : f32 to vector<16x128xf32>
    %103 = arith.addf %102, %101 : vector<16x128xf32>
    %104 = arith.divf %102, %103 : vector<16x128xf32>
    %105 = arith.mulf %98, %104 : vector<16x128xf32>
    %106 = arith.truncf %105 : vector<16x128xf32> to vector<16x128xbf16>
    %c1_75 = arith.constant 1 : index
    %c0_76 = arith.constant 0 : index
    %c0_77 = arith.constant 0 : index
    %107 = vector.load %arg4[%c1_75, %c0_76, %c0_77] : memref<6x128x256xbf16, #tpu.memory_space<vmem>>, vector<1x128x256xbf16>
    %108 = vector.shape_cast %107 : vector<1x128x256xbf16> to vector<128x256xbf16>
    %cst_78 = arith.constant dense<0.000000e+00> : vector<16x256xf32>
    %109 = tpu.matmul %106, %108, %cst_78 {dimension_numbers = #tpu.dot_dimension_numbers<[1], [0], [0], [1], [0, 0, 1, 1], [], []>} : vector<16x128xbf16>, vector<128x256xbf16>, vector<16x256xf32> -> vector<16x256xf32>
    %c16_79 = arith.constant 16 : index
    %c0_80 = arith.constant 0 : index
    %110 = vector.load %arg6[%c16_79, %c0_80] : memref<48x128xf32, #tpu.memory_space<vmem>>, vector<16x128xf32>
    %111 = vector.extract_strided_slice %109 {offsets = [0, 0], sizes = [16, 128], strides = [1, 1]} : vector<16x256xf32> to vector<16x128xf32>
    %112 = arith.addf %111, %110 : vector<16x128xf32>
    %c16_81 = arith.constant 16 : index
    %c0_82 = arith.constant 0 : index
    %113 = vector.load %arg6[%c16_81, %c0_82] : memref<48x128xf32, #tpu.memory_space<vmem>>, vector<16x128xf32>
    tpu.vector_store %arg6[%c16_81, %c0_82], %112 {strides = array<i32>} : memref<48x128xf32, #tpu.memory_space<vmem>>, vector<16x128xf32>,
    %c0_83 = arith.constant 0 : index
    %c0_84 = arith.constant 0 : index
    %c0_85 = arith.constant 0 : index
    %114 = vector.load %arg5[%c0_83, %c0_84, %c0_85] : memref<1x16x128xf32, #tpu.memory_space<vmem>>, vector<1x16x128xf32>
    %115 = vector.shape_cast %114 : vector<1x16x128xf32> to vector<16x128xf32>
    %116 = vector.extract_strided_slice %109 {offsets = [0, 128], sizes = [16, 128], strides = [1, 1]} : vector<16x256xf32> to vector<16x128xf32>
    %117 = arith.addf %115, %116 : vector<16x128xf32>
    %c0_86 = arith.constant 0 : index
    %c0_87 = arith.constant 0 : index
    %c0_88 = arith.constant 0 : index
    %118 = vector.load %arg5[%c0_86, %c0_87, %c0_88] : memref<1x16x128xf32, #tpu.memory_space<vmem>>, vector<1x16x128xf32>
    %119 = vector.shape_cast %118 : vector<1x16x128xf32> to vector<16x128xf32>
    %120 = vector.shape_cast %117 : vector<16x128xf32> to vector<1x16x128xf32>
    tpu.vector_store %arg5[%c0_86, %c0_87, %c0_88], %120 {strides = array<i32>} : memref<1x16x128xf32, #tpu.memory_space<vmem>>, vector<1x16x128xf32>,
    %cst_89 = arith.constant 0.000000e+00 : f32
    %121 = vector.broadcast %cst_89 : f32 to vector<16x256xf32>
    %c6_90 = arith.constant 6 : index
    %c0_91 = arith.constant 0 : index
    %122 = vector.load %arg6[%c6_90, %c0_91] : memref<48x128xf32, #tpu.memory_space<vmem>>, vector<16x128xf32>
    %123 = arith.truncf %122 : vector<16x128xf32> to vector<16x128xbf16>
    %c10 = arith.constant 10 : index
    %c0_92 = arith.constant 0 : index
    %c0_93 = arith.constant 0 : index
    %124 = vector.load %arg3[%c10, %c0_92, %c0_93] : memref<30x128x256xbf16, #tpu.memory_space<vmem>>, vector<1x128x256xbf16>
    %125 = vector.shape_cast %124 : vector<1x128x256xbf16> to vector<128x256xbf16>
    %cst_94 = arith.constant dense<0.000000e+00> : vector<16x256xf32>
    %126 = tpu.matmul %123, %125, %cst_94 {dimension_numbers = #tpu.dot_dimension_numbers<[1], [0], [0], [1], [0, 0, 1, 1], [], []>} : vector<16x128xbf16>, vector<128x256xbf16>, vector<16x256xf32> -> vector<16x256xf32>
    %127 = arith.addf %121, %126 : vector<16x256xf32>
    %c11 = arith.constant 11 : index
    %c0_95 = arith.constant 0 : index
    %128 = vector.load %arg6[%c11, %c0_95] : memref<48x128xf32, #tpu.memory_space<vmem>>, vector<16x128xf32>
    %129 = arith.truncf %128 : vector<16x128xf32> to vector<16x128xbf16>
    %c11_96 = arith.constant 11 : index
    %c0_97 = arith.constant 0 : index
    %c0_98 = arith.constant 0 : index
    %130 = vector.load %arg3[%c11_96, %c0_97, %c0_98] : memref<30x128x256xbf16, #tpu.memory_space<vmem>>, vector<1x128x256xbf16>
    %131 = vector.shape_cast %130 : vector<1x128x256xbf16> to vector<128x256xbf16>
    %cst_99 = arith.constant dense<0.000000e+00> : vector<16x256xf32>
    %132 = tpu.matmul %129, %131, %cst_99 {dimension_numbers = #tpu.dot_dimension_numbers<[1], [0], [0], [1], [0, 0, 1, 1], [], []>} : vector<16x128xbf16>, vector<128x256xbf16>, vector<16x256xf32> -> vector<16x256xf32>
    %133 = arith.addf %127, %132 : vector<16x256xf32>
    %c16_100 = arith.constant 16 : index
    %c0_101 = arith.constant 0 : index
    %134 = vector.load %arg6[%c16_100, %c0_101] : memref<48x128xf32, #tpu.memory_space<vmem>>, vector<16x128xf32>
    %135 = arith.truncf %134 : vector<16x128xf32> to vector<16x128xbf16>
    %c12_102 = arith.constant 12 : index
    %c0_103 = arith.constant 0 : index
    %c0_104 = arith.constant 0 : index
    %136 = vector.load %arg3[%c12_102, %c0_103, %c0_104] : memref<30x128x256xbf16, #tpu.memory_space<vmem>>, vector<1x128x256xbf16>
    %137 = vector.shape_cast %136 : vector<1x128x256xbf16> to vector<128x256xbf16>
    %cst_105 = arith.constant dense<0.000000e+00> : vector<16x256xf32>
    %138 = tpu.matmul %135, %137, %cst_105 {dimension_numbers = #tpu.dot_dimension_numbers<[1], [0], [0], [1], [0, 0, 1, 1], [], []>} : vector<16x128xbf16>, vector<128x256xbf16>, vector<16x256xf32> -> vector<16x256xf32>
    %139 = arith.addf %133, %138 : vector<16x256xf32>
    %c21 = arith.constant 21 : index
    %c0_106 = arith.constant 0 : index
    %140 = vector.load %arg6[%c21, %c0_106] : memref<48x128xf32, #tpu.memory_space<vmem>>, vector<16x128xf32>
    %141 = arith.truncf %140 : vector<16x128xf32> to vector<16x128xbf16>
    %c13 = arith.constant 13 : index
    %c0_107 = arith.constant 0 : index
    %c0_108 = arith.constant 0 : index
    %142 = vector.load %arg3[%c13, %c0_107, %c0_108] : memref<30x128x256xbf16, #tpu.memory_space<vmem>>, vector<1x128x256xbf16>
    %143 = vector.shape_cast %142 : vector<1x128x256xbf16> to vector<128x256xbf16>
    %cst_109 = arith.constant dense<0.000000e+00> : vector<16x256xf32>
    %144 = tpu.matmul %141, %143, %cst_109 {dimension_numbers = #tpu.dot_dimension_numbers<[1], [0], [0], [1], [0, 0, 1, 1], [], []>} : vector<16x128xbf16>, vector<128x256xbf16>, vector<16x256xf32> -> vector<16x256xf32>
    %145 = arith.addf %139, %144 : vector<16x256xf32>
    %c26 = arith.constant 26 : index
    %c0_110 = arith.constant 0 : index
    %146 = vector.load %arg6[%c26, %c0_110] : memref<48x128xf32, #tpu.memory_space<vmem>>, vector<16x128xf32>
    %147 = arith.truncf %146 : vector<16x128xf32> to vector<16x128xbf16>
    %c14_111 = arith.constant 14 : index
    %c0_112 = arith.constant 0 : index
    %c0_113 = arith.constant 0 : index
    %148 = vector.load %arg3[%c14_111, %c0_112, %c0_113] : memref<30x128x256xbf16, #tpu.memory_space<vmem>>, vector<1x128x256xbf16>
    %149 = vector.shape_cast %148 : vector<1x128x256xbf16> to vector<128x256xbf16>
    %cst_114 = arith.constant dense<0.000000e+00> : vector<16x256xf32>
    %150 = tpu.matmul %147, %149, %cst_114 {dimension_numbers = #tpu.dot_dimension_numbers<[1], [0], [0], [1], [0, 0, 1, 1], [], []>} : vector<16x128xbf16>, vector<128x256xbf16>, vector<16x256xf32> -> vector<16x256xf32>
    %151 = arith.addf %145, %150 : vector<16x256xf32>
    %152 = vector.extract_strided_slice %151 {offsets = [0, 0], sizes = [16, 128], strides = [1, 1]} : vector<16x256xf32> to vector<16x128xf32>
    %153 = math.tanh %152 : vector<16x128xf32>
    %154 = vector.extract_strided_slice %151 {offsets = [0, 128], sizes = [16, 128], strides = [1, 1]} : vector<16x256xf32> to vector<16x128xf32>
    %155 = arith.negf %154 : vector<16x128xf32>
    %156 = math.exp %155 : vector<16x128xf32>
    %cst_115 = arith.constant 1.000000e+00 : f32
    %157 = vector.broadcast %cst_115 : f32 to vector<16x128xf32>
    %158 = arith.addf %157, %156 : vector<16x128xf32>
    %159 = arith.divf %157, %158 : vector<16x128xf32>
    %160 = arith.mulf %153, %159 : vector<16x128xf32>
    %161 = arith.truncf %160 : vector<16x128xf32> to vector<16x128xbf16>
    %c2_116 = arith.constant 2 : index
    %c0_117 = arith.constant 0 : index
    %c0_118 = arith.constant 0 : index
    %162 = vector.load %arg4[%c2_116, %c0_117, %c0_118] : memref<6x128x256xbf16, #tpu.memory_space<vmem>>, vector<1x128x256xbf16>
    %163 = vector.shape_cast %162 : vector<1x128x256xbf16> to vector<128x256xbf16>
    %cst_119 = arith.constant dense<0.000000e+00> : vector<16x256xf32>
    %164 = tpu.matmul %161, %163, %cst_119 {dimension_numbers = #tpu.dot_dimension_numbers<[1], [0], [0], [1], [0, 0, 1, 1], [], []>} : vector<16x128xbf16>, vector<128x256xbf16>, vector<16x256xf32> -> vector<16x256xf32>
    %c16_120 = arith.constant 16 : index
    %c0_121 = arith.constant 0 : index
    %165 = vector.load %arg6[%c16_120, %c0_121] : memref<48x128xf32, #tpu.memory_space<vmem>>, vector<16x128xf32>
    %166 = vector.extract_strided_slice %164 {offsets = [0, 0], sizes = [16, 128], strides = [1, 1]} : vector<16x256xf32> to vector<16x128xf32>
    %167 = arith.addf %166, %165 : vector<16x128xf32>
    %c16_122 = arith.constant 16 : index
    %c0_123 = arith.constant 0 : index
    %168 = vector.load %arg6[%c16_122, %c0_123] : memref<48x128xf32, #tpu.memory_space<vmem>>, vector<16x128xf32>
    tpu.vector_store %arg6[%c16_122, %c0_123], %167 {strides = array<i32>} : memref<48x128xf32, #tpu.memory_space<vmem>>, vector<16x128xf32>,
    %c0_124 = arith.constant 0 : index
    %c0_125 = arith.constant 0 : index
    %c0_126 = arith.constant 0 : index
    %169 = vector.load %arg5[%c0_124, %c0_125, %c0_126] : memref<1x16x128xf32, #tpu.memory_space<vmem>>, vector<1x16x128xf32>
    %170 = vector.shape_cast %169 : vector<1x16x128xf32> to vector<16x128xf32>
    %171 = vector.extract_strided_slice %164 {offsets = [0, 128], sizes = [16, 128], strides = [1, 1]} : vector<16x256xf32> to vector<16x128xf32>
    %172 = arith.addf %170, %171 : vector<16x128xf32>
    %c0_127 = arith.constant 0 : index
    %c0_128 = arith.constant 0 : index
    %c0_129 = arith.constant 0 : index
    %173 = vector.load %arg5[%c0_127, %c0_128, %c0_129] : memref<1x16x128xf32, #tpu.memory_space<vmem>>, vector<1x16x128xf32>
    %174 = vector.shape_cast %173 : vector<1x16x128xf32> to vector<16x128xf32>
    %175 = vector.shape_cast %172 : vector<16x128xf32> to vector<1x16x128xf32>
    tpu.vector_store %arg5[%c0_127, %c0_128, %c0_129], %175 {strides = array<i32>} : memref<1x16x128xf32, #tpu.memory_space<vmem>>, vector<1x16x128xf32>,
    %cst_130 = arith.constant 0.000000e+00 : f32
    %176 = vector.broadcast %cst_130 : f32 to vector<16x256xf32>
    %c12_131 = arith.constant 12 : index
    %c0_132 = arith.constant 0 : index
    %177 = vector.load %arg6[%c12_131, %c0_132] : memref<48x128xf32, #tpu.memory_space<vmem>>, vector<16x128xf32>
    %178 = arith.truncf %177 : vector<16x128xf32> to vector<16x128xbf16>
    %c15_133 = arith.constant 15 : index
    %c0_134 = arith.constant 0 : index
    %c0_135 = arith.constant 0 : index
    %179 = vector.load %arg3[%c15_133, %c0_134, %c0_135] : memref<30x128x256xbf16, #tpu.memory_space<vmem>>, vector<1x128x256xbf16>
    %180 = vector.shape_cast %179 : vector<1x128x256xbf16> to vector<128x256xbf16>
    %cst_136 = arith.constant dense<0.000000e+00> : vector<16x256xf32>
    %181 = tpu.matmul %178, %180, %cst_136 {dimension_numbers = #tpu.dot_dimension_numbers<[1], [0], [0], [1], [0, 0, 1, 1], [], []>} : vector<16x128xbf16>, vector<128x256xbf16>, vector<16x256xf32> -> vector<16x256xf32>
    %182 = arith.addf %176, %181 : vector<16x256xf32>
    %c14_137 = arith.constant 14 : index
    %c0_138 = arith.constant 0 : index
    %183 = vector.load %arg6[%c14_137, %c0_138] : memref<48x128xf32, #tpu.memory_space<vmem>>, vector<16x128xf32>
    %184 = arith.truncf %183 : vector<16x128xf32> to vector<16x128xbf16>
    %c16_139 = arith.constant 16 : index
    %c0_140 = arith.constant 0 : index
    %c0_141 = arith.constant 0 : index
    %185 = vector.load %arg3[%c16_139, %c0_140, %c0_141] : memref<30x128x256xbf16, #tpu.memory_space<vmem>>, vector<1x128x256xbf16>
    %186 = vector.shape_cast %185 : vector<1x128x256xbf16> to vector<128x256xbf16>
    %cst_142 = arith.constant dense<0.000000e+00> : vector<16x256xf32>
    %187 = tpu.matmul %184, %186, %cst_142 {dimension_numbers = #tpu.dot_dimension_numbers<[1], [0], [0], [1], [0, 0, 1, 1], [], []>} : vector<16x128xbf16>, vector<128x256xbf16>, vector<16x256xf32> -> vector<16x256xf32>
    %188 = arith.addf %182, %187 : vector<16x256xf32>
    %c16_143 = arith.constant 16 : index
    %c0_144 = arith.constant 0 : index
    %189 = vector.load %arg6[%c16_143, %c0_144] : memref<48x128xf32, #tpu.memory_space<vmem>>, vector<16x128xf32>
    %190 = arith.truncf %189 : vector<16x128xf32> to vector<16x128xbf16>
    %c17_145 = arith.constant 17 : index
    %c0_146 = arith.constant 0 : index
    %c0_147 = arith.constant 0 : index
    %191 = vector.load %arg3[%c17_145, %c0_146, %c0_147] : memref<30x128x256xbf16, #tpu.memory_space<vmem>>, vector<1x128x256xbf16>
    %192 = vector.shape_cast %191 : vector<1x128x256xbf16> to vector<128x256xbf16>
    %cst_148 = arith.constant dense<0.000000e+00> : vector<16x256xf32>
    %193 = tpu.matmul %190, %192, %cst_148 {dimension_numbers = #tpu.dot_dimension_numbers<[1], [0], [0], [1], [0, 0, 1, 1], [], []>} : vector<16x128xbf16>, vector<128x256xbf16>, vector<16x256xf32> -> vector<16x256xf32>
    %194 = arith.addf %188, %193 : vector<16x256xf32>
    %c18_149 = arith.constant 18 : index
    %c0_150 = arith.constant 0 : index
    %195 = vector.load %arg6[%c18_149, %c0_150] : memref<48x128xf32, #tpu.memory_space<vmem>>, vector<16x128xf32>
    %196 = arith.truncf %195 : vector<16x128xf32> to vector<16x128xbf16>
    %c18_151 = arith.constant 18 : index
    %c0_152 = arith.constant 0 : index
    %c0_153 = arith.constant 0 : index
    %197 = vector.load %arg3[%c18_151, %c0_152, %c0_153] : memref<30x128x256xbf16, #tpu.memory_space<vmem>>, vector<1x128x256xbf16>
    %198 = vector.shape_cast %197 : vector<1x128x256xbf16> to vector<128x256xbf16>
    %cst_154 = arith.constant dense<0.000000e+00> : vector<16x256xf32>
    %199 = tpu.matmul %196, %198, %cst_154 {dimension_numbers = #tpu.dot_dimension_numbers<[1], [0], [0], [1], [0, 0, 1, 1], [], []>} : vector<16x128xbf16>, vector<128x256xbf16>, vector<16x256xf32> -> vector<16x256xf32>
    %200 = arith.addf %194, %199 : vector<16x256xf32>
    %c20_155 = arith.constant 20 : index
    %c0_156 = arith.constant 0 : index
    %201 = vector.load %arg6[%c20_155, %c0_156] : memref<48x128xf32, #tpu.memory_space<vmem>>, vector<16x128xf32>
    %202 = arith.truncf %201 : vector<16x128xf32> to vector<16x128xbf16>
    %c19 = arith.constant 19 : index
    %c0_157 = arith.constant 0 : index
    %c0_158 = arith.constant 0 : index
    %203 = vector.load %arg3[%c19, %c0_157, %c0_158] : memref<30x128x256xbf16, #tpu.memory_space<vmem>>, vector<1x128x256xbf16>
    %204 = vector.shape_cast %203 : vector<1x128x256xbf16> to vector<128x256xbf16>
    %cst_159 = arith.constant dense<0.000000e+00> : vector<16x256xf32>
    %205 = tpu.matmul %202, %204, %cst_159 {dimension_numbers = #tpu.dot_dimension_numbers<[1], [0], [0], [1], [0, 0, 1, 1], [], []>} : vector<16x128xbf16>, vector<128x256xbf16>, vector<16x256xf32> -> vector<16x256xf32>
    %206 = arith.addf %200, %205 : vector<16x256xf32>
    %207 = vector.extract_strided_slice %206 {offsets = [0, 0], sizes = [16, 128], strides = [1, 1]} : vector<16x256xf32> to vector<16x128xf32>
    %208 = math.tanh %207 : vector<16x128xf32>
    %209 = vector.extract_strided_slice %206 {offsets = [0, 128], sizes = [16, 128], strides = [1, 1]} : vector<16x256xf32> to vector<16x128xf32>
    %210 = arith.negf %209 : vector<16x128xf32>
    %211 = math.exp %210 : vector<16x128xf32>
    %cst_160 = arith.constant 1.000000e+00 : f32
    %212 = vector.broadcast %cst_160 : f32 to vector<16x128xf32>
    %213 = arith.addf %212, %211 : vector<16x128xf32>
    %214 = arith.divf %212, %213 : vector<16x128xf32>
    %215 = arith.mulf %208, %214 : vector<16x128xf32>
    %216 = arith.truncf %215 : vector<16x128xf32> to vector<16x128xbf16>
    %c3_161 = arith.constant 3 : index
    %c0_162 = arith.constant 0 : index
    %c0_163 = arith.constant 0 : index
    %217 = vector.load %arg4[%c3_161, %c0_162, %c0_163] : memref<6x128x256xbf16, #tpu.memory_space<vmem>>, vector<1x128x256xbf16>
    %218 = vector.shape_cast %217 : vector<1x128x256xbf16> to vector<128x256xbf16>
    %cst_164 = arith.constant dense<0.000000e+00> : vector<16x256xf32>
    %219 = tpu.matmul %216, %218, %cst_164 {dimension_numbers = #tpu.dot_dimension_numbers<[1], [0], [0], [1], [0, 0, 1, 1], [], []>} : vector<16x128xbf16>, vector<128x256xbf16>, vector<16x256xf32> -> vector<16x256xf32>
    %c16_165 = arith.constant 16 : index
    %c0_166 = arith.constant 0 : index
    %220 = vector.load %arg6[%c16_165, %c0_166] : memref<48x128xf32, #tpu.memory_space<vmem>>, vector<16x128xf32>
    %221 = vector.extract_strided_slice %219 {offsets = [0, 0], sizes = [16, 128], strides = [1, 1]} : vector<16x256xf32> to vector<16x128xf32>
    %222 = arith.addf %221, %220 : vector<16x128xf32>
    %c16_167 = arith.constant 16 : index
    %c0_168 = arith.constant 0 : index
    %223 = vector.load %arg6[%c16_167, %c0_168] : memref<48x128xf32, #tpu.memory_space<vmem>>, vector<16x128xf32>
    tpu.vector_store %arg6[%c16_167, %c0_168], %222 {strides = array<i32>} : memref<48x128xf32, #tpu.memory_space<vmem>>, vector<16x128xf32>,
    %c0_169 = arith.constant 0 : index
    %c0_170 = arith.constant 0 : index
    %c0_171 = arith.constant 0 : index
    %224 = vector.load %arg5[%c0_169, %c0_170, %c0_171] : memref<1x16x128xf32, #tpu.memory_space<vmem>>, vector<1x16x128xf32>
    %225 = vector.shape_cast %224 : vector<1x16x128xf32> to vector<16x128xf32>
    %226 = vector.extract_strided_slice %219 {offsets = [0, 128], sizes = [16, 128], strides = [1, 1]} : vector<16x256xf32> to vector<16x128xf32>
    %227 = arith.addf %225, %226 : vector<16x128xf32>
    %c0_172 = arith.constant 0 : index
    %c0_173 = arith.constant 0 : index
    %c0_174 = arith.constant 0 : index
    %228 = vector.load %arg5[%c0_172, %c0_173, %c0_174] : memref<1x16x128xf32, #tpu.memory_space<vmem>>, vector<1x16x128xf32>
    %229 = vector.shape_cast %228 : vector<1x16x128xf32> to vector<16x128xf32>
    %230 = vector.shape_cast %227 : vector<16x128xf32> to vector<1x16x128xf32>
    tpu.vector_store %arg5[%c0_172, %c0_173, %c0_174], %230 {strides = array<i32>} : memref<1x16x128xf32, #tpu.memory_space<vmem>>, vector<1x16x128xf32>,
    %cst_175 = arith.constant 0.000000e+00 : f32
    %231 = vector.broadcast %cst_175 : f32 to vector<16x256xf32>
    %c12_176 = arith.constant 12 : index
    %c0_177 = arith.constant 0 : index
    %232 = vector.load %arg6[%c12_176, %c0_177] : memref<48x128xf32, #tpu.memory_space<vmem>>, vector<16x128xf32>
    %233 = arith.truncf %232 : vector<16x128xf32> to vector<16x128xbf16>
    %c20_178 = arith.constant 20 : index
    %c0_179 = arith.constant 0 : index
    %c0_180 = arith.constant 0 : index
    %234 = vector.load %arg3[%c20_178, %c0_179, %c0_180] : memref<30x128x256xbf16, #tpu.memory_space<vmem>>, vector<1x128x256xbf16>
    %235 = vector.shape_cast %234 : vector<1x128x256xbf16> to vector<128x256xbf16>
    %cst_181 = arith.constant dense<0.000000e+00> : vector<16x256xf32>
    %236 = tpu.matmul %233, %235, %cst_181 {dimension_numbers = #tpu.dot_dimension_numbers<[1], [0], [0], [1], [0, 0, 1, 1], [], []>} : vector<16x128xbf16>, vector<128x256xbf16>, vector<16x256xf32> -> vector<16x256xf32>
    %237 = arith.addf %231, %236 : vector<16x256xf32>
    %c14_182 = arith.constant 14 : index
    %c0_183 = arith.constant 0 : index
    %238 = vector.load %arg6[%c14_182, %c0_183] : memref<48x128xf32, #tpu.memory_space<vmem>>, vector<16x128xf32>
    %239 = arith.truncf %238 : vector<16x128xf32> to vector<16x128xbf16>
    %c21_184 = arith.constant 21 : index
    %c0_185 = arith.constant 0 : index
    %c0_186 = arith.constant 0 : index
    %240 = vector.load %arg3[%c21_184, %c0_185, %c0_186] : memref<30x128x256xbf16, #tpu.memory_space<vmem>>, vector<1x128x256xbf16>
    %241 = vector.shape_cast %240 : vector<1x128x256xbf16> to vector<128x256xbf16>
    %cst_187 = arith.constant dense<0.000000e+00> : vector<16x256xf32>
    %242 = tpu.matmul %239, %241, %cst_187 {dimension_numbers = #tpu.dot_dimension_numbers<[1], [0], [0], [1], [0, 0, 1, 1], [], []>} : vector<16x128xbf16>, vector<128x256xbf16>, vector<16x256xf32> -> vector<16x256xf32>
    %243 = arith.addf %237, %242 : vector<16x256xf32>
    %c16_188 = arith.constant 16 : index
    %c0_189 = arith.constant 0 : index
    %244 = vector.load %arg6[%c16_188, %c0_189] : memref<48x128xf32, #tpu.memory_space<vmem>>, vector<16x128xf32>
    %245 = arith.truncf %244 : vector<16x128xf32> to vector<16x128xbf16>
    %c22 = arith.constant 22 : index
    %c0_190 = arith.constant 0 : index
    %c0_191 = arith.constant 0 : index
    %246 = vector.load %arg3[%c22, %c0_190, %c0_191] : memref<30x128x256xbf16, #tpu.memory_space<vmem>>, vector<1x128x256xbf16>
    %247 = vector.shape_cast %246 : vector<1x128x256xbf16> to vector<128x256xbf16>
    %cst_192 = arith.constant dense<0.000000e+00> : vector<16x256xf32>
    %248 = tpu.matmul %245, %247, %cst_192 {dimension_numbers = #tpu.dot_dimension_numbers<[1], [0], [0], [1], [0, 0, 1, 1], [], []>} : vector<16x128xbf16>, vector<128x256xbf16>, vector<16x256xf32> -> vector<16x256xf32>
    %249 = arith.addf %243, %248 : vector<16x256xf32>
    %c18_193 = arith.constant 18 : index
    %c0_194 = arith.constant 0 : index
    %250 = vector.load %arg6[%c18_193, %c0_194] : memref<48x128xf32, #tpu.memory_space<vmem>>, vector<16x128xf32>
    %251 = arith.truncf %250 : vector<16x128xf32> to vector<16x128xbf16>
    %c23 = arith.constant 23 : index
    %c0_195 = arith.constant 0 : index
    %c0_196 = arith.constant 0 : index
    %252 = vector.load %arg3[%c23, %c0_195, %c0_196] : memref<30x128x256xbf16, #tpu.memory_space<vmem>>, vector<1x128x256xbf16>
    %253 = vector.shape_cast %252 : vector<1x128x256xbf16> to vector<128x256xbf16>
    %cst_197 = arith.constant dense<0.000000e+00> : vector<16x256xf32>
    %254 = tpu.matmul %251, %253, %cst_197 {dimension_numbers = #tpu.dot_dimension_numbers<[1], [0], [0], [1], [0, 0, 1, 1], [], []>} : vector<16x128xbf16>, vector<128x256xbf16>, vector<16x256xf32> -> vector<16x256xf32>
    %255 = arith.addf %249, %254 : vector<16x256xf32>
    %c20_198 = arith.constant 20 : index
    %c0_199 = arith.constant 0 : index
    %256 = vector.load %arg6[%c20_198, %c0_199] : memref<48x128xf32, #tpu.memory_space<vmem>>, vector<16x128xf32>
    %257 = arith.truncf %256 : vector<16x128xf32> to vector<16x128xbf16>
    %c24 = arith.constant 24 : index
    %c0_200 = arith.constant 0 : index
    %c0_201 = arith.constant 0 : index
    %258 = vector.load %arg3[%c24, %c0_200, %c0_201] : memref<30x128x256xbf16, #tpu.memory_space<vmem>>, vector<1x128x256xbf16>
    %259 = vector.shape_cast %258 : vector<1x128x256xbf16> to vector<128x256xbf16>
    %cst_202 = arith.constant dense<0.000000e+00> : vector<16x256xf32>
    %260 = tpu.matmul %257, %259, %cst_202 {dimension_numbers = #tpu.dot_dimension_numbers<[1], [0], [0], [1], [0, 0, 1, 1], [], []>} : vector<16x128xbf16>, vector<128x256xbf16>, vector<16x256xf32> -> vector<16x256xf32>
    %261 = arith.addf %255, %260 : vector<16x256xf32>
    %262 = vector.extract_strided_slice %261 {offsets = [0, 0], sizes = [16, 128], strides = [1, 1]} : vector<16x256xf32> to vector<16x128xf32>
    %263 = math.tanh %262 : vector<16x128xf32>
    %264 = vector.extract_strided_slice %261 {offsets = [0, 128], sizes = [16, 128], strides = [1, 1]} : vector<16x256xf32> to vector<16x128xf32>
    %265 = arith.negf %264 : vector<16x128xf32>
    %266 = math.exp %265 : vector<16x128xf32>
    %cst_203 = arith.constant 1.000000e+00 : f32
    %267 = vector.broadcast %cst_203 : f32 to vector<16x128xf32>
    %268 = arith.addf %267, %266 : vector<16x128xf32>
    %269 = arith.divf %267, %268 : vector<16x128xf32>
    %270 = arith.mulf %263, %269 : vector<16x128xf32>
    %271 = arith.truncf %270 : vector<16x128xf32> to vector<16x128xbf16>
    %c4_204 = arith.constant 4 : index
    %c0_205 = arith.constant 0 : index
    %c0_206 = arith.constant 0 : index
    %272 = vector.load %arg4[%c4_204, %c0_205, %c0_206] : memref<6x128x256xbf16, #tpu.memory_space<vmem>>, vector<1x128x256xbf16>
    %273 = vector.shape_cast %272 : vector<1x128x256xbf16> to vector<128x256xbf16>
    %cst_207 = arith.constant dense<0.000000e+00> : vector<16x256xf32>
    %274 = tpu.matmul %271, %273, %cst_207 {dimension_numbers = #tpu.dot_dimension_numbers<[1], [0], [0], [1], [0, 0, 1, 1], [], []>} : vector<16x128xbf16>, vector<128x256xbf16>, vector<16x256xf32> -> vector<16x256xf32>
    %c16_208 = arith.constant 16 : index
    %c0_209 = arith.constant 0 : index
    %275 = vector.load %arg6[%c16_208, %c0_209] : memref<48x128xf32, #tpu.memory_space<vmem>>, vector<16x128xf32>
    %276 = vector.extract_strided_slice %274 {offsets = [0, 0], sizes = [16, 128], strides = [1, 1]} : vector<16x256xf32> to vector<16x128xf32>
    %277 = arith.addf %276, %275 : vector<16x128xf32>
    %c16_210 = arith.constant 16 : index
    %c0_211 = arith.constant 0 : index
    %278 = vector.load %arg6[%c16_210, %c0_211] : memref<48x128xf32, #tpu.memory_space<vmem>>, vector<16x128xf32>
    tpu.vector_store %arg6[%c16_210, %c0_211], %277 {strides = array<i32>} : memref<48x128xf32, #tpu.memory_space<vmem>>, vector<16x128xf32>,
    %c0_212 = arith.constant 0 : index
    %c0_213 = arith.constant 0 : index
    %c0_214 = arith.constant 0 : index
    %279 = vector.load %arg5[%c0_212, %c0_213, %c0_214] : memref<1x16x128xf32, #tpu.memory_space<vmem>>, vector<1x16x128xf32>
    %280 = vector.shape_cast %279 : vector<1x16x128xf32> to vector<16x128xf32>
    %281 = vector.extract_strided_slice %274 {offsets = [0, 128], sizes = [16, 128], strides = [1, 1]} : vector<16x256xf32> to vector<16x128xf32>
    %282 = arith.addf %280, %281 : vector<16x128xf32>
    %c0_215 = arith.constant 0 : index
    %c0_216 = arith.constant 0 : index
    %c0_217 = arith.constant 0 : index
    %283 = vector.load %arg5[%c0_215, %c0_216, %c0_217] : memref<1x16x128xf32, #tpu.memory_space<vmem>>, vector<1x16x128xf32>
    %284 = vector.shape_cast %283 : vector<1x16x128xf32> to vector<16x128xf32>
    %285 = vector.shape_cast %282 : vector<16x128xf32> to vector<1x16x128xf32>
    tpu.vector_store %arg5[%c0_215, %c0_216, %c0_217], %285 {strides = array<i32>} : memref<1x16x128xf32, #tpu.memory_space<vmem>>, vector<1x16x128xf32>,
    %cst_218 = arith.constant 0.000000e+00 : f32
    %286 = vector.broadcast %cst_218 : f32 to vector<16x256xf32>
    %c6_219 = arith.constant 6 : index
    %c0_220 = arith.constant 0 : index
    %287 = vector.load %arg6[%c6_219, %c0_220] : memref<48x128xf32, #tpu.memory_space<vmem>>, vector<16x128xf32>
    %288 = arith.truncf %287 : vector<16x128xf32> to vector<16x128xbf16>
    %c25 = arith.constant 25 : index
    %c0_221 = arith.constant 0 : index
    %c0_222 = arith.constant 0 : index
    %289 = vector.load %arg3[%c25, %c0_221, %c0_222] : memref<30x128x256xbf16, #tpu.memory_space<vmem>>, vector<1x128x256xbf16>
    %290 = vector.shape_cast %289 : vector<1x128x256xbf16> to vector<128x256xbf16>
    %cst_223 = arith.constant dense<0.000000e+00> : vector<16x256xf32>
    %291 = tpu.matmul %288, %290, %cst_223 {dimension_numbers = #tpu.dot_dimension_numbers<[1], [0], [0], [1], [0, 0, 1, 1], [], []>} : vector<16x128xbf16>, vector<128x256xbf16>, vector<16x256xf32> -> vector<16x256xf32>
    %292 = arith.addf %286, %291 : vector<16x256xf32>
    %c11_224 = arith.constant 11 : index
    %c0_225 = arith.constant 0 : index
    %293 = vector.load %arg6[%c11_224, %c0_225] : memref<48x128xf32, #tpu.memory_space<vmem>>, vector<16x128xf32>
    %294 = arith.truncf %293 : vector<16x128xf32> to vector<16x128xbf16>
    %c26_226 = arith.constant 26 : index
    %c0_227 = arith.constant 0 : index
    %c0_228 = arith.constant 0 : index
    %295 = vector.load %arg3[%c26_226, %c0_227, %c0_228] : memref<30x128x256xbf16, #tpu.memory_space<vmem>>, vector<1x128x256xbf16>
    %296 = vector.shape_cast %295 : vector<1x128x256xbf16> to vector<128x256xbf16>
    %cst_229 = arith.constant dense<0.000000e+00> : vector<16x256xf32>
    %297 = tpu.matmul %294, %296, %cst_229 {dimension_numbers = #tpu.dot_dimension_numbers<[1], [0], [0], [1], [0, 0, 1, 1], [], []>} : vector<16x128xbf16>, vector<128x256xbf16>, vector<16x256xf32> -> vector<16x256xf32>
    %298 = arith.addf %292, %297 : vector<16x256xf32>
    %c16_230 = arith.constant 16 : index
    %c0_231 = arith.constant 0 : index
    %299 = vector.load %arg6[%c16_230, %c0_231] : memref<48x128xf32, #tpu.memory_space<vmem>>, vector<16x128xf32>
    %300 = arith.truncf %299 : vector<16x128xf32> to vector<16x128xbf16>
    %c27 = arith.constant 27 : index
    %c0_232 = arith.constant 0 : index
    %c0_233 = arith.constant 0 : index
    %301 = vector.load %arg3[%c27, %c0_232, %c0_233] : memref<30x128x256xbf16, #tpu.memory_space<vmem>>, vector<1x128x256xbf16>
    %302 = vector.shape_cast %301 : vector<1x128x256xbf16> to vector<128x256xbf16>
    %cst_234 = arith.constant dense<0.000000e+00> : vector<16x256xf32>
    %303 = tpu.matmul %300, %302, %cst_234 {dimension_numbers = #tpu.dot_dimension_numbers<[1], [0], [0], [1], [0, 0, 1, 1], [], []>} : vector<16x128xbf16>, vector<128x256xbf16>, vector<16x256xf32> -> vector<16x256xf32>
    %304 = arith.addf %298, %303 : vector<16x256xf32>
    %c21_235 = arith.constant 21 : index
    %c0_236 = arith.constant 0 : index
    %305 = vector.load %arg6[%c21_235, %c0_236] : memref<48x128xf32, #tpu.memory_space<vmem>>, vector<16x128xf32>
    %306 = arith.truncf %305 : vector<16x128xf32> to vector<16x128xbf16>
    %c28 = arith.constant 28 : index
    %c0_237 = arith.constant 0 : index
    %c0_238 = arith.constant 0 : index
    %307 = vector.load %arg3[%c28, %c0_237, %c0_238] : memref<30x128x256xbf16, #tpu.memory_space<vmem>>, vector<1x128x256xbf16>
    %308 = vector.shape_cast %307 : vector<1x128x256xbf16> to vector<128x256xbf16>
    %cst_239 = arith.constant dense<0.000000e+00> : vector<16x256xf32>
    %309 = tpu.matmul %306, %308, %cst_239 {dimension_numbers = #tpu.dot_dimension_numbers<[1], [0], [0], [1], [0, 0, 1, 1], [], []>} : vector<16x128xbf16>, vector<128x256xbf16>, vector<16x256xf32> -> vector<16x256xf32>
    %310 = arith.addf %304, %309 : vector<16x256xf32>
    %c26_240 = arith.constant 26 : index
    %c0_241 = arith.constant 0 : index
    %311 = vector.load %arg6[%c26_240, %c0_241] : memref<48x128xf32, #tpu.memory_space<vmem>>, vector<16x128xf32>
    %312 = arith.truncf %311 : vector<16x128xf32> to vector<16x128xbf16>
    %c29 = arith.constant 29 : index
    %c0_242 = arith.constant 0 : index
    %c0_243 = arith.constant 0 : index
    %313 = vector.load %arg3[%c29, %c0_242, %c0_243] : memref<30x128x256xbf16, #tpu.memory_space<vmem>>, vector<1x128x256xbf16>
    %314 = vector.shape_cast %313 : vector<1x128x256xbf16> to vector<128x256xbf16>
    %cst_244 = arith.constant dense<0.000000e+00> : vector<16x256xf32>
    %315 = tpu.matmul %312, %314, %cst_244 {dimension_numbers = #tpu.dot_dimension_numbers<[1], [0], [0], [1], [0, 0, 1, 1], [], []>} : vector<16x128xbf16>, vector<128x256xbf16>, vector<16x256xf32> -> vector<16x256xf32>
    %316 = arith.addf %310, %315 : vector<16x256xf32>
    %317 = vector.extract_strided_slice %316 {offsets = [0, 0], sizes = [16, 128], strides = [1, 1]} : vector<16x256xf32> to vector<16x128xf32>
    %318 = math.tanh %317 : vector<16x128xf32>
    %319 = vector.extract_strided_slice %316 {offsets = [0, 128], sizes = [16, 128], strides = [1, 1]} : vector<16x256xf32> to vector<16x128xf32>
    %320 = arith.negf %319 : vector<16x128xf32>
    %321 = math.exp %320 : vector<16x128xf32>
    %cst_245 = arith.constant 1.000000e+00 : f32
    %322 = vector.broadcast %cst_245 : f32 to vector<16x128xf32>
    %323 = arith.addf %322, %321 : vector<16x128xf32>
    %324 = arith.divf %322, %323 : vector<16x128xf32>
    %325 = arith.mulf %318, %324 : vector<16x128xf32>
    %326 = arith.truncf %325 : vector<16x128xf32> to vector<16x128xbf16>
    %c5_246 = arith.constant 5 : index
    %c0_247 = arith.constant 0 : index
    %c0_248 = arith.constant 0 : index
    %327 = vector.load %arg4[%c5_246, %c0_247, %c0_248] : memref<6x128x256xbf16, #tpu.memory_space<vmem>>, vector<1x128x256xbf16>
    %328 = vector.shape_cast %327 : vector<1x128x256xbf16> to vector<128x256xbf16>
    %cst_249 = arith.constant dense<0.000000e+00> : vector<16x256xf32>
    %329 = tpu.matmul %326, %328, %cst_249 {dimension_numbers = #tpu.dot_dimension_numbers<[1], [0], [0], [1], [0, 0, 1, 1], [], []>} : vector<16x128xbf16>, vector<128x256xbf16>, vector<16x256xf32> -> vector<16x256xf32>
    %c16_250 = arith.constant 16 : index
    %c0_251 = arith.constant 0 : index
    %330 = vector.load %arg6[%c16_250, %c0_251] : memref<48x128xf32, #tpu.memory_space<vmem>>, vector<16x128xf32>
    %331 = vector.extract_strided_slice %329 {offsets = [0, 0], sizes = [16, 128], strides = [1, 1]} : vector<16x256xf32> to vector<16x128xf32>
    %332 = arith.addf %331, %330 : vector<16x128xf32>
    %c16_252 = arith.constant 16 : index
    %c0_253 = arith.constant 0 : index
    %333 = vector.load %arg6[%c16_252, %c0_253] : memref<48x128xf32, #tpu.memory_space<vmem>>, vector<16x128xf32>
    tpu.vector_store %arg6[%c16_252, %c0_253], %332 {strides = array<i32>} : memref<48x128xf32, #tpu.memory_space<vmem>>, vector<16x128xf32>,
    %c0_254 = arith.constant 0 : index
    %c0_255 = arith.constant 0 : index
    %c0_256 = arith.constant 0 : index
    %334 = vector.load %arg5[%c0_254, %c0_255, %c0_256] : memref<1x16x128xf32, #tpu.memory_space<vmem>>, vector<1x16x128xf32>
    %335 = vector.shape_cast %334 : vector<1x16x128xf32> to vector<16x128xf32>
    %336 = vector.extract_strided_slice %329 {offsets = [0, 128], sizes = [16, 128], strides = [1, 1]} : vector<16x256xf32> to vector<16x128xf32>
    %337 = arith.addf %335, %336 : vector<16x128xf32>
    %c0_257 = arith.constant 0 : index
    %c0_258 = arith.constant 0 : index
    %c0_259 = arith.constant 0 : index
    %338 = vector.load %arg5[%c0_257, %c0_258, %c0_259] : memref<1x16x128xf32, #tpu.memory_space<vmem>>, vector<1x16x128xf32>
    %339 = vector.shape_cast %338 : vector<1x16x128xf32> to vector<16x128xf32>
    %340 = vector.shape_cast %337 : vector<16x128xf32> to vector<1x16x128xf32>
    tpu.vector_store %arg5[%c0_257, %c0_258, %c0_259], %340 {strides = array<i32>} : memref<1x16x128xf32, #tpu.memory_space<vmem>>, vector<1x16x128xf32>,
    return
  }
  func.func @transform_0(%arg0: i32) -> (i32, i32, i32) {
    %c0_i32 = arith.constant 0 : i32
    %c0_i32_0 = arith.constant 0 : i32
    %c0_i32_1 = arith.constant 0 : i32
    return %arg0, %c0_i32, %c0_i32_0 : i32, i32, i32
  }
  func.func @transform_1(%arg0: i32) -> (i32, i32) {
    %c0_i32 = arith.constant 0 : i32
    %c0_i32_0 = arith.constant 0 : i32
    %c0_i32_1 = arith.constant 0 : i32
    return %c0_i32, %c0_i32_0 : i32, i32
  }
  func.func @transform_2(%arg0: i32) -> (i32, i32, i32) {
    %c0_i32 = arith.constant 0 : i32
    %c0_i32_0 = arith.constant 0 : i32
    %c0_i32_1 = arith.constant 0 : i32
    %c0_i32_2 = arith.constant 0 : i32
    return %c0_i32, %c0_i32_0, %c0_i32_1 : i32, i32, i32
  }
  func.func @transform_3(%arg0: i32) -> (i32, i32, i32) {
    %c0_i32 = arith.constant 0 : i32
    %c0_i32_0 = arith.constant 0 : i32
    %c0_i32_1 = arith.constant 0 : i32
    %c0_i32_2 = arith.constant 0 : i32
    return %c0_i32, %c0_i32_0, %c0_i32_1 : i32, i32, i32
  }
  func.func @transform_4(%arg0: i32) -> (i32, i32, i32) {
    %c0_i32 = arith.constant 0 : i32
    %c0_i32_0 = arith.constant 0 : i32
    %c0_i32_1 = arith.constant 0 : i32
    return %arg0, %c0_i32, %c0_i32_0 : i32, i32, i32
  }
}

</mosaic_0001>

<llo_original>
// kernel: tpu_custom_call.1
$region0: #{tpu_custom_call.1}
  #allocation0 [shape = 'u32[]', space=smem, size = 0x4, offset = 0x4, fixed_abs, tag = 'smem constant byte address 0x4 - core index']
  #allocation1 [shape = 'u32[144,128]{1,0:T(1,128)}', space=vmem, size = 0x12000, scoped, tag = 'internal scratch']
  #allocation2 [shape = 'f32[48,128]{1,0:T(8,128)}', space=vmem, size = 0x6000, scoped, tag = 'scratch operand']
  %s0 = inlined_call_operand.vmem [shape: f32[2,16,4], index: 0, kind: input, shape index: {}]
  %s1 = inlined_call_operand.hbm [shape: f32[4,128], index: 1, kind: input, shape index: {}]
  %s2 = inlined_call_operand.hbm [shape: bf16[30,128,256], index: 2, kind: input, shape index: {}]
  %s3 = inlined_call_operand.hbm [shape: bf16[6,128,256], index: 3, kind: input, shape index: {}]
  %s4 = inlined_call_operand.hbm [shape: f32[2,16,128], index: 4, kind: output, shape index: {}]
  %s5 = sld [smem:[#allocation0]]
  $region61: #{tpu_custom_call.1} parent=0
    _
  %s7 = ssub.s32 1, %s5
  %s8 = scalar_select 0, %s7, %s5
  $region1: #{tpu_custom_call.1} parent=0
    #allocation3 [shape = 'u8[2048]{0}', space=vmem, size = 0x800, scoped, tag = 'input window, operand 1, single buffered']
    #allocation4 [shape = 's32[2]{0}', space=sflag, size = 0x8, scoped, tag = 'scoped memory for tpu_custom_call.1']
    #allocation5 [shape = 's32[2]{0}', space=sflag, size = 0x8, scoped, tag = 'scoped memory for tpu_custom_call.1']
    #allocation6 [shape = 'u8[1966080]{0}', space=vmem, size = 0x1e0000, scoped, tag = 'input window, operand 2, single buffered']
    #allocation7 [shape = 's32[1]{0}', space=sflag, size = 0x4, scoped, tag = 'scoped memory for tpu_custom_call.1']
    #allocation8 [shape = 'u8[393216]{0}', space=vmem, size = 0x60000, scoped, tag = 'input window, operand 3, single buffered']
    #allocation9 [shape = 'u8[16384]{0}', space=vmem, size = 0x4000, scoped, tag = 'output window, operand 0']
    %9 = vsyncpa [#allocation4], 0
    %10 = vsyncpa [#allocation7], 0
    %11 = vsyncpa [#allocation5], 0
    %s12 = scalar_lea.sflag [#allocation5], 1
    %13 = vsyncpa %s12, 0
    loop: start=0, step=1, limit=4
    $region2: #{tpu_custom_call.1} parent=1 // loop_pre_header
      _
    $region3: #{tpu_custom_call.1} parent=1 // loop_header
      %s15 = sphi 0, %s19
      %p16 = scmp.ge.s32.totalorder %s15, 4
      %s25 = sphi 0, %s27
      %s28 = sphi 0, %s25
      %s29 = sphi 0, %s28
      %s45 = sphi 0, %s29
      %s49 = sphi 0, %s49
      %s51 = sphi 0, %s49
      %s52 = sphi 0, %s51
      %s66 = sphi 0, %s52
      %s70 = sphi 0, %s70
      %s72 = sphi 0, %s70
      %s73 = sphi 0, %s72
      %s87 = sphi 0, %s73
      %s91 = sphi 0, %s91
      %s93 = sphi 0, %s91
      %s94 = sphi 0, %s93
      %s108 = sphi 0, %s94
      %s114 = sphi 0, %s116
      %s117 = sphi 0, %s114
      %s118 = sphi 0, %s117
      %s134 = sphi 0, %s118
    $region4: #{tpu_custom_call.1} parent=1 // loop_header_branch
      %18 = sbr.rel (%p16) target = $region8
    $region5: #{tpu_custom_call.1} parent=1 // loop_body
      %s20 = ssub.s32 %s15, 1
      %s21 = ssub.s32 %s15, 2
      %s22 = sadd.s32 %s15, 1
      %s23 = ssub.s32 %s15, %s22
      %p24 = scmp.eq.s32.totalorder %s23, 0
      %s26 = sadd.s32 %s25, 1
      %s27 = scalar_select %p24, %s25, %s26
      %p30 = pneg %p24
      %p31 = scmp.eq.s32.totalorder %s15, 1
      %p32 = por %p30, %p31
      %p33 = scmp.ne.s32.totalorder %s25, %s28
      %p34 = scmp.eq.s32.totalorder %s15, 0
      %p35 = por %p33, %p34
      %p36 = scmp.ne.s32.totalorder %s25, %s28
      %p37 = scmp.eq.s32.totalorder %s20, 1
      %p38 = por %p36, %p37
      %p39 = scmp.ne.s32.totalorder %s28, %s29
      %p40 = scmp.eq.s32.totalorder %s20, 0
      %p41 = por %p39, %p40
      %p42 = scmp.ne.s32.totalorder %s28, %s29
      %p43 = scmp.eq.s32.totalorder %s21, 1
      %p44 = por %p42, %p43
      %p46 = scmp.ne.s32.totalorder %s29, %s45
      %p47 = scmp.eq.s32.totalorder %s21, 0
      %p48 = por %p46, %p47
      %s50 = sadd.s32 %s49, 1
      %p53 = scmp.eq.s32.totalorder %s15, 1
      %p54 = scmp.ne.s32.totalorder %s49, %s51
      %p55 = scmp.eq.s32.totalorder %s15, 0
      %p56 = por %p54, %p55
      %p57 = scmp.ne.s32.totalorder %s49, %s51
      %p58 = scmp.eq.s32.totalorder %s20, 1
      %p59 = por %p57, %p58
      %p60 = scmp.ne.s32.totalorder %s51, %s52
      %p61 = scmp.eq.s32.totalorder %s20, 0
      %p62 = por %p60, %p61
      %p63 = scmp.ne.s32.totalorder %s51, %s52
      %p64 = scmp.eq.s32.totalorder %s21, 1
      %p65 = por %p63, %p64
      %p67 = scmp.ne.s32.totalorder %s52, %s66
      %p68 = scmp.eq.s32.totalorder %s21, 0
      %p69 = por %p67, %p68
      %s71 = sadd.s32 %s70, 1
      %p74 = scmp.eq.s32.totalorder %s15, 1
      %p75 = scmp.ne.s32.totalorder %s70, %s72
      %p76 = scmp.eq.s32.totalorder %s15, 0
      %p77 = por %p75, %p76
      %p78 = scmp.ne.s32.totalorder %s70, %s72
      %p79 = scmp.eq.s32.totalorder %s20, 1
      %p80 = por %p78, %p79
      %p81 = scmp.ne.s32.totalorder %s72, %s73
      %p82 = scmp.eq.s32.totalorder %s20, 0
      %p83 = por %p81, %p82
      %p84 = scmp.ne.s32.totalorder %s72, %s73
      %p85 = scmp.eq.s32.totalorder %s21, 1
      %p86 = por %p84, %p85
      %p88 = scmp.ne.s32.totalorder %s73, %s87
      %p89 = scmp.eq.s32.totalorder %s21, 0
      %p90 = por %p88, %p89
      %s92 = sadd.s32 %s91, 1
      %p95 = scmp.eq.s32.totalorder %s15, 1
      %p96 = scmp.ne.s32.totalorder %s91, %s93
      %p97 = scmp.eq.s32.totalorder %s15, 0
      %p98 = por %p96, %p97
      %p99 = scmp.ne.s32.totalorder %s91, %s93
      %p100 = scmp.eq.s32.totalorder %s20, 1
      %p101 = por %p99, %p100
      %p102 = scmp.ne.s32.totalorder %s93, %s94
      %p103 = scmp.eq.s32.totalorder %s20, 0
      %p104 = por %p102, %p103
      %p105 = scmp.ne.s32.totalorder %s93, %s94
      %p106 = scmp.eq.s32.totalorder %s21, 1
      %p107 = por %p105, %p106
      %p109 = scmp.ne.s32.totalorder %s94, %s108
      %p110 = scmp.eq.s32.totalorder %s21, 0
      %p111 = por %p109, %p110
      %s112 = ssub.s32 %s15, %s22
      %p113 = scmp.eq.s32.totalorder %s112, 0
      %s115 = sadd.s32 %s114, 1
      %s116 = scalar_select %p113, %s114, %s115
      %p119 = pneg %p113
      %p120 = scmp.eq.s32.totalorder %s15, 1
      %p121 = por %p119, %p120
      %p122 = scmp.ne.s32.totalorder %s114, %s117
      %p123 = scmp.eq.s32.totalorder %s15, 0
      %p124 = por %p122, %p123
      %p125 = scmp.ne.s32.totalorder %s114, %s117
      %p126 = scmp.eq.s32.totalorder %s20, 1
      %p127 = por %p125, %p126
      %p128 = scmp.ne.s32.totalorder %s117, %s118
      %p129 = scmp.eq.s32.totalorder %s20, 0
      %p130 = por %p128, %p129
      %p131 = scmp.ne.s32.totalorder %s117, %s118
      %p132 = scmp.eq.s32.totalorder %s21, 1
      %p133 = por %p131, %p132
      %p135 = scmp.ne.s32.totalorder %s118, %s134
      %p136 = scmp.eq.s32.totalorder %s21, 0
      %p137 = por %p135, %p136
      %p138 = scmp.le.s32.totalorder 1, %s15
      %p139 = scmp.lt.s32.totalorder %s15, 3
      %p140 = pnand %p138, %p139
      %p141 = pneg %p140
      // Predicated region
      $region9: #{tpu_custom_call.1} parent=5 // pred_check
        _
      $region10: #{tpu_custom_call.1} parent=5 // pred_check_branch
        %143 = sbr.rel (%p140) target = $region12
      $region11: #{tpu_custom_call.1} parent=5 // pred_region
        %s144 = ssub.s32 %s15, 1
        // Predicated region
        $region13: #{tpu_custom_call.1} parent=11 // pred_check
          %p145 = pneg %p62
        $region14: #{tpu_custom_call.1} parent=11 // pred_check_branch
          %147 = sbr.rel (%p145) target = $region16
        $region15: #{tpu_custom_call.1} parent=11 // pred_region
          %s149 = ssub.s32 64, 64
          %150 = vsyncadd [#allocation4], %s149
          %s152 = sshll.u32 [#allocation3], 4
          %s153 = int_to_ptr.vmem [resolvable:$true] %s152
          %155 = dma.hbm_to_vmem [thread:$0]  %s1, 64, %s153, [#allocation4]
        $region16: #{tpu_custom_call.1} parent=11 // pred_fallthru
          _
        // Predicated region
        $region17: #{tpu_custom_call.1} parent=11 // pred_check
          %p156 = pneg %p83
        $region18: #{tpu_custom_call.1} parent=11 // pred_check_branch
          %158 = sbr.rel (%p156) target = $region20
        $region19: #{tpu_custom_call.1} parent=11 // pred_region
          %s160 = ssub.s32 61440, 61440
          %161 = vsyncadd [#allocation7], %s160
          %s162 = sshll.u32 [#allocation6], 4
          %s163 = int_to_ptr.vmem [resolvable:$true] %s162
          %168 = dma.hbm_to_vmem [thread:$0]  %s2, 61440, %s163, [#allocation7], 128, 128, 8
        $region20: #{tpu_custom_call.1} parent=11 // pred_fallthru
          _
        // Predicated region
        $region21: #{tpu_custom_call.1} parent=11 // pred_check
          %p169 = pneg %p104
        $region22: #{tpu_custom_call.1} parent=11 // pred_check_branch
          %171 = sbr.rel (%p169) target = $region24
        $region23: #{tpu_custom_call.1} parent=11 // pred_region
          %s173 = ssub.s32 12288, 12288
          %174 = vsyncadd [#allocation7], %s173
          %s175 = sshll.u32 [#allocation8], 4
          %s176 = int_to_ptr.vmem [resolvable:$true] %s175
          %181 = dma.hbm_to_vmem [thread:$0]  %s3, 12288, %s176, [#allocation7], 128, 128, 8
        $region24: #{tpu_custom_call.1} parent=11 // pred_fallthru
          _
      $region12: #{tpu_custom_call.1} parent=5 // pred_fallthru
        _
      %p182 = scmp.lt.s32.totalorder %s15, 2
      // Predicated region
      $region25: #{tpu_custom_call.1} parent=5 // pred_check
        %p183 = pneg %p182
      $region26: #{tpu_custom_call.1} parent=5 // pred_check_branch
        %185 = sbr.rel (%p183) target = $region28
      $region27: #{tpu_custom_call.1} parent=5 // pred_region
        // Predicated region
        $region29: #{tpu_custom_call.1} parent=27 // pred_check
          %p186 = pneg %p35
        $region30: #{tpu_custom_call.1} parent=27 // pred_check_branch
          %188 = sbr.rel (%p186) target = $region32
        $region31: #{tpu_custom_call.1} parent=27 // pred_region
          %p189 = scmp.lt.s32.totalorder %s15, 1
          %s190 = scalar_select %p189, %s15, 1
          %s191 = smul.addr %s190, 2
          %s192 = smul.addr %s191, 8
          %s193 = scalar_lea.vmem %s0, %s192
        $region32: #{tpu_custom_call.1} parent=27 // pred_fallthru
          _
      $region28: #{tpu_custom_call.1} parent=5 // pred_fallthru
        _
      %p194 = scmp.le.s32.totalorder 1, %s15
      %p195 = scmp.lt.s32.totalorder %s15, 3
      %p196 = pnand %p194, %p195
      %p197 = pneg %p196
      // Predicated region
      $region33: #{tpu_custom_call.1} parent=5 // pred_check
        _
      $region34: #{tpu_custom_call.1} parent=5 // pred_check_branch
        %199 = sbr.rel (%p196) target = $region36
      $region35: #{tpu_custom_call.1} parent=5 // pred_region
        %s200 = ssub.s32 %s15, 1
        // Predicated region
        $region37: #{tpu_custom_call.1} parent=35 // pred_check
          %p201 = pneg %p62
        $region38: #{tpu_custom_call.1} parent=35 // pred_check_branch
          %203 = sbr.rel (%p201) target = $region40
        $region39: #{tpu_custom_call.1} parent=35 // pred_region
          %204 = dma.done [#allocation4], 64
        $region40: #{tpu_custom_call.1} parent=35 // pred_fallthru
          _
        // Predicated region
        $region41: #{tpu_custom_call.1} parent=35 // pred_check
          %p205 = pneg %p83
        $region42: #{tpu_custom_call.1} parent=35 // pred_check_branch
          %207 = sbr.rel (%p205) target = $region44
        $region43: #{tpu_custom_call.1} parent=35 // pred_region
          %208 = dma.done [#allocation7], 61440
        $region44: #{tpu_custom_call.1} parent=35 // pred_fallthru
          _
        // Predicated region
        $region45: #{tpu_custom_call.1} parent=35 // pred_check
          %p209 = pneg %p104
        $region46: #{tpu_custom_call.1} parent=35 // pred_check_branch
          %211 = sbr.rel (%p209) target = $region48
        $region47: #{tpu_custom_call.1} parent=35 // pred_region
          %212 = dma.done [#allocation7], 12288
        $region48: #{tpu_custom_call.1} parent=35 // pred_fallthru
          _
        %p213 = scmp.lt.s32.totalorder %s20, 1
        %s214 = scalar_select %p213, %s20, 1
        %s215 = smul.addr %s214, 2
        %s216 = smul.addr %s215, 8
        %s217 = scalar_lea.vmem %s0, %s216
        %p218 = pneg %p41
        %p219 = pneg %p38
        %p220 = pneg %p62
        %p221 = pneg %p59
        %p222 = pneg %p83
        %p223 = pneg %p80
        %p224 = pneg %p104
        %p225 = pneg %p101
        %p226 = pneg %p130
        %p227 = pneg %p127
        %s228 = sand.u32 %s117, 1
        %s229 = scalar_lea.sflag [#allocation5], %s228
        %s230 = sand.u32 %s117, 1
        %s231 = smul.addr %s230, 16
        %s232 = scalar_lea.vmem [#allocation9], %s231
        %p233 = scmp.lt.s32.totalorder %s20, 1
        %s234 = scalar_select %p233, %s20, 1
        %s235 = smul.addr %s234, 2
        %s236 = smul.addr %s235, 8
        %s237 = scalar_lea.vmem %s0, %s236
        %239 = vst [vmem:[#allocation2] sm:$0xff] 0.0
        %240 = vst [vmem:[#allocation2 + $0x8] sm:$0xff] 0.0
        %241 = vst [vmem:[#allocation2 + $0x10] sm:$0xff] 0.0
        %242 = vst [vmem:[#allocation2 + $0x18] sm:$0xff] 0.0
        %243 = vst [vmem:[#allocation2 + $0x20] sm:$0xff] 0.0
        %244 = vst [vmem:[#allocation2 + $0x28] sm:$0xff] 0.0
        %v245 = vld [vmem:[%s237] sm:$0xff]
        %v246 = vld [vmem:[%s237 + $0x8] sm:$0xff]
        %v247 = vld [vmem:[#allocation3] sm:$0xf]
        %vm248 = vcmask 31744
        %v250 = vsel %vm248, %v245, 0
        %v253 = vsel %vm248, %v246, 0
        %vm255 = vcmask 1043456
        %v257 = vsel %vm255, %v247, 0
        %259 = vmatprep.subr.mxu0 0.0
        %260 = vmatpush1.msra.mxu0 %v257
        %261 = vmatprep.subr.mxu0 0.0
        %262 = vmatpush1.msra.mxu0 0.0
        %263 = vmatprep.subr.mxu0 0.0
        %264 = vmatpush1.msra.mxu0 0.0
        %265 = vmatprep.subr.mxu0 0.0
        %266 = vmatpush1.msra.mxu0 0.0
        %267 = vmatprep.subr.mxu0 0.0
        %268 = vmatpush1.msra.mxu0 0.0
        %269 = vmatprep.subr.mxu0 0.0
        %270 = vmatpush1.msra.mxu0 0.0
        %271 = vmatprep.subr.mxu0 0.0
        %272 = vmatpush1.msra.mxu0 0.0
        %273 = vmatprep.subr.mxu0 0.0
        %274 = vmatpush1.msra.mxu0 0.0
        %275 = vmatprep.subr.mxu0 0.0
        %276 = vmatpush1.msra.mxu0 0.0
        %277 = vmatprep.subr.mxu0 0.0
        %278 = vmatpush1.msra.mxu0 0.0
        %279 = vmatprep.subr.mxu0 0.0
        %280 = vmatpush1.msra.mxu0 0.0
        %281 = vmatprep.subr.mxu0 0.0
        %282 = vmatpush1.msra.mxu0 0.0
        %283 = vmatprep.subr.mxu0 0.0
        %284 = vmatpush1.msra.mxu0 0.0
        %285 = vmatprep.subr.mxu0 0.0
        %286 = vmatpush1.msra.mxu0 0.0
        %287 = vmatprep.subr.mxu0 0.0
        %288 = vmatpush1.msra.mxu0 0.0
        %289 = vmatprep.subr.mxu0 0.0
        %290 = vmatpush1.msra.mxu0 0.0
        %291 = vmatprep.subr.mxu0 0.0
        %292 = vmatpush1.msra.mxu0 0.0
        %293 = vmatprep.subr.mxu0 0.0
        %294 = vmatpush1.msra.mxu0 0.0
        %295 = vmatprep.subr.mxu0 0.0
        %296 = vmatpush1.msra.mxu0 0.0
        %297 = vmatprep.subr.mxu0 0.0
        %298 = vmatpush1.msra.mxu0 0.0
        %299 = vmatprep.subr.mxu0 0.0
        %300 = vmatpush1.msra.mxu0 0.0
        %301 = vmatprep.subr.mxu0 0.0
        %302 = vmatpush1.msra.mxu0 0.0
        %303 = vmatprep.subr.mxu0 0.0
        %304 = vmatpush1.msra.mxu0 0.0
        %305 = vmatprep.subr.mxu0 0.0
        %306 = vmatpush1.msra.mxu0 0.0
        %307 = vmatprep.subr.mxu0 0.0
        %308 = vmatpush1.msra.mxu0 0.0
        %309 = vmatprep.subr.mxu0 0.0
        %310 = vmatpush1.msra.mxu0 0.0
        %311 = vmatprep.subr.mxu0 0.0
        %312 = vmatpush1.msra.mxu0 0.0
        %313 = vmatprep.subr.mxu0 0.0
        %314 = vmatpush1.msra.mxu0 0.0
        %315 = vmatprep.subr.mxu0 0.0
        %316 = vmatpush1.msra.mxu0 0.0
        %317 = vmatprep.subr.mxu0 0.0
        %318 = vmatpush1.msra.mxu0 0.0
        %319 = vmatprep.subr.mxu0 0.0
        %320 = vmatpush1.msra.mxu0 0.0
        %321 = vmatprep.subr.mxu0 0.0
        %322 = vmatpush1.msra.mxu0 0.0
        %323 = vmatprep.mubr.f32.mxu0 0.0
        %324 = vmatmul.mubr.f32.gmra.mrb[0].mxu0 %v250
        %v325 = vpop.f32.mrb[0].mxu0
        %v326 = vadd.f32 0.0, %v325
        %v327 = vpop.f32.mrb[0].mxu0
        %328 = vmatprep.mubr.f32.mxu0 0.0
        %329 = vmatmul.mubr.f32.gmra.mrb[0].mxu0 %v253
        %v330 = vpop.f32.mrb[0].mxu0
        %v331 = vadd.f32 0.0, %v330
        %v332 = vpop.f32.mrb[0].mxu0
        %333 = vdwg.mxu0
        %334 = vst [vmem:[#allocation2 + $0x10] sm:$0xff] %v326
        %335 = vst [vmem:[#allocation2 + $0x18] sm:$0xff] %v331
        %336 = vst [vmem:[%s232] sm:$0xff] 0.0
        %337 = vst [vmem:[%s232 + $0x8] sm:$0xff] 0.0
        %v338 = vld [vmem:[#allocation2 + $0xe] sm:$0xff]
        %v339 = vld [vmem:[#allocation2 + $0x16] sm:$0xff]
        %v340 = vpack.c.bf16 %v339, %v338
        %v341 = vld [vmem:[#allocation6] sm:$0xff]
        %v342 = vld [vmem:[#allocation6 + $0x8] sm:$0xff]
        %v343 = vld [vmem:[#allocation6 + $0x10] sm:$0xff]
        %v344 = vld [vmem:[#allocation6 + $0x18] sm:$0xff]
        %v345 = vld [vmem:[#allocation6 + $0x20] sm:$0xff]
        %v346 = vld [vmem:[#allocation6 + $0x28] sm:$0xff]
        %v347 = vld [vmem:[#allocation6 + $0x30] sm:$0xff]
        %v348 = vld [vmem:[#allocation6 + $0x38] sm:$0xff]
        %v349 = vld [vmem:[#allocation6 + $0x40] sm:$0xff]
        %v350 = vld [vmem:[#allocation6 + $0x48] sm:$0xff]
        %v351 = vld [vmem:[#allocation6 + $0x50] sm:$0xff]
        %v352 = vld [vmem:[#allocation6 + $0x58] sm:$0xff]
        %v353 = vld [vmem:[#allocation6 + $0x60] sm:$0xff]
        %v354 = vld [vmem:[#allocation6 + $0x68] sm:$0xff]
        %v355 = vld [vmem:[#allocation6 + $0x70] sm:$0xff]
        %v356 = vld [vmem:[#allocation6 + $0x78] sm:$0xff]
        %v357 = vld [vmem:[#allocation2 + $0xf] sm:$0xff]
        %v358 = vld [vmem:[#allocation2 + $0x17] sm:$0xff]
        %v359 = vpack.c.bf16 %v358, %v357
        %s360 = scalar_lea.vmem [#allocation6], 128
        %v361 = vld [vmem:[%s360] sm:$0xff]
        %v362 = vld [vmem:[%s360 + $0x8] sm:$0xff]
        %v363 = vld [vmem:[%s360 + $0x10] sm:$0xff]
        %v364 = vld [vmem:[%s360 + $0x18] sm:$0xff]
        %v365 = vld [vmem:[%s360 + $0x20] sm:$0xff]
        %v366 = vld [vmem:[%s360 + $0x28] sm:$0xff]
        %v367 = vld [vmem:[%s360 + $0x30] sm:$0xff]
        %v368 = vld [vmem:[%s360 + $0x38] sm:$0xff]
        %v369 = vld [vmem:[%s360 + $0x40] sm:$0xff]
        %v370 = vld [vmem:[%s360 + $0x48] sm:$0xff]
        %v371 = vld [vmem:[%s360 + $0x50] sm:$0xff]
        %v372 = vld [vmem:[%s360 + $0x58] sm:$0xff]
        %v373 = vld [vmem:[%s360 + $0x60] sm:$0xff]
        %v374 = vld [vmem:[%s360 + $0x68] sm:$0xff]
        %v375 = vld [vmem:[%s360 + $0x70] sm:$0xff]
        %v376 = vld [vmem:[%s360 + $0x78] sm:$0xff]
        %v393 = vunpack.c.l.b16 %v361
        %v394 = vunpack.c.h.b16 %v361
        %v395 = vunpack.c.l.b16 %v362
        %v396 = vunpack.c.h.b16 %v362
        %v397 = vunpack.c.l.b16 %v363
        %v398 = vunpack.c.h.b16 %v363
        %v399 = vunpack.c.l.b16 %v364
        %v400 = vunpack.c.h.b16 %v364
        %v401 = vunpack.c.l.b16 %v365
        %v402 = vunpack.c.h.b16 %v365
        %v403 = vunpack.c.l.b16 %v366
        %v404 = vunpack.c.h.b16 %v366
        %v405 = vunpack.c.l.b16 %v367
        %v406 = vunpack.c.h.b16 %v367
        %v407 = vunpack.c.l.b16 %v368
        %v408 = vunpack.c.h.b16 %v368
        %v409 = vunpack.c.l.b16 %v369
        %v410 = vunpack.c.h.b16 %v369
        %v411 = vunpack.c.l.b16 %v370
        %v412 = vunpack.c.h.b16 %v370
        %v413 = vunpack.c.l.b16 %v371
        %v414 = vunpack.c.h.b16 %v371
        %v415 = vunpack.c.l.b16 %v372
        %v416 = vunpack.c.h.b16 %v372
        %v417 = vunpack.c.l.b16 %v373
        %v418 = vunpack.c.h.b16 %v373
        %v419 = vunpack.c.l.b16 %v374
        %v420 = vunpack.c.h.b16 %v374
        %v421 = vunpack.c.l.b16 %v375
        %v422 = vunpack.c.h.b16 %v375
        %v423 = vunpack.c.l.b16 %v376
        %v424 = vunpack.c.h.b16 %v376
        %v425 = vpack.c.b16 %v395, %v393
        %v426 = vpack.c.b16 %v396, %v394
        %v427 = vpack.c.b16 %v399, %v397
        %v428 = vpack.c.b16 %v400, %v398
        %v429 = vpack.c.b16 %v403, %v401
        %v430 = vpack.c.b16 %v404, %v402
        %v431 = vpack.c.b16 %v407, %v405
        %v432 = vpack.c.b16 %v408, %v406
        %v433 = vpack.c.b16 %v411, %v409
        %v434 = vpack.c.b16 %v412, %v410
        %v435 = vpack.c.b16 %v415, %v413
        %v436 = vpack.c.b16 %v416, %v414
        %v437 = vpack.c.b16 %v419, %v417
        %v438 = vpack.c.b16 %v420, %v418
        %v439 = vpack.c.b16 %v423, %v421
        %v440 = vpack.c.b16 %v424, %v422
        %457 = vmatprep.subr.bf16.mxu0 %v426
        %458 = vmatpush1.bf16.msra.mxu0 %v425
        %459 = vmatprep.subr.bf16.mxu0 %v428
        %460 = vmatpush1.bf16.msra.mxu0 %v427
        %461 = vmatprep.subr.bf16.mxu0 %v430
        %462 = vmatpush1.bf16.msra.mxu0 %v429
        %463 = vmatprep.subr.bf16.mxu0 %v432
        %464 = vmatpush1.bf16.msra.mxu0 %v431
        %465 = vmatprep.subr.bf16.mxu0 %v434
        %466 = vmatpush1.bf16.msra.mxu0 %v433
        %467 = vmatprep.subr.bf16.mxu0 %v436
        %468 = vmatpush1.bf16.msra.mxu0 %v435
        %469 = vmatprep.subr.bf16.mxu0 %v438
        %470 = vmatpush1.bf16.msra.mxu0 %v437
        %471 = vmatprep.subr.bf16.mxu0 %v440
        %472 = vmatpush1.bf16.msra.mxu0 %v439
        %473 = vmatprep.subr.bf16.mxu0 0
        %474 = vmatpush1.bf16.msra.mxu0 0
        %475 = vmatprep.subr.bf16.mxu0 0
        %476 = vmatpush1.bf16.msra.mxu0 0
        %477 = vmatprep.subr.bf16.mxu0 0
        %478 = vmatpush1.bf16.msra.mxu0 0
        %479 = vmatprep.subr.bf16.mxu0 0
        %480 = vmatpush1.bf16.msra.mxu0 0
        %481 = vmatprep.subr.bf16.mxu0 0
        %482 = vmatpush1.bf16.msra.mxu0 0
        %483 = vmatprep.subr.bf16.mxu0 0
        %484 = vmatpush1.bf16.msra.mxu0 0
        %485 = vmatprep.subr.bf16.mxu0 0
        %486 = vmatpush1.bf16.msra.mxu0 0
        %487 = vmatprep.subr.bf16.mxu0 0
        %488 = vmatpush1.bf16.msra.mxu0 0
        %489 = vmatprep.mubr.bf16.mxu0 0
        %490 = vmatmul.mubr.bf16.gmra.mrb[0].mxu0 %v359
        %v491 = vpop.f32.mrb[0].mxu0
        %v492 = vadd.f32 0.0, %v491
        %v493 = vpop.f32.mrb[0].mxu0
        %v494 = vadd.f32 0.0, %v493
        %v495 = vpop.f32.mrb[0].mxu0
        %v496 = vadd.f32 0.0, %v495
        %v497 = vpop.f32.mrb[0].mxu0
        %v498 = vadd.f32 0.0, %v497
        %499 = vdwg.mxu0
        %v516 = vunpack.c.l.b16 %v341
        %v517 = vunpack.c.h.b16 %v341
        %v518 = vunpack.c.l.b16 %v342
        %v519 = vunpack.c.h.b16 %v342
        %v520 = vunpack.c.l.b16 %v343
        %v521 = vunpack.c.h.b16 %v343
        %v522 = vunpack.c.l.b16 %v344
        %v523 = vunpack.c.h.b16 %v344
        %v524 = vunpack.c.l.b16 %v345
        %v525 = vunpack.c.h.b16 %v345
        %v526 = vunpack.c.l.b16 %v346
        %v527 = vunpack.c.h.b16 %v346
        %v528 = vunpack.c.l.b16 %v347
        %v529 = vunpack.c.h.b16 %v347
        %v530 = vunpack.c.l.b16 %v348
        %v531 = vunpack.c.h.b16 %v348
        %v532 = vunpack.c.l.b16 %v349
        %v533 = vunpack.c.h.b16 %v349
        %v534 = vunpack.c.l.b16 %v350
        %v535 = vunpack.c.h.b16 %v350
        %v536 = vunpack.c.l.b16 %v351
        %v537 = vunpack.c.h.b16 %v351
        %v538 = vunpack.c.l.b16 %v352
        %v539 = vunpack.c.h.b16 %v352
        %v540 = vunpack.c.l.b16 %v353
        %v541 = vunpack.c.h.b16 %v353
        %v542 = vunpack.c.l.b16 %v354
        %v543 = vunpack.c.h.b16 %v354
        %v544 = vunpack.c.l.b16 %v355
        %v545 = vunpack.c.h.b16 %v355
        %v546 = vunpack.c.l.b16 %v356
        %v547 = vunpack.c.h.b16 %v356
        %v548 = vpack.c.b16 %v518, %v516
        %v549 = vpack.c.b16 %v519, %v517
        %v550 = vpack.c.b16 %v522, %v520
        %v551 = vpack.c.b16 %v523, %v521
        %v552 = vpack.c.b16 %v526, %v524
        %v553 = vpack.c.b16 %v527, %v525
        %v554 = vpack.c.b16 %v530, %v528
        %v555 = vpack.c.b16 %v531, %v529
        %v556 = vpack.c.b16 %v534, %v532
        %v557 = vpack.c.b16 %v535, %v533
        %v558 = vpack.c.b16 %v538, %v536
        %v559 = vpack.c.b16 %v539, %v537
        %v560 = vpack.c.b16 %v542, %v540
        %v561 = vpack.c.b16 %v543, %v541
        %v562 = vpack.c.b16 %v546, %v544
        %v563 = vpack.c.b16 %v547, %v545
        %580 = vmatprep.subr.bf16.mxu0 %v549
        %581 = vmatpush1.bf16.msra.mxu0 %v548
        %582 = vmatprep.subr.bf16.mxu0 %v551
        %583 = vmatpush1.bf16.msra.mxu0 %v550
        %584 = vmatprep.subr.bf16.mxu0 %v553
        %585 = vmatpush1.bf16.msra.mxu0 %v552
        %586 = vmatprep.subr.bf16.mxu0 %v555
        %587 = vmatpush1.bf16.msra.mxu0 %v554
        %588 = vmatprep.subr.bf16.mxu0 %v557
        %589 = vmatpush1.bf16.msra.mxu0 %v556
        %590 = vmatprep.subr.bf16.mxu0 %v559
        %591 = vmatpush1.bf16.msra.mxu0 %v558
        %592 = vmatprep.subr.bf16.mxu0 %v561
        %593 = vmatpush1.bf16.msra.mxu0 %v560
        %594 = vmatprep.subr.bf16.mxu0 %v563
        %595 = vmatpush1.bf16.msra.mxu0 %v562
        %596 = vmatprep.subr.bf16.mxu0 0
        %597 = vmatpush1.bf16.msra.mxu0 0
        %598 = vmatprep.subr.bf16.mxu0 0
        %599 = vmatpush1.bf16.msra.mxu0 0
        %600 = vmatprep.subr.bf16.mxu0 0
        %601 = vmatpush1.bf16.msra.mxu0 0
        %602 = vmatprep.subr.bf16.mxu0 0
        %603 = vmatpush1.bf16.msra.mxu0 0
        %604 = vmatprep.subr.bf16.mxu0 0
        %605 = vmatpush1.bf16.msra.mxu0 0
        %606 = vmatprep.subr.bf16.mxu0 0
        %607 = vmatpush1.bf16.msra.mxu0 0
        %608 = vmatprep.subr.bf16.mxu0 0
        %609 = vmatpush1.bf16.msra.mxu0 0
        %610 = vmatprep.subr.bf16.mxu0 0
        %611 = vmatpush1.bf16.msra.mxu0 0
        %612 = vmatprep.mubr.bf16.mxu0 0
        %613 = vmatmul.mubr.bf16.gmra.mrb[0].mxu0 %v340
        %v614 = vpop.f32.mrb[0].mxu0
        %v615 = vadd.f32 %v492, %v614
        %v616 = vpop.f32.mrb[0].mxu0
        %v617 = vadd.f32 %v494, %v616
        %v618 = vpop.f32.mrb[0].mxu0
        %v619 = vadd.f32 %v496, %v618
        %v620 = vpop.f32.mrb[0].mxu0
        %v621 = vadd.f32 %v498, %v620
        %622 = vdwg.mxu0
        %v623 = vld [vmem:[#allocation2 + $0x10] sm:$0xff]
        %v624 = vld [vmem:[#allocation2 + $0x18] sm:$0xff]
        %v625 = vpack.c.bf16 %v624, %v623
        %s626 = scalar_lea.vmem [#allocation6], 256
        %v627 = vld [vmem:[%s626] sm:$0xff]
        %v628 = vld [vmem:[%s626 + $0x8] sm:$0xff]
        %v629 = vld [vmem:[%s626 + $0x10] sm:$0xff]
        %v630 = vld [vmem:[%s626 + $0x18] sm:$0xff]
        %v631 = vld [vmem:[%s626 + $0x20] sm:$0xff]
        %v632 = vld [vmem:[%s626 + $0x28] sm:$0xff]
        %v633 = vld [vmem:[%s626 + $0x30] sm:$0xff]
        %v634 = vld [vmem:[%s626 + $0x38] sm:$0xff]
        %v635 = vld [vmem:[%s626 + $0x40] sm:$0xff]
        %v636 = vld [vmem:[%s626 + $0x48] sm:$0xff]
        %v637 = vld [vmem:[%s626 + $0x50] sm:$0xff]
        %v638 = vld [vmem:[%s626 + $0x58] sm:$0xff]
        %v639 = vld [vmem:[%s626 + $0x60] sm:$0xff]
        %v640 = vld [vmem:[%s626 + $0x68] sm:$0xff]
        %v641 = vld [vmem:[%s626 + $0x70] sm:$0xff]
        %v642 = vld [vmem:[%s626 + $0x78] sm:$0xff]
        %v659 = vunpack.c.l.b16 %v627
        %v660 = vunpack.c.h.b16 %v627
        %v661 = vunpack.c.l.b16 %v628
        %v662 = vunpack.c.h.b16 %v628
        %v663 = vunpack.c.l.b16 %v629
        %v664 = vunpack.c.h.b16 %v629
        %v665 = vunpack.c.l.b16 %v630
        %v666 = vunpack.c.h.b16 %v630
        %v667 = vunpack.c.l.b16 %v631
        %v668 = vunpack.c.h.b16 %v631
        %v669 = vunpack.c.l.b16 %v632
        %v670 = vunpack.c.h.b16 %v632
        %v671 = vunpack.c.l.b16 %v633
        %v672 = vunpack.c.h.b16 %v633
        %v673 = vunpack.c.l.b16 %v634
        %v674 = vunpack.c.h.b16 %v634
        %v675 = vunpack.c.l.b16 %v635
        %v676 = vunpack.c.h.b16 %v635
        %v677 = vunpack.c.l.b16 %v636
        %v678 = vunpack.c.h.b16 %v636
        %v679 = vunpack.c.l.b16 %v637
        %v680 = vunpack.c.h.b16 %v637
        %v681 = vunpack.c.l.b16 %v638
        %v682 = vunpack.c.h.b16 %v638
        %v683 = vunpack.c.l.b16 %v639
        %v684 = vunpack.c.h.b16 %v639
        %v685 = vunpack.c.l.b16 %v640
        %v686 = vunpack.c.h.b16 %v640
        %v687 = vunpack.c.l.b16 %v641
        %v688 = vunpack.c.h.b16 %v641
        %v689 = vunpack.c.l.b16 %v642
        %v690 = vunpack.c.h.b16 %v642
        %v691 = vpack.c.b16 %v661, %v659
        %v692 = vpack.c.b16 %v662, %v660
        %v693 = vpack.c.b16 %v665, %v663
        %v694 = vpack.c.b16 %v666, %v664
        %v695 = vpack.c.b16 %v669, %v667
        %v696 = vpack.c.b16 %v670, %v668
        %v697 = vpack.c.b16 %v673, %v671
        %v698 = vpack.c.b16 %v674, %v672
        %v699 = vpack.c.b16 %v677, %v675
        %v700 = vpack.c.b16 %v678, %v676
        %v701 = vpack.c.b16 %v681, %v679
        %v702 = vpack.c.b16 %v682, %v680
        %v703 = vpack.c.b16 %v685, %v683
        %v704 = vpack.c.b16 %v686, %v684
        %v705 = vpack.c.b16 %v689, %v687
        %v706 = vpack.c.b16 %v690, %v688
        %723 = vmatprep.subr.bf16.mxu0 %v692
        %724 = vmatpush1.bf16.msra.mxu0 %v691
        %725 = vmatprep.subr.bf16.mxu0 %v694
        %726 = vmatpush1.bf16.msra.mxu0 %v693
        %727 = vmatprep.subr.bf16.mxu0 %v696
        %728 = vmatpush1.bf16.msra.mxu0 %v695
        %729 = vmatprep.subr.bf16.mxu0 %v698
        %730 = vmatpush1.bf16.msra.mxu0 %v697
        %731 = vmatprep.subr.bf16.mxu0 %v700
        %732 = vmatpush1.bf16.msra.mxu0 %v699
        %733 = vmatprep.subr.bf16.mxu0 %v702
        %734 = vmatpush1.bf16.msra.mxu0 %v701
        %735 = vmatprep.subr.bf16.mxu0 %v704
        %736 = vmatpush1.bf16.msra.mxu0 %v703
        %737 = vmatprep.subr.bf16.mxu0 %v706
        %738 = vmatpush1.bf16.msra.mxu0 %v705
        %739 = vmatprep.subr.bf16.mxu0 0
        %740 = vmatpush1.bf16.msra.mxu0 0
        %741 = vmatprep.subr.bf16.mxu0 0
        %742 = vmatpush1.bf16.msra.mxu0 0
        %743 = vmatprep.subr.bf16.mxu0 0
        %744 = vmatpush1.bf16.msra.mxu0 0
        %745 = vmatprep.subr.bf16.mxu0 0
        %746 = vmatpush1.bf16.msra.mxu0 0
        %747 = vmatprep.subr.bf16.mxu0 0
        %748 = vmatpush1.bf16.msra.mxu0 0
        %749 = vmatprep.subr.bf16.mxu0 0
        %750 = vmatpush1.bf16.msra.mxu0 0
        %751 = vmatprep.subr.bf16.mxu0 0
        %752 = vmatpush1.bf16.msra.mxu0 0
        %753 = vmatprep.subr.bf16.mxu0 0
        %754 = vmatpush1.bf16.msra.mxu0 0
        %755 = vmatprep.mubr.bf16.mxu0 0
        %756 = vmatmul.mubr.bf16.gmra.mrb[0].mxu0 %v625
        %v757 = vpop.f32.mrb[0].mxu0
        %v758 = vadd.f32 0.0, %v757
        %v759 = vpop.f32.mrb[0].mxu0
        %v760 = vadd.f32 0.0, %v759
        %v761 = vpop.f32.mrb[0].mxu0
        %v762 = vadd.f32 0.0, %v761
        %v763 = vpop.f32.mrb[0].mxu0
        %v764 = vadd.f32 0.0, %v763
        %765 = vdwg.mxu0
        %v766 = vadd.f32 %v615, %v758
        %v767 = vadd.f32 %v617, %v760
        %v768 = vadd.f32 %v619, %v762
        %v769 = vadd.f32 %v621, %v764
        %v770 = vld [vmem:[#allocation2 + $0x11] sm:$0xff]
        %v771 = vld [vmem:[#allocation2 + $0x19] sm:$0xff]
        %v772 = vpack.c.bf16 %v771, %v770
        %s773 = scalar_lea.vmem [#allocation6], 384
        %v774 = vld [vmem:[%s773] sm:$0xff]
        %v775 = vld [vmem:[%s773 + $0x8] sm:$0xff]
        %v776 = vld [vmem:[%s773 + $0x10] sm:$0xff]
        %v777 = vld [vmem:[%s773 + $0x18] sm:$0xff]
        %v778 = vld [vmem:[%s773 + $0x20] sm:$0xff]
        %v779 = vld [vmem:[%s773 + $0x28] sm:$0xff]
        %v780 = vld [vmem:[%s773 + $0x30] sm:$0xff]
        %v781 = vld [vmem:[%s773 + $0x38] sm:$0xff]
        %v782 = vld [vmem:[%s773 + $0x40] sm:$0xff]
        %v783 = vld [vmem:[%s773 + $0x48] sm:$0xff]
        %v784 = vld [vmem:[%s773 + $0x50] sm:$0xff]
        %v785 = vld [vmem:[%s773 + $0x58] sm:$0xff]
        %v786 = vld [vmem:[%s773 + $0x60] sm:$0xff]
        %v787 = vld [vmem:[%s773 + $0x68] sm:$0xff]
        %v788 = vld [vmem:[%s773 + $0x70] sm:$0xff]
        %v789 = vld [vmem:[%s773 + $0x78] sm:$0xff]
        %v806 = vunpack.c.l.b16 %v774
        %v807 = vunpack.c.h.b16 %v774
        %v808 = vunpack.c.l.b16 %v775
        %v809 = vunpack.c.h.b16 %v775
        %v810 = vunpack.c.l.b16 %v776
        %v811 = vunpack.c.h.b16 %v776
        %v812 = vunpack.c.l.b16 %v777
        %v813 = vunpack.c.h.b16 %v777
        %v814 = vunpack.c.l.b16 %v778
        %v815 = vunpack.c.h.b16 %v778
        %v816 = vunpack.c.l.b16 %v779
        %v817 = vunpack.c.h.b16 %v779
        %v818 = vunpack.c.l.b16 %v780
        %v819 = vunpack.c.h.b16 %v780
        %v820 = vunpack.c.l.b16 %v781
        %v821 = vunpack.c.h.b16 %v781
        %v822 = vunpack.c.l.b16 %v782
        %v823 = vunpack.c.h.b16 %v782
        %v824 = vunpack.c.l.b16 %v783
        %v825 = vunpack.c.h.b16 %v783
        %v826 = vunpack.c.l.b16 %v784
        %v827 = vunpack.c.h.b16 %v784
        %v828 = vunpack.c.l.b16 %v785
        %v829 = vunpack.c.h.b16 %v785
        %v830 = vunpack.c.l.b16 %v786
        %v831 = vunpack.c.h.b16 %v786
        %v832 = vunpack.c.l.b16 %v787
        %v833 = vunpack.c.h.b16 %v787
        %v834 = vunpack.c.l.b16 %v788
        %v835 = vunpack.c.h.b16 %v788
        %v836 = vunpack.c.l.b16 %v789
        %v837 = vunpack.c.h.b16 %v789
        %v838 = vpack.c.b16 %v808, %v806
        %v839 = vpack.c.b16 %v809, %v807
        %v840 = vpack.c.b16 %v812, %v810
        %v841 = vpack.c.b16 %v813, %v811
        %v842 = vpack.c.b16 %v816, %v814
        %v843 = vpack.c.b16 %v817, %v815
        %v844 = vpack.c.b16 %v820, %v818
        %v845 = vpack.c.b16 %v821, %v819
        %v846 = vpack.c.b16 %v824, %v822
        %v847 = vpack.c.b16 %v825, %v823
        %v848 = vpack.c.b16 %v828, %v826
        %v849 = vpack.c.b16 %v829, %v827
        %v850 = vpack.c.b16 %v832, %v830
        %v851 = vpack.c.b16 %v833, %v831
        %v852 = vpack.c.b16 %v836, %v834
        %v853 = vpack.c.b16 %v837, %v835
        %870 = vmatprep.subr.bf16.mxu0 %v839
        %871 = vmatpush1.bf16.msra.mxu0 %v838
        %872 = vmatprep.subr.bf16.mxu0 %v841
        %873 = vmatpush1.bf16.msra.mxu0 %v840
        %874 = vmatprep.subr.bf16.mxu0 %v843
        %875 = vmatpush1.bf16.msra.mxu0 %v842
        %876 = vmatprep.subr.bf16.mxu0 %v845
        %877 = vmatpush1.bf16.msra.mxu0 %v844
        %878 = vmatprep.subr.bf16.mxu0 %v847
        %879 = vmatpush1.bf16.msra.mxu0 %v846
        %880 = vmatprep.subr.bf16.mxu0 %v849
        %881 = vmatpush1.bf16.msra.mxu0 %v848
        %882 = vmatprep.subr.bf16.mxu0 %v851
        %883 = vmatpush1.bf16.msra.mxu0 %v850
        %884 = vmatprep.subr.bf16.mxu0 %v853
        %885 = vmatpush1.bf16.msra.mxu0 %v852
        %886 = vmatprep.subr.bf16.mxu0 0
        %887 = vmatpush1.bf16.msra.mxu0 0
        %888 = vmatprep.subr.bf16.mxu0 0
        %889 = vmatpush1.bf16.msra.mxu0 0
        %890 = vmatprep.subr.bf16.mxu0 0
        %891 = vmatpush1.bf16.msra.mxu0 0
        %892 = vmatprep.subr.bf16.mxu0 0
        %893 = vmatpush1.bf16.msra.mxu0 0
        %894 = vmatprep.subr.bf16.mxu0 0
        %895 = vmatpush1.bf16.msra.mxu0 0
        %896 = vmatprep.subr.bf16.mxu0 0
        %897 = vmatpush1.bf16.msra.mxu0 0
        %898 = vmatprep.subr.bf16.mxu0 0
        %899 = vmatpush1.bf16.msra.mxu0 0
        %900 = vmatprep.subr.bf16.mxu0 0
        %901 = vmatpush1.bf16.msra.mxu0 0
        %902 = vmatprep.mubr.bf16.mxu0 0
        %903 = vmatmul.mubr.bf16.gmra.mrb[0].mxu0 %v772
        %v904 = vpop.f32.mrb[0].mxu0
        %v905 = vadd.f32 0.0, %v904
        %v906 = vpop.f32.mrb[0].mxu0
        %v907 = vadd.f32 0.0, %v906
        %v908 = vpop.f32.mrb[0].mxu0
        %v909 = vadd.f32 0.0, %v908
        %v910 = vpop.f32.mrb[0].mxu0
        %v911 = vadd.f32 0.0, %v910
        %912 = vdwg.mxu0
        %v913 = vadd.f32 %v766, %v905
        %v914 = vadd.f32 %v767, %v907
        %v915 = vadd.f32 %v768, %v909
        %v916 = vadd.f32 %v769, %v911
        %v917 = vld [vmem:[#allocation2 + $0x12] sm:$0xff]
        %v918 = vld [vmem:[#allocation2 + $0x1a] sm:$0xff]
        %v919 = vpack.c.bf16 %v918, %v917
        %s920 = scalar_lea.vmem [#allocation6], 512
        %v921 = vld [vmem:[%s920] sm:$0xff]
        %v922 = vld [vmem:[%s920 + $0x8] sm:$0xff]
        %v923 = vld [vmem:[%s920 + $0x10] sm:$0xff]
        %v924 = vld [vmem:[%s920 + $0x18] sm:$0xff]
        %v925 = vld [vmem:[%s920 + $0x20] sm:$0xff]
        %v926 = vld [vmem:[%s920 + $0x28] sm:$0xff]
        %v927 = vld [vmem:[%s920 + $0x30] sm:$0xff]
        %v928 = vld [vmem:[%s920 + $0x38] sm:$0xff]
        %v929 = vld [vmem:[%s920 + $0x40] sm:$0xff]
        %v930 = vld [vmem:[%s920 + $0x48] sm:$0xff]
        %v931 = vld [vmem:[%s920 + $0x50] sm:$0xff]
        %v932 = vld [vmem:[%s920 + $0x58] sm:$0xff]
        %v933 = vld [vmem:[%s920 + $0x60] sm:$0xff]
        %v934 = vld [vmem:[%s920 + $0x68] sm:$0xff]
        %v935 = vld [vmem:[%s920 + $0x70] sm:$0xff]
        %v936 = vld [vmem:[%s920 + $0x78] sm:$0xff]
        %v953 = vunpack.c.l.b16 %v921
        %v954 = vunpack.c.h.b16 %v921
        %v955 = vunpack.c.l.b16 %v922
        %v956 = vunpack.c.h.b16 %v922
        %v957 = vunpack.c.l.b16 %v923
        %v958 = vunpack.c.h.b16 %v923
        %v959 = vunpack.c.l.b16 %v924
        %v960 = vunpack.c.h.b16 %v924
        %v961 = vunpack.c.l.b16 %v925
        %v962 = vunpack.c.h.b16 %v925
        %v963 = vunpack.c.l.b16 %v926
        %v964 = vunpack.c.h.b16 %v926
        %v965 = vunpack.c.l.b16 %v927
        %v966 = vunpack.c.h.b16 %v927
        %v967 = vunpack.c.l.b16 %v928
        %v968 = vunpack.c.h.b16 %v928
        %v969 = vunpack.c.l.b16 %v929
        %v970 = vunpack.c.h.b16 %v929
        %v971 = vunpack.c.l.b16 %v930
        %v972 = vunpack.c.h.b16 %v930
        %v973 = vunpack.c.l.b16 %v931
        %v974 = vunpack.c.h.b16 %v931
        %v975 = vunpack.c.l.b16 %v932
        %v976 = vunpack.c.h.b16 %v932
        %v977 = vunpack.c.l.b16 %v933
        %v978 = vunpack.c.h.b16 %v933
        %v979 = vunpack.c.l.b16 %v934
        %v980 = vunpack.c.h.b16 %v934
        %v981 = vunpack.c.l.b16 %v935
        %v982 = vunpack.c.h.b16 %v935
        %v983 = vunpack.c.l.b16 %v936
        %v984 = vunpack.c.h.b16 %v936
        %v985 = vpack.c.b16 %v955, %v953
        %v986 = vpack.c.b16 %v956, %v954
        %v987 = vpack.c.b16 %v959, %v957
        %v988 = vpack.c.b16 %v960, %v958
        %v989 = vpack.c.b16 %v963, %v961
        %v990 = vpack.c.b16 %v964, %v962
        %v991 = vpack.c.b16 %v967, %v965
        %v992 = vpack.c.b16 %v968, %v966
        %v993 = vpack.c.b16 %v971, %v969
        %v994 = vpack.c.b16 %v972, %v970
        %v995 = vpack.c.b16 %v975, %v973
        %v996 = vpack.c.b16 %v976, %v974
        %v997 = vpack.c.b16 %v979, %v977
        %v998 = vpack.c.b16 %v980, %v978
        %v999 = vpack.c.b16 %v983, %v981
        %v1000 = vpack.c.b16 %v984, %v982
        %1017 = vmatprep.subr.bf16.mxu0 %v986
        %1018 = vmatpush1.bf16.msra.mxu0 %v985
        %1019 = vmatprep.subr.bf16.mxu0 %v988
        %1020 = vmatpush1.bf16.msra.mxu0 %v987
        %1021 = vmatprep.subr.bf16.mxu0 %v990
        %1022 = vmatpush1.bf16.msra.mxu0 %v989
        %1023 = vmatprep.subr.bf16.mxu0 %v992
        %1024 = vmatpush1.bf16.msra.mxu0 %v991
        %1025 = vmatprep.subr.bf16.mxu0 %v994
        %1026 = vmatpush1.bf16.msra.mxu0 %v993
        %1027 = vmatprep.subr.bf16.mxu0 %v996
        %1028 = vmatpush1.bf16.msra.mxu0 %v995
        %1029 = vmatprep.subr.bf16.mxu0 %v998
        %1030 = vmatpush1.bf16.msra.mxu0 %v997
        %1031 = vmatprep.subr.bf16.mxu0 %v1000
        %1032 = vmatpush1.bf16.msra.mxu0 %v999
        %1033 = vmatprep.subr.bf16.mxu0 0
        %1034 = vmatpush1.bf16.msra.mxu0 0
        %1035 = vmatprep.subr.bf16.mxu0 0
        %1036 = vmatpush1.bf16.msra.mxu0 0
        %1037 = vmatprep.subr.bf16.mxu0 0
        %1038 = vmatpush1.bf16.msra.mxu0 0
        %1039 = vmatprep.subr.bf16.mxu0 0
        %1040 = vmatpush1.bf16.msra.mxu0 0
        %1041 = vmatprep.subr.bf16.mxu0 0
        %1042 = vmatpush1.bf16.msra.mxu0 0
        %1043 = vmatprep.subr.bf16.mxu0 0
        %1044 = vmatpush1.bf16.msra.mxu0 0
        %1045 = vmatprep.subr.bf16.mxu0 0
        %1046 = vmatpush1.bf16.msra.mxu0 0
        %1047 = vmatprep.subr.bf16.mxu0 0
        %1048 = vmatpush1.bf16.msra.mxu0 0
        %1049 = vmatprep.mubr.bf16.mxu0 0
        %1050 = vmatmul.mubr.bf16.gmra.mrb[0].mxu0 %v919
        %v1051 = vpop.f32.mrb[0].mxu0
        %v1052 = vadd.f32 0.0, %v1051
        %v1053 = vpop.f32.mrb[0].mxu0
        %v1054 = vadd.f32 0.0, %v1053
        %v1055 = vpop.f32.mrb[0].mxu0
        %v1056 = vadd.f32 0.0, %v1055
        %v1057 = vpop.f32.mrb[0].mxu0
        %v1058 = vadd.f32 0.0, %v1057
        %1059 = vdwg.mxu0
        %v1060 = vadd.f32 %v913, %v1052
        %v1061 = vadd.f32 %v914, %v1054
        %v1062 = vadd.f32 %v915, %v1056
        %v1063 = vadd.f32 %v916, %v1058
        %v1064 = vtanh.pop %v1060
        %v1065 = vtanh.pop %v1062
        %v1066 = vxor.u32 %v1061, 2147483648
        %v1067 = vxor.u32 %v1063, 2147483648
        %v1068 = vmul.f32 %v1066, 1.442695
        %v1069 = vpow.pop %v1068
        %v1070 = vmul.f32 %v1067, 1.442695
        %v1071 = vpow.pop %v1070
        %v1072 = vadd.f32 %v1069, 1.0
        %v1073 = vadd.f32 %v1071, 1.0
        %v1074 = vrcp.pop %v1072
        %v1075 = vmul.f32 1.0, %v1074
        %v1076 = vrcp.pop %v1073
        %v1077 = vmul.f32 1.0, %v1076
        %v1078 = vmul.f32 %v1064, %v1075
        %v1079 = vmul.f32 %v1065, %v1077
        %v1080 = vpack.c.bf16 %v1079, %v1078
        %v1081 = vld [vmem:[#allocation8] sm:$0xff]
        %v1082 = vld [vmem:[#allocation8 + $0x8] sm:$0xff]
        %v1083 = vld [vmem:[#allocation8 + $0x10] sm:$0xff]
        %v1084 = vld [vmem:[#allocation8 + $0x18] sm:$0xff]
        %v1085 = vld [vmem:[#allocation8 + $0x20] sm:$0xff]
        %v1086 = vld [vmem:[#allocation8 + $0x28] sm:$0xff]
        %v1087 = vld [vmem:[#allocation8 + $0x30] sm:$0xff]
        %v1088 = vld [vmem:[#allocation8 + $0x38] sm:$0xff]
        %v1089 = vld [vmem:[#allocation8 + $0x40] sm:$0xff]
        %v1090 = vld [vmem:[#allocation8 + $0x48] sm:$0xff]
        %v1091 = vld [vmem:[#allocation8 + $0x50] sm:$0xff]
        %v1092 = vld [vmem:[#allocation8 + $0x58] sm:$0xff]
        %v1093 = vld [vmem:[#allocation8 + $0x60] sm:$0xff]
        %v1094 = vld [vmem:[#allocation8 + $0x68] sm:$0xff]
        %v1095 = vld [vmem:[#allocation8 + $0x70] sm:$0xff]
        %v1096 = vld [vmem:[#allocation8 + $0x78] sm:$0xff]
        %v1113 = vunpack.c.l.b16 %v1081
        %v1114 = vunpack.c.h.b16 %v1081
        %v1115 = vunpack.c.l.b16 %v1082
        %v1116 = vunpack.c.h.b16 %v1082
        %v1117 = vunpack.c.l.b16 %v1083
        %v1118 = vunpack.c.h.b16 %v1083
        %v1119 = vunpack.c.l.b16 %v1084
        %v1120 = vunpack.c.h.b16 %v1084
        %v1121 = vunpack.c.l.b16 %v1085
        %v1122 = vunpack.c.h.b16 %v1085
        %v1123 = vunpack.c.l.b16 %v1086
        %v1124 = vunpack.c.h.b16 %v1086
        %v1125 = vunpack.c.l.b16 %v1087
        %v1126 = vunpack.c.h.b16 %v1087
        %v1127 = vunpack.c.l.b16 %v1088
        %v1128 = vunpack.c.h.b16 %v1088
        %v1129 = vunpack.c.l.b16 %v1089
        %v1130 = vunpack.c.h.b16 %v1089
        %v1131 = vunpack.c.l.b16 %v1090
        %v1132 = vunpack.c.h.b16 %v1090
        %v1133 = vunpack.c.l.b16 %v1091
        %v1134 = vunpack.c.h.b16 %v1091
        %v1135 = vunpack.c.l.b16 %v1092
        %v1136 = vunpack.c.h.b16 %v1092
        %v1137 = vunpack.c.l.b16 %v1093
        %v1138 = vunpack.c.h.b16 %v1093
        %v1139 = vunpack.c.l.b16 %v1094
        %v1140 = vunpack.c.h.b16 %v1094
        %v1141 = vunpack.c.l.b16 %v1095
        %v1142 = vunpack.c.h.b16 %v1095
        %v1143 = vunpack.c.l.b16 %v1096
        %v1144 = vunpack.c.h.b16 %v1096
        %v1145 = vpack.c.b16 %v1115, %v1113
        %v1146 = vpack.c.b16 %v1116, %v1114
        %v1147 = vpack.c.b16 %v1119, %v1117
        %v1148 = vpack.c.b16 %v1120, %v1118
        %v1149 = vpack.c.b16 %v1123, %v1121
        %v1150 = vpack.c.b16 %v1124, %v1122
        %v1151 = vpack.c.b16 %v1127, %v1125
        %v1152 = vpack.c.b16 %v1128, %v1126
        %v1153 = vpack.c.b16 %v1131, %v1129
        %v1154 = vpack.c.b16 %v1132, %v1130
        %v1155 = vpack.c.b16 %v1135, %v1133
        %v1156 = vpack.c.b16 %v1136, %v1134
        %v1157 = vpack.c.b16 %v1139, %v1137
        %v1158 = vpack.c.b16 %v1140, %v1138
        %v1159 = vpack.c.b16 %v1143, %v1141
        %v1160 = vpack.c.b16 %v1144, %v1142
        %1177 = vmatprep.subr.bf16.mxu0 %v1146
        %1178 = vmatpush1.bf16.msra.mxu0 %v1145
        %1179 = vmatprep.subr.bf16.mxu0 %v1148
        %1180 = vmatpush1.bf16.msra.mxu0 %v1147
        %1181 = vmatprep.subr.bf16.mxu0 %v1150
        %1182 = vmatpush1.bf16.msra.mxu0 %v1149
        %1183 = vmatprep.subr.bf16.mxu0 %v1152
        %1184 = vmatpush1.bf16.msra.mxu0 %v1151
        %1185 = vmatprep.subr.bf16.mxu0 %v1154
        %1186 = vmatpush1.bf16.msra.mxu0 %v1153
        %1187 = vmatprep.subr.bf16.mxu0 %v1156
        %1188 = vmatpush1.bf16.msra.mxu0 %v1155
        %1189 = vmatprep.subr.bf16.mxu0 %v1158
        %1190 = vmatpush1.bf16.msra.mxu0 %v1157
        %1191 = vmatprep.subr.bf16.mxu0 %v1160
        %1192 = vmatpush1.bf16.msra.mxu0 %v1159
        %1193 = vmatprep.subr.bf16.mxu0 0
        %1194 = vmatpush1.bf16.msra.mxu0 0
        %1195 = vmatprep.subr.bf16.mxu0 0
        %1196 = vmatpush1.bf16.msra.mxu0 0
        %1197 = vmatprep.subr.bf16.mxu0 0
        %1198 = vmatpush1.bf16.msra.mxu0 0
        %1199 = vmatprep.subr.bf16.mxu0 0
        %1200 = vmatpush1.bf16.msra.mxu0 0
        %1201 = vmatprep.subr.bf16.mxu0 0
        %1202 = vmatpush1.bf16.msra.mxu0 0
        %1203 = vmatprep.subr.bf16.mxu0 0
        %1204 = vmatpush1.bf16.msra.mxu0 0
        %1205 = vmatprep.subr.bf16.mxu0 0
        %1206 = vmatpush1.bf16.msra.mxu0 0
        %1207 = vmatprep.subr.bf16.mxu0 0
        %1208 = vmatpush1.bf16.msra.mxu0 0
        %1209 = vmatprep.mubr.bf16.mxu0 0
        %1210 = vmatmul.mubr.bf16.gmra.mrb[0].mxu0 %v1080
        %v1211 = vpop.f32.mrb[0].mxu0
        %v1212 = vadd.f32 0.0, %v1211
        %v1213 = vpop.f32.mrb[0].mxu0
        %v1214 = vadd.f32 0.0, %v1213
        %v1215 = vpop.f32.mrb[0].mxu0
        %v1216 = vadd.f32 0.0, %v1215
        %v1217 = vpop.f32.mrb[0].mxu0
        %v1218 = vadd.f32 0.0, %v1217
        %1219 = vdwg.mxu0
        %v1220 = vadd.f32 %v1212, %v623
        %v1221 = vadd.f32 %v1216, %v624
        %1222 = vst [vmem:[#allocation2 + $0x10] sm:$0xff] %v1220
        %1223 = vst [vmem:[#allocation2 + $0x18] sm:$0xff] %v1221
        %v1224 = vld [vmem:[%s232] sm:$0xff]
        %v1225 = vld [vmem:[%s232 + $0x8] sm:$0xff]
        %v1226 = vadd.f32 %v1224, %v1214
        %v1227 = vadd.f32 %v1225, %v1218
        %1228 = vst [vmem:[%s232] sm:$0xff] %v1226
        %1229 = vst [vmem:[%s232 + $0x8] sm:$0xff] %v1227
        %v1230 = vld [vmem:[#allocation2 + $0xc] sm:$0xff]
        %v1231 = vld [vmem:[#allocation2 + $0x14] sm:$0xff]
        %v1232 = vpack.c.bf16 %v1231, %v1230
        %s1233 = scalar_lea.vmem [#allocation6], 640
        %v1234 = vld [vmem:[%s1233] sm:$0xff]
        %v1235 = vld [vmem:[%s1233 + $0x8] sm:$0xff]
        %v1236 = vld [vmem:[%s1233 + $0x10] sm:$0xff]
        %v1237 = vld [vmem:[%s1233 + $0x18] sm:$0xff]
        %v1238 = vld [vmem:[%s1233 + $0x20] sm:$0xff]
        %v1239 = vld [vmem:[%s1233 + $0x28] sm:$0xff]
        %v1240 = vld [vmem:[%s1233 + $0x30] sm:$0xff]
        %v1241 = vld [vmem:[%s1233 + $0x38] sm:$0xff]
        %v1242 = vld [vmem:[%s1233 + $0x40] sm:$0xff]
        %v1243 = vld [vmem:[%s1233 + $0x48] sm:$0xff]
        %v1244 = vld [vmem:[%s1233 + $0x50] sm:$0xff]
        %v1245 = vld [vmem:[%s1233 + $0x58] sm:$0xff]
        %v1246 = vld [vmem:[%s1233 + $0x60] sm:$0xff]
        %v1247 = vld [vmem:[%s1233 + $0x68] sm:$0xff]
        %v1248 = vld [vmem:[%s1233 + $0x70] sm:$0xff]
        %v1249 = vld [vmem:[%s1233 + $0x78] sm:$0xff]
        %v1250 = vld [vmem:[#allocation2 + $0xe] sm:$0xff]
        %v1251 = vld [vmem:[#allocation2 + $0x16] sm:$0xff]
        %v1252 = vpack.c.bf16 %v1251, %v1250
        %s1253 = scalar_lea.vmem [#allocation6], 768
        %v1254 = vld [vmem:[%s1253] sm:$0xff]
        %v1255 = vld [vmem:[%s1253 + $0x8] sm:$0xff]
        %v1256 = vld [vmem:[%s1253 + $0x10] sm:$0xff]
        %v1257 = vld [vmem:[%s1253 + $0x18] sm:$0xff]
        %v1258 = vld [vmem:[%s1253 + $0x20] sm:$0xff]
        %v1259 = vld [vmem:[%s1253 + $0x28] sm:$0xff]
        %v1260 = vld [vmem:[%s1253 + $0x30] sm:$0xff]
        %v1261 = vld [vmem:[%s1253 + $0x38] sm:$0xff]
        %v1262 = vld [vmem:[%s1253 + $0x40] sm:$0xff]
        %v1263 = vld [vmem:[%s1253 + $0x48] sm:$0xff]
        %v1264 = vld [vmem:[%s1253 + $0x50] sm:$0xff]
        %v1265 = vld [vmem:[%s1253 + $0x58] sm:$0xff]
        %v1266 = vld [vmem:[%s1253 + $0x60] sm:$0xff]
        %v1267 = vld [vmem:[%s1253 + $0x68] sm:$0xff]
        %v1268 = vld [vmem:[%s1253 + $0x70] sm:$0xff]
        %v1269 = vld [vmem:[%s1253 + $0x78] sm:$0xff]
        %v1286 = vunpack.c.l.b16 %v1254
        %v1287 = vunpack.c.h.b16 %v1254
        %v1288 = vunpack.c.l.b16 %v1255
        %v1289 = vunpack.c.h.b16 %v1255
        %v1290 = vunpack.c.l.b16 %v1256
        %v1291 = vunpack.c.h.b16 %v1256
        %v1292 = vunpack.c.l.b16 %v1257
        %v1293 = vunpack.c.h.b16 %v1257
        %v1294 = vunpack.c.l.b16 %v1258
        %v1295 = vunpack.c.h.b16 %v1258
        %v1296 = vunpack.c.l.b16 %v1259
        %v1297 = vunpack.c.h.b16 %v1259
        %v1298 = vunpack.c.l.b16 %v1260
        %v1299 = vunpack.c.h.b16 %v1260
        %v1300 = vunpack.c.l.b16 %v1261
        %v1301 = vunpack.c.h.b16 %v1261
        %v1302 = vunpack.c.l.b16 %v1262
        %v1303 = vunpack.c.h.b16 %v1262
        %v1304 = vunpack.c.l.b16 %v1263
        %v1305 = vunpack.c.h.b16 %v1263
        %v1306 = vunpack.c.l.b16 %v1264
        %v1307 = vunpack.c.h.b16 %v1264
        %v1308 = vunpack.c.l.b16 %v1265
        %v1309 = vunpack.c.h.b16 %v1265
        %v1310 = vunpack.c.l.b16 %v1266
        %v1311 = vunpack.c.h.b16 %v1266
        %v1312 = vunpack.c.l.b16 %v1267
        %v1313 = vunpack.c.h.b16 %v1267
        %v1314 = vunpack.c.l.b16 %v1268
        %v1315 = vunpack.c.h.b16 %v1268
        %v1316 = vunpack.c.l.b16 %v1269
        %v1317 = vunpack.c.h.b16 %v1269
        %v1318 = vpack.c.b16 %v1288, %v1286
        %v1319 = vpack.c.b16 %v1289, %v1287
        %v1320 = vpack.c.b16 %v1292, %v1290
        %v1321 = vpack.c.b16 %v1293, %v1291
        %v1322 = vpack.c.b16 %v1296, %v1294
        %v1323 = vpack.c.b16 %v1297, %v1295
        %v1324 = vpack.c.b16 %v1300, %v1298
        %v1325 = vpack.c.b16 %v1301, %v1299
        %v1326 = vpack.c.b16 %v1304, %v1302
        %v1327 = vpack.c.b16 %v1305, %v1303
        %v1328 = vpack.c.b16 %v1308, %v1306
        %v1329 = vpack.c.b16 %v1309, %v1307
        %v1330 = vpack.c.b16 %v1312, %v1310
        %v1331 = vpack.c.b16 %v1313, %v1311
        %v1332 = vpack.c.b16 %v1316, %v1314
        %v1333 = vpack.c.b16 %v1317, %v1315
        %1350 = vmatprep.subr.bf16.mxu0 %v1319
        %1351 = vmatpush1.bf16.msra.mxu0 %v1318
        %1352 = vmatprep.subr.bf16.mxu0 %v1321
        %1353 = vmatpush1.bf16.msra.mxu0 %v1320
        %1354 = vmatprep.subr.bf16.mxu0 %v1323
        %1355 = vmatpush1.bf16.msra.mxu0 %v1322
        %1356 = vmatprep.subr.bf16.mxu0 %v1325
        %1357 = vmatpush1.bf16.msra.mxu0 %v1324
        %1358 = vmatprep.subr.bf16.mxu0 %v1327
        %1359 = vmatpush1.bf16.msra.mxu0 %v1326
        %1360 = vmatprep.subr.bf16.mxu0 %v1329
        %1361 = vmatpush1.bf16.msra.mxu0 %v1328
        %1362 = vmatprep.subr.bf16.mxu0 %v1331
        %1363 = vmatpush1.bf16.msra.mxu0 %v1330
        %1364 = vmatprep.subr.bf16.mxu0 %v1333
        %1365 = vmatpush1.bf16.msra.mxu0 %v1332
        %1366 = vmatprep.subr.bf16.mxu0 0
        %1367 = vmatpush1.bf16.msra.mxu0 0
        %1368 = vmatprep.subr.bf16.mxu0 0
        %1369 = vmatpush1.bf16.msra.mxu0 0
        %1370 = vmatprep.subr.bf16.mxu0 0
        %1371 = vmatpush1.bf16.msra.mxu0 0
        %1372 = vmatprep.subr.bf16.mxu0 0
        %1373 = vmatpush1.bf16.msra.mxu0 0
        %1374 = vmatprep.subr.bf16.mxu0 0
        %1375 = vmatpush1.bf16.msra.mxu0 0
        %1376 = vmatprep.subr.bf16.mxu0 0
        %1377 = vmatpush1.bf16.msra.mxu0 0
        %1378 = vmatprep.subr.bf16.mxu0 0
        %1379 = vmatpush1.bf16.msra.mxu0 0
        %1380 = vmatprep.subr.bf16.mxu0 0
        %1381 = vmatpush1.bf16.msra.mxu0 0
        %1382 = vmatprep.mubr.bf16.mxu0 0
        %1383 = vmatmul.mubr.bf16.gmra.mrb[0].mxu0 %v1252
        %v1384 = vpop.f32.mrb[0].mxu0
        %v1385 = vadd.f32 0.0, %v1384
        %v1386 = vpop.f32.mrb[0].mxu0
        %v1387 = vadd.f32 0.0, %v1386
        %v1388 = vpop.f32.mrb[0].mxu0
        %v1389 = vadd.f32 0.0, %v1388
        %v1390 = vpop.f32.mrb[0].mxu0
        %v1391 = vadd.f32 0.0, %v1390
        %1392 = vdwg.mxu0
        %v1409 = vunpack.c.l.b16 %v1234
        %v1410 = vunpack.c.h.b16 %v1234
        %v1411 = vunpack.c.l.b16 %v1235
        %v1412 = vunpack.c.h.b16 %v1235
        %v1413 = vunpack.c.l.b16 %v1236
        %v1414 = vunpack.c.h.b16 %v1236
        %v1415 = vunpack.c.l.b16 %v1237
        %v1416 = vunpack.c.h.b16 %v1237
        %v1417 = vunpack.c.l.b16 %v1238
        %v1418 = vunpack.c.h.b16 %v1238
        %v1419 = vunpack.c.l.b16 %v1239
        %v1420 = vunpack.c.h.b16 %v1239
        %v1421 = vunpack.c.l.b16 %v1240
        %v1422 = vunpack.c.h.b16 %v1240
        %v1423 = vunpack.c.l.b16 %v1241
        %v1424 = vunpack.c.h.b16 %v1241
        %v1425 = vunpack.c.l.b16 %v1242
        %v1426 = vunpack.c.h.b16 %v1242
        %v1427 = vunpack.c.l.b16 %v1243
        %v1428 = vunpack.c.h.b16 %v1243
        %v1429 = vunpack.c.l.b16 %v1244
        %v1430 = vunpack.c.h.b16 %v1244
        %v1431 = vunpack.c.l.b16 %v1245
        %v1432 = vunpack.c.h.b16 %v1245
        %v1433 = vunpack.c.l.b16 %v1246
        %v1434 = vunpack.c.h.b16 %v1246
        %v1435 = vunpack.c.l.b16 %v1247
        %v1436 = vunpack.c.h.b16 %v1247
        %v1437 = vunpack.c.l.b16 %v1248
        %v1438 = vunpack.c.h.b16 %v1248
        %v1439 = vunpack.c.l.b16 %v1249
        %v1440 = vunpack.c.h.b16 %v1249
        %v1441 = vpack.c.b16 %v1411, %v1409
        %v1442 = vpack.c.b16 %v1412, %v1410
        %v1443 = vpack.c.b16 %v1415, %v1413
        %v1444 = vpack.c.b16 %v1416, %v1414
        %v1445 = vpack.c.b16 %v1419, %v1417
        %v1446 = vpack.c.b16 %v1420, %v1418
        %v1447 = vpack.c.b16 %v1423, %v1421
        %v1448 = vpack.c.b16 %v1424, %v1422
        %v1449 = vpack.c.b16 %v1427, %v1425
        %v1450 = vpack.c.b16 %v1428, %v1426
        %v1451 = vpack.c.b16 %v1431, %v1429
        %v1452 = vpack.c.b16 %v1432, %v1430
        %v1453 = vpack.c.b16 %v1435, %v1433
        %v1454 = vpack.c.b16 %v1436, %v1434
        %v1455 = vpack.c.b16 %v1439, %v1437
        %v1456 = vpack.c.b16 %v1440, %v1438
        %1473 = vmatprep.subr.bf16.mxu0 %v1442
        %1474 = vmatpush1.bf16.msra.mxu0 %v1441
        %1475 = vmatprep.subr.bf16.mxu0 %v1444
        %1476 = vmatpush1.bf16.msra.mxu0 %v1443
        %1477 = vmatprep.subr.bf16.mxu0 %v1446
        %1478 = vmatpush1.bf16.msra.mxu0 %v1445
        %1479 = vmatprep.subr.bf16.mxu0 %v1448
        %1480 = vmatpush1.bf16.msra.mxu0 %v1447
        %1481 = vmatprep.subr.bf16.mxu0 %v1450
        %1482 = vmatpush1.bf16.msra.mxu0 %v1449
        %1483 = vmatprep.subr.bf16.mxu0 %v1452
        %1484 = vmatpush1.bf16.msra.mxu0 %v1451
        %1485 = vmatprep.subr.bf16.mxu0 %v1454
        %1486 = vmatpush1.bf16.msra.mxu0 %v1453
        %1487 = vmatprep.subr.bf16.mxu0 %v1456
        %1488 = vmatpush1.bf16.msra.mxu0 %v1455
        %1489 = vmatprep.subr.bf16.mxu0 0
        %1490 = vmatpush1.bf16.msra.mxu0 0
        %1491 = vmatprep.subr.bf16.mxu0 0
        %1492 = vmatpush1.bf16.msra.mxu0 0
        %1493 = vmatprep.subr.bf16.mxu0 0
        %1494 = vmatpush1.bf16.msra.mxu0 0
        %1495 = vmatprep.subr.bf16.mxu0 0
        %1496 = vmatpush1.bf16.msra.mxu0 0
        %1497 = vmatprep.subr.bf16.mxu0 0
        %1498 = vmatpush1.bf16.msra.mxu0 0
        %1499 = vmatprep.subr.bf16.mxu0 0
        %1500 = vmatpush1.bf16.msra.mxu0 0
        %1501 = vmatprep.subr.bf16.mxu0 0
        %1502 = vmatpush1.bf16.msra.mxu0 0
        %1503 = vmatprep.subr.bf16.mxu0 0
        %1504 = vmatpush1.bf16.msra.mxu0 0
        %1505 = vmatprep.mubr.bf16.mxu0 0
        %1506 = vmatmul.mubr.bf16.gmra.mrb[0].mxu0 %v1232
        %v1507 = vpop.f32.mrb[0].mxu0
        %v1508 = vadd.f32 %v1385, %v1507
        %v1509 = vpop.f32.mrb[0].mxu0
        %v1510 = vadd.f32 %v1387, %v1509
        %v1511 = vpop.f32.mrb[0].mxu0
        %v1512 = vadd.f32 %v1389, %v1511
        %v1513 = vpop.f32.mrb[0].mxu0
        %v1514 = vadd.f32 %v1391, %v1513
        %1515 = vdwg.mxu0
        %v1516 = vld [vmem:[#allocation2 + $0x10] sm:$0xff]
        %v1517 = vld [vmem:[#allocation2 + $0x18] sm:$0xff]
        %v1518 = vpack.c.bf16 %v1517, %v1516
        %s1519 = scalar_lea.vmem [#allocation6], 896
        %v1520 = vld [vmem:[%s1519] sm:$0xff]
        %v1521 = vld [vmem:[%s1519 + $0x8] sm:$0xff]
        %v1522 = vld [vmem:[%s1519 + $0x10] sm:$0xff]
        %v1523 = vld [vmem:[%s1519 + $0x18] sm:$0xff]
        %v1524 = vld [vmem:[%s1519 + $0x20] sm:$0xff]
        %v1525 = vld [vmem:[%s1519 + $0x28] sm:$0xff]
        %v1526 = vld [vmem:[%s1519 + $0x30] sm:$0xff]
        %v1527 = vld [vmem:[%s1519 + $0x38] sm:$0xff]
        %v1528 = vld [vmem:[%s1519 + $0x40] sm:$0xff]
        %v1529 = vld [vmem:[%s1519 + $0x48] sm:$0xff]
        %v1530 = vld [vmem:[%s1519 + $0x50] sm:$0xff]
        %v1531 = vld [vmem:[%s1519 + $0x58] sm:$0xff]
        %v1532 = vld [vmem:[%s1519 + $0x60] sm:$0xff]
        %v1533 = vld [vmem:[%s1519 + $0x68] sm:$0xff]
        %v1534 = vld [vmem:[%s1519 + $0x70] sm:$0xff]
        %v1535 = vld [vmem:[%s1519 + $0x78] sm:$0xff]
        %v1552 = vunpack.c.l.b16 %v1520
        %v1553 = vunpack.c.h.b16 %v1520
        %v1554 = vunpack.c.l.b16 %v1521
        %v1555 = vunpack.c.h.b16 %v1521
        %v1556 = vunpack.c.l.b16 %v1522
        %v1557 = vunpack.c.h.b16 %v1522
        %v1558 = vunpack.c.l.b16 %v1523
        %v1559 = vunpack.c.h.b16 %v1523
        %v1560 = vunpack.c.l.b16 %v1524
        %v1561 = vunpack.c.h.b16 %v1524
        %v1562 = vunpack.c.l.b16 %v1525
        %v1563 = vunpack.c.h.b16 %v1525
        %v1564 = vunpack.c.l.b16 %v1526
        %v1565 = vunpack.c.h.b16 %v1526
        %v1566 = vunpack.c.l.b16 %v1527
        %v1567 = vunpack.c.h.b16 %v1527
        %v1568 = vunpack.c.l.b16 %v1528
        %v1569 = vunpack.c.h.b16 %v1528
        %v1570 = vunpack.c.l.b16 %v1529
        %v1571 = vunpack.c.h.b16 %v1529
        %v1572 = vunpack.c.l.b16 %v1530
        %v1573 = vunpack.c.h.b16 %v1530
        %v1574 = vunpack.c.l.b16 %v1531
        %v1575 = vunpack.c.h.b16 %v1531
        %v1576 = vunpack.c.l.b16 %v1532
        %v1577 = vunpack.c.h.b16 %v1532
        %v1578 = vunpack.c.l.b16 %v1533
        %v1579 = vunpack.c.h.b16 %v1533
        %v1580 = vunpack.c.l.b16 %v1534
        %v1581 = vunpack.c.h.b16 %v1534
        %v1582 = vunpack.c.l.b16 %v1535
        %v1583 = vunpack.c.h.b16 %v1535
        %v1584 = vpack.c.b16 %v1554, %v1552
        %v1585 = vpack.c.b16 %v1555, %v1553
        %v1586 = vpack.c.b16 %v1558, %v1556
        %v1587 = vpack.c.b16 %v1559, %v1557
        %v1588 = vpack.c.b16 %v1562, %v1560
        %v1589 = vpack.c.b16 %v1563, %v1561
        %v1590 = vpack.c.b16 %v1566, %v1564
        %v1591 = vpack.c.b16 %v1567, %v1565
        %v1592 = vpack.c.b16 %v1570, %v1568
        %v1593 = vpack.c.b16 %v1571, %v1569
        %v1594 = vpack.c.b16 %v1574, %v1572
        %v1595 = vpack.c.b16 %v1575, %v1573
        %v1596 = vpack.c.b16 %v1578, %v1576
        %v1597 = vpack.c.b16 %v1579, %v1577
        %v1598 = vpack.c.b16 %v1582, %v1580
        %v1599 = vpack.c.b16 %v1583, %v1581
        %1616 = vmatprep.subr.bf16.mxu0 %v1585
        %1617 = vmatpush1.bf16.msra.mxu0 %v1584
        %1618 = vmatprep.subr.bf16.mxu0 %v1587
        %1619 = vmatpush1.bf16.msra.mxu0 %v1586
        %1620 = vmatprep.subr.bf16.mxu0 %v1589
        %1621 = vmatpush1.bf16.msra.mxu0 %v1588
        %1622 = vmatprep.subr.bf16.mxu0 %v1591
        %1623 = vmatpush1.bf16.msra.mxu0 %v1590
        %1624 = vmatprep.subr.bf16.mxu0 %v1593
        %1625 = vmatpush1.bf16.msra.mxu0 %v1592
        %1626 = vmatprep.subr.bf16.mxu0 %v1595
        %1627 = vmatpush1.bf16.msra.mxu0 %v1594
        %1628 = vmatprep.subr.bf16.mxu0 %v1597
        %1629 = vmatpush1.bf16.msra.mxu0 %v1596
        %1630 = vmatprep.subr.bf16.mxu0 %v1599
        %1631 = vmatpush1.bf16.msra.mxu0 %v1598
        %1632 = vmatprep.subr.bf16.mxu0 0
        %1633 = vmatpush1.bf16.msra.mxu0 0
        %1634 = vmatprep.subr.bf16.mxu0 0
        %1635 = vmatpush1.bf16.msra.mxu0 0
        %1636 = vmatprep.subr.bf16.mxu0 0
        %1637 = vmatpush1.bf16.msra.mxu0 0
        %1638 = vmatprep.subr.bf16.mxu0 0
        %1639 = vmatpush1.bf16.msra.mxu0 0
        %1640 = vmatprep.subr.bf16.mxu0 0
        %1641 = vmatpush1.bf16.msra.mxu0 0
        %1642 = vmatprep.subr.bf16.mxu0 0
        %1643 = vmatpush1.bf16.msra.mxu0 0
        %1644 = vmatprep.subr.bf16.mxu0 0
        %1645 = vmatpush1.bf16.msra.mxu0 0
        %1646 = vmatprep.subr.bf16.mxu0 0
        %1647 = vmatpush1.bf16.msra.mxu0 0
        %1648 = vmatprep.mubr.bf16.mxu0 0
        %1649 = vmatmul.mubr.bf16.gmra.mrb[0].mxu0 %v1518
        %v1650 = vpop.f32.mrb[0].mxu0
        %v1651 = vadd.f32 0.0, %v1650
        %v1652 = vpop.f32.mrb[0].mxu0
        %v1653 = vadd.f32 0.0, %v1652
        %v1654 = vpop.f32.mrb[0].mxu0
        %v1655 = vadd.f32 0.0, %v1654
        %v1656 = vpop.f32.mrb[0].mxu0
        %v1657 = vadd.f32 0.0, %v1656
        %1658 = vdwg.mxu0
        %v1659 = vadd.f32 %v1508, %v1651
        %v1660 = vadd.f32 %v1510, %v1653
        %v1661 = vadd.f32 %v1512, %v1655
        %v1662 = vadd.f32 %v1514, %v1657
        %v1663 = vld [vmem:[#allocation2 + $0x12] sm:$0xff]
        %v1664 = vld [vmem:[#allocation2 + $0x1a] sm:$0xff]
        %v1665 = vpack.c.bf16 %v1664, %v1663
        %s1666 = scalar_lea.vmem [#allocation6], 1024
        %v1667 = vld [vmem:[%s1666] sm:$0xff]
        %v1668 = vld [vmem:[%s1666 + $0x8] sm:$0xff]
        %v1669 = vld [vmem:[%s1666 + $0x10] sm:$0xff]
        %v1670 = vld [vmem:[%s1666 + $0x18] sm:$0xff]
        %v1671 = vld [vmem:[%s1666 + $0x20] sm:$0xff]
        %v1672 = vld [vmem:[%s1666 + $0x28] sm:$0xff]
        %v1673 = vld [vmem:[%s1666 + $0x30] sm:$0xff]
        %v1674 = vld [vmem:[%s1666 + $0x38] sm:$0xff]
        %v1675 = vld [vmem:[%s1666 + $0x40] sm:$0xff]
        %v1676 = vld [vmem:[%s1666 + $0x48] sm:$0xff]
        %v1677 = vld [vmem:[%s1666 + $0x50] sm:$0xff]
        %v1678 = vld [vmem:[%s1666 + $0x58] sm:$0xff]
        %v1679 = vld [vmem:[%s1666 + $0x60] sm:$0xff]
        %v1680 = vld [vmem:[%s1666 + $0x68] sm:$0xff]
        %v1681 = vld [vmem:[%s1666 + $0x70] sm:$0xff]
        %v1682 = vld [vmem:[%s1666 + $0x78] sm:$0xff]
        %v1699 = vunpack.c.l.b16 %v1667
        %v1700 = vunpack.c.h.b16 %v1667
        %v1701 = vunpack.c.l.b16 %v1668
        %v1702 = vunpack.c.h.b16 %v1668
        %v1703 = vunpack.c.l.b16 %v1669
        %v1704 = vunpack.c.h.b16 %v1669
        %v1705 = vunpack.c.l.b16 %v1670
        %v1706 = vunpack.c.h.b16 %v1670
        %v1707 = vunpack.c.l.b16 %v1671
        %v1708 = vunpack.c.h.b16 %v1671
        %v1709 = vunpack.c.l.b16 %v1672
        %v1710 = vunpack.c.h.b16 %v1672
        %v1711 = vunpack.c.l.b16 %v1673
        %v1712 = vunpack.c.h.b16 %v1673
        %v1713 = vunpack.c.l.b16 %v1674
        %v1714 = vunpack.c.h.b16 %v1674
        %v1715 = vunpack.c.l.b16 %v1675
        %v1716 = vunpack.c.h.b16 %v1675
        %v1717 = vunpack.c.l.b16 %v1676
        %v1718 = vunpack.c.h.b16 %v1676
        %v1719 = vunpack.c.l.b16 %v1677
        %v1720 = vunpack.c.h.b16 %v1677
        %v1721 = vunpack.c.l.b16 %v1678
        %v1722 = vunpack.c.h.b16 %v1678
        %v1723 = vunpack.c.l.b16 %v1679
        %v1724 = vunpack.c.h.b16 %v1679
        %v1725 = vunpack.c.l.b16 %v1680
        %v1726 = vunpack.c.h.b16 %v1680
        %v1727 = vunpack.c.l.b16 %v1681
        %v1728 = vunpack.c.h.b16 %v1681
        %v1729 = vunpack.c.l.b16 %v1682
        %v1730 = vunpack.c.h.b16 %v1682
        %v1731 = vpack.c.b16 %v1701, %v1699
        %v1732 = vpack.c.b16 %v1702, %v1700
        %v1733 = vpack.c.b16 %v1705, %v1703
        %v1734 = vpack.c.b16 %v1706, %v1704
        %v1735 = vpack.c.b16 %v1709, %v1707
        %v1736 = vpack.c.b16 %v1710, %v1708
        %v1737 = vpack.c.b16 %v1713, %v1711
        %v1738 = vpack.c.b16 %v1714, %v1712
        %v1739 = vpack.c.b16 %v1717, %v1715
        %v1740 = vpack.c.b16 %v1718, %v1716
        %v1741 = vpack.c.b16 %v1721, %v1719
        %v1742 = vpack.c.b16 %v1722, %v1720
        %v1743 = vpack.c.b16 %v1725, %v1723
        %v1744 = vpack.c.b16 %v1726, %v1724
        %v1745 = vpack.c.b16 %v1729, %v1727
        %v1746 = vpack.c.b16 %v1730, %v1728
        %1763 = vmatprep.subr.bf16.mxu0 %v1732
        %1764 = vmatpush1.bf16.msra.mxu0 %v1731
        %1765 = vmatprep.subr.bf16.mxu0 %v1734
        %1766 = vmatpush1.bf16.msra.mxu0 %v1733
        %1767 = vmatprep.subr.bf16.mxu0 %v1736
        %1768 = vmatpush1.bf16.msra.mxu0 %v1735
        %1769 = vmatprep.subr.bf16.mxu0 %v1738
        %1770 = vmatpush1.bf16.msra.mxu0 %v1737
        %1771 = vmatprep.subr.bf16.mxu0 %v1740
        %1772 = vmatpush1.bf16.msra.mxu0 %v1739
        %1773 = vmatprep.subr.bf16.mxu0 %v1742
        %1774 = vmatpush1.bf16.msra.mxu0 %v1741
        %1775 = vmatprep.subr.bf16.mxu0 %v1744
        %1776 = vmatpush1.bf16.msra.mxu0 %v1743
        %1777 = vmatprep.subr.bf16.mxu0 %v1746
        %1778 = vmatpush1.bf16.msra.mxu0 %v1745
        %1779 = vmatprep.subr.bf16.mxu0 0
        %1780 = vmatpush1.bf16.msra.mxu0 0
        %1781 = vmatprep.subr.bf16.mxu0 0
        %1782 = vmatpush1.bf16.msra.mxu0 0
        %1783 = vmatprep.subr.bf16.mxu0 0
        %1784 = vmatpush1.bf16.msra.mxu0 0
        %1785 = vmatprep.subr.bf16.mxu0 0
        %1786 = vmatpush1.bf16.msra.mxu0 0
        %1787 = vmatprep.subr.bf16.mxu0 0
        %1788 = vmatpush1.bf16.msra.mxu0 0
        %1789 = vmatprep.subr.bf16.mxu0 0
        %1790 = vmatpush1.bf16.msra.mxu0 0
        %1791 = vmatprep.subr.bf16.mxu0 0
        %1792 = vmatpush1.bf16.msra.mxu0 0
        %1793 = vmatprep.subr.bf16.mxu0 0
        %1794 = vmatpush1.bf16.msra.mxu0 0
        %1795 = vmatprep.mubr.bf16.mxu0 0
        %1796 = vmatmul.mubr.bf16.gmra.mrb[0].mxu0 %v1665
        %v1797 = vpop.f32.mrb[0].mxu0
        %v1798 = vadd.f32 0.0, %v1797
        %v1799 = vpop.f32.mrb[0].mxu0
        %v1800 = vadd.f32 0.0, %v1799
        %v1801 = vpop.f32.mrb[0].mxu0
        %v1802 = vadd.f32 0.0, %v1801
        %v1803 = vpop.f32.mrb[0].mxu0
        %v1804 = vadd.f32 0.0, %v1803
        %1805 = vdwg.mxu0
        %v1806 = vadd.f32 %v1659, %v1798
        %v1807 = vadd.f32 %v1660, %v1800
        %v1808 = vadd.f32 %v1661, %v1802
        %v1809 = vadd.f32 %v1662, %v1804
        %v1810 = vld [vmem:[#allocation2 + $0x14] sm:$0xff]
        %v1811 = vld [vmem:[#allocation2 + $0x1c] sm:$0xff]
        %v1812 = vpack.c.bf16 %v1811, %v1810
        %s1813 = scalar_lea.vmem [#allocation6], 1152
        %v1814 = vld [vmem:[%s1813] sm:$0xff]
        %v1815 = vld [vmem:[%s1813 + $0x8] sm:$0xff]
        %v1816 = vld [vmem:[%s1813 + $0x10] sm:$0xff]
        %v1817 = vld [vmem:[%s1813 + $0x18] sm:$0xff]
        %v1818 = vld [vmem:[%s1813 + $0x20] sm:$0xff]
        %v1819 = vld [vmem:[%s1813 + $0x28] sm:$0xff]
        %v1820 = vld [vmem:[%s1813 + $0x30] sm:$0xff]
        %v1821 = vld [vmem:[%s1813 + $0x38] sm:$0xff]
        %v1822 = vld [vmem:[%s1813 + $0x40] sm:$0xff]
        %v1823 = vld [vmem:[%s1813 + $0x48] sm:$0xff]
        %v1824 = vld [vmem:[%s1813 + $0x50] sm:$0xff]
        %v1825 = vld [vmem:[%s1813 + $0x58] sm:$0xff]
        %v1826 = vld [vmem:[%s1813 + $0x60] sm:$0xff]
        %v1827 = vld [vmem:[%s1813 + $0x68] sm:$0xff]
        %v1828 = vld [vmem:[%s1813 + $0x70] sm:$0xff]
        %v1829 = vld [vmem:[%s1813 + $0x78] sm:$0xff]
        %v1846 = vunpack.c.l.b16 %v1814
        %v1847 = vunpack.c.h.b16 %v1814
        %v1848 = vunpack.c.l.b16 %v1815
        %v1849 = vunpack.c.h.b16 %v1815
        %v1850 = vunpack.c.l.b16 %v1816
        %v1851 = vunpack.c.h.b16 %v1816
        %v1852 = vunpack.c.l.b16 %v1817
        %v1853 = vunpack.c.h.b16 %v1817
        %v1854 = vunpack.c.l.b16 %v1818
        %v1855 = vunpack.c.h.b16 %v1818
        %v1856 = vunpack.c.l.b16 %v1819
        %v1857 = vunpack.c.h.b16 %v1819
        %v1858 = vunpack.c.l.b16 %v1820
        %v1859 = vunpack.c.h.b16 %v1820
        %v1860 = vunpack.c.l.b16 %v1821
        %v1861 = vunpack.c.h.b16 %v1821
        %v1862 = vunpack.c.l.b16 %v1822
        %v1863 = vunpack.c.h.b16 %v1822
        %v1864 = vunpack.c.l.b16 %v1823
        %v1865 = vunpack.c.h.b16 %v1823
        %v1866 = vunpack.c.l.b16 %v1824
        %v1867 = vunpack.c.h.b16 %v1824
        %v1868 = vunpack.c.l.b16 %v1825
        %v1869 = vunpack.c.h.b16 %v1825
        %v1870 = vunpack.c.l.b16 %v1826
        %v1871 = vunpack.c.h.b16 %v1826
        %v1872 = vunpack.c.l.b16 %v1827
        %v1873 = vunpack.c.h.b16 %v1827
        %v1874 = vunpack.c.l.b16 %v1828
        %v1875 = vunpack.c.h.b16 %v1828
        %v1876 = vunpack.c.l.b16 %v1829
        %v1877 = vunpack.c.h.b16 %v1829
        %v1878 = vpack.c.b16 %v1848, %v1846
        %v1879 = vpack.c.b16 %v1849, %v1847
        %v1880 = vpack.c.b16 %v1852, %v1850
        %v1881 = vpack.c.b16 %v1853, %v1851
        %v1882 = vpack.c.b16 %v1856, %v1854
        %v1883 = vpack.c.b16 %v1857, %v1855
        %v1884 = vpack.c.b16 %v1860, %v1858
        %v1885 = vpack.c.b16 %v1861, %v1859
        %v1886 = vpack.c.b16 %v1864, %v1862
        %v1887 = vpack.c.b16 %v1865, %v1863
        %v1888 = vpack.c.b16 %v1868, %v1866
        %v1889 = vpack.c.b16 %v1869, %v1867
        %v1890 = vpack.c.b16 %v1872, %v1870
        %v1891 = vpack.c.b16 %v1873, %v1871
        %v1892 = vpack.c.b16 %v1876, %v1874
        %v1893 = vpack.c.b16 %v1877, %v1875
        %1910 = vmatprep.subr.bf16.mxu0 %v1879
        %1911 = vmatpush1.bf16.msra.mxu0 %v1878
        %1912 = vmatprep.subr.bf16.mxu0 %v1881
        %1913 = vmatpush1.bf16.msra.mxu0 %v1880
        %1914 = vmatprep.subr.bf16.mxu0 %v1883
        %1915 = vmatpush1.bf16.msra.mxu0 %v1882
        %1916 = vmatprep.subr.bf16.mxu0 %v1885
        %1917 = vmatpush1.bf16.msra.mxu0 %v1884
        %1918 = vmatprep.subr.bf16.mxu0 %v1887
        %1919 = vmatpush1.bf16.msra.mxu0 %v1886
        %1920 = vmatprep.subr.bf16.mxu0 %v1889
        %1921 = vmatpush1.bf16.msra.mxu0 %v1888
        %1922 = vmatprep.subr.bf16.mxu0 %v1891
        %1923 = vmatpush1.bf16.msra.mxu0 %v1890
        %1924 = vmatprep.subr.bf16.mxu0 %v1893
        %1925 = vmatpush1.bf16.msra.mxu0 %v1892
        %1926 = vmatprep.subr.bf16.mxu0 0
        %1927 = vmatpush1.bf16.msra.mxu0 0
        %1928 = vmatprep.subr.bf16.mxu0 0
        %1929 = vmatpush1.bf16.msra.mxu0 0
        %1930 = vmatprep.subr.bf16.mxu0 0
        %1931 = vmatpush1.bf16.msra.mxu0 0
        %1932 = vmatprep.subr.bf16.mxu0 0
        %1933 = vmatpush1.bf16.msra.mxu0 0
        %1934 = vmatprep.subr.bf16.mxu0 0
        %1935 = vmatpush1.bf16.msra.mxu0 0
        %1936 = vmatprep.subr.bf16.mxu0 0
        %1937 = vmatpush1.bf16.msra.mxu0 0
        %1938 = vmatprep.subr.bf16.mxu0 0
        %1939 = vmatpush1.bf16.msra.mxu0 0
        %1940 = vmatprep.subr.bf16.mxu0 0
        %1941 = vmatpush1.bf16.msra.mxu0 0
        %1942 = vmatprep.mubr.bf16.mxu0 0
        %1943 = vmatmul.mubr.bf16.gmra.mrb[0].mxu0 %v1812
        %v1944 = vpop.f32.mrb[0].mxu0
        %v1945 = vadd.f32 0.0, %v1944
        %v1946 = vpop.f32.mrb[0].mxu0
        %v1947 = vadd.f32 0.0, %v1946
        %v1948 = vpop.f32.mrb[0].mxu0
        %v1949 = vadd.f32 0.0, %v1948
        %v1950 = vpop.f32.mrb[0].mxu0
        %v1951 = vadd.f32 0.0, %v1950
        %1952 = vdwg.mxu0
        %v1953 = vadd.f32 %v1806, %v1945
        %v1954 = vadd.f32 %v1807, %v1947
        %v1955 = vadd.f32 %v1808, %v1949
        %v1956 = vadd.f32 %v1809, %v1951
        %v1957 = vtanh.pop %v1953
        %v1958 = vtanh.pop %v1955
        %v1959 = vxor.u32 %v1954, 2147483648
        %v1960 = vxor.u32 %v1956, 2147483648
        %v1961 = vmul.f32 %v1959, 1.442695
        %v1962 = vpow.pop %v1961
        %v1963 = vmul.f32 %v1960, 1.442695
        %v1964 = vpow.pop %v1963
        %v1965 = vadd.f32 %v1962, 1.0
        %v1966 = vadd.f32 %v1964, 1.0
        %v1967 = vrcp.pop %v1965
        %v1968 = vmul.f32 1.0, %v1967
        %v1969 = vrcp.pop %v1966
        %v1970 = vmul.f32 1.0, %v1969
        %v1971 = vmul.f32 %v1957, %v1968
        %v1972 = vmul.f32 %v1958, %v1970
        %v1973 = vpack.c.bf16 %v1972, %v1971
        %s1974 = scalar_lea.vmem [#allocation8], 128
        %v1975 = vld [vmem:[%s1974] sm:$0xff]
        %v1976 = vld [vmem:[%s1974 + $0x8] sm:$0xff]
        %v1977 = vld [vmem:[%s1974 + $0x10] sm:$0xff]
        %v1978 = vld [vmem:[%s1974 + $0x18] sm:$0xff]
        %v1979 = vld [vmem:[%s1974 + $0x20] sm:$0xff]
        %v1980 = vld [vmem:[%s1974 + $0x28] sm:$0xff]
        %v1981 = vld [vmem:[%s1974 + $0x30] sm:$0xff]
        %v1982 = vld [vmem:[%s1974 + $0x38] sm:$0xff]
        %v1983 = vld [vmem:[%s1974 + $0x40] sm:$0xff]
        %v1984 = vld [vmem:[%s1974 + $0x48] sm:$0xff]
        %v1985 = vld [vmem:[%s1974 + $0x50] sm:$0xff]
        %v1986 = vld [vmem:[%s1974 + $0x58] sm:$0xff]
        %v1987 = vld [vmem:[%s1974 + $0x60] sm:$0xff]
        %v1988 = vld [vmem:[%s1974 + $0x68] sm:$0xff]
        %v1989 = vld [vmem:[%s1974 + $0x70] sm:$0xff]
        %v1990 = vld [vmem:[%s1974 + $0x78] sm:$0xff]
        %v2007 = vunpack.c.l.b16 %v1975
        %v2008 = vunpack.c.h.b16 %v1975
        %v2009 = vunpack.c.l.b16 %v1976
        %v2010 = vunpack.c.h.b16 %v1976
        %v2011 = vunpack.c.l.b16 %v1977
        %v2012 = vunpack.c.h.b16 %v1977
        %v2013 = vunpack.c.l.b16 %v1978
        %v2014 = vunpack.c.h.b16 %v1978
        %v2015 = vunpack.c.l.b16 %v1979
        %v2016 = vunpack.c.h.b16 %v1979
        %v2017 = vunpack.c.l.b16 %v1980
        %v2018 = vunpack.c.h.b16 %v1980
        %v2019 = vunpack.c.l.b16 %v1981
        %v2020 = vunpack.c.h.b16 %v1981
        %v2021 = vunpack.c.l.b16 %v1982
        %v2022 = vunpack.c.h.b16 %v1982
        %v2023 = vunpack.c.l.b16 %v1983
        %v2024 = vunpack.c.h.b16 %v1983
        %v2025 = vunpack.c.l.b16 %v1984
        %v2026 = vunpack.c.h.b16 %v1984
        %v2027 = vunpack.c.l.b16 %v1985
        %v2028 = vunpack.c.h.b16 %v1985
        %v2029 = vunpack.c.l.b16 %v1986
        %v2030 = vunpack.c.h.b16 %v1986
        %v2031 = vunpack.c.l.b16 %v1987
        %v2032 = vunpack.c.h.b16 %v1987
        %v2033 = vunpack.c.l.b16 %v1988
        %v2034 = vunpack.c.h.b16 %v1988
        %v2035 = vunpack.c.l.b16 %v1989
        %v2036 = vunpack.c.h.b16 %v1989
        %v2037 = vunpack.c.l.b16 %v1990
        %v2038 = vunpack.c.h.b16 %v1990
        %v2039 = vpack.c.b16 %v2009, %v2007
        %v2040 = vpack.c.b16 %v2010, %v2008
        %v2041 = vpack.c.b16 %v2013, %v2011
        %v2042 = vpack.c.b16 %v2014, %v2012
        %v2043 = vpack.c.b16 %v2017, %v2015
        %v2044 = vpack.c.b16 %v2018, %v2016
        %v2045 = vpack.c.b16 %v2021, %v2019
        %v2046 = vpack.c.b16 %v2022, %v2020
        %v2047 = vpack.c.b16 %v2025, %v2023
        %v2048 = vpack.c.b16 %v2026, %v2024
        %v2049 = vpack.c.b16 %v2029, %v2027
        %v2050 = vpack.c.b16 %v2030, %v2028
        %v2051 = vpack.c.b16 %v2033, %v2031
        %v2052 = vpack.c.b16 %v2034, %v2032
        %v2053 = vpack.c.b16 %v2037, %v2035
        %v2054 = vpack.c.b16 %v2038, %v2036
        %2071 = vmatprep.subr.bf16.mxu0 %v2040
        %2072 = vmatpush1.bf16.msra.mxu0 %v2039
        %2073 = vmatprep.subr.bf16.mxu0 %v2042
        %2074 = vmatpush1.bf16.msra.mxu0 %v2041
        %2075 = vmatprep.subr.bf16.mxu0 %v2044
        %2076 = vmatpush1.bf16.msra.mxu0 %v2043
        %2077 = vmatprep.subr.bf16.mxu0 %v2046
        %2078 = vmatpush1.bf16.msra.mxu0 %v2045
        %2079 = vmatprep.subr.bf16.mxu0 %v2048
        %2080 = vmatpush1.bf16.msra.mxu0 %v2047
        %2081 = vmatprep.subr.bf16.mxu0 %v2050
        %2082 = vmatpush1.bf16.msra.mxu0 %v2049
        %2083 = vmatprep.subr.bf16.mxu0 %v2052
        %2084 = vmatpush1.bf16.msra.mxu0 %v2051
        %2085 = vmatprep.subr.bf16.mxu0 %v2054
        %2086 = vmatpush1.bf16.msra.mxu0 %v2053
        %2087 = vmatprep.subr.bf16.mxu0 0
        %2088 = vmatpush1.bf16.msra.mxu0 0
        %2089 = vmatprep.subr.bf16.mxu0 0
        %2090 = vmatpush1.bf16.msra.mxu0 0
        %2091 = vmatprep.subr.bf16.mxu0 0
        %2092 = vmatpush1.bf16.msra.mxu0 0
        %2093 = vmatprep.subr.bf16.mxu0 0
        %2094 = vmatpush1.bf16.msra.mxu0 0
        %2095 = vmatprep.subr.bf16.mxu0 0
        %2096 = vmatpush1.bf16.msra.mxu0 0
        %2097 = vmatprep.subr.bf16.mxu0 0
        %2098 = vmatpush1.bf16.msra.mxu0 0
        %2099 = vmatprep.subr.bf16.mxu0 0
        %2100 = vmatpush1.bf16.msra.mxu0 0
        %2101 = vmatprep.subr.bf16.mxu0 0
        %2102 = vmatpush1.bf16.msra.mxu0 0
        %2103 = vmatprep.mubr.bf16.mxu0 0
        %2104 = vmatmul.mubr.bf16.gmra.mrb[0].mxu0 %v1973
        %v2105 = vpop.f32.mrb[0].mxu0
        %v2106 = vadd.f32 0.0, %v2105
        %v2107 = vpop.f32.mrb[0].mxu0
        %v2108 = vadd.f32 0.0, %v2107
        %v2109 = vpop.f32.mrb[0].mxu0
        %v2110 = vadd.f32 0.0, %v2109
        %v2111 = vpop.f32.mrb[0].mxu0
        %v2112 = vadd.f32 0.0, %v2111
        %2113 = vdwg.mxu0
        %v2114 = vadd.f32 %v2106, %v1516
        %v2115 = vadd.f32 %v2110, %v1517
        %2116 = vst [vmem:[#allocation2 + $0x10] sm:$0xff] %v2114
        %2117 = vst [vmem:[#allocation2 + $0x18] sm:$0xff] %v2115
        %v2118 = vld [vmem:[%s232] sm:$0xff]
        %v2119 = vld [vmem:[%s232 + $0x8] sm:$0xff]
        %v2120 = vadd.f32 %v2118, %v2108
        %v2121 = vadd.f32 %v2119, %v2112
        %2122 = vst [vmem:[%s232] sm:$0xff] %v2120
        %2123 = vst [vmem:[%s232 + $0x8] sm:$0xff] %v2121
        %v2124 = vld [vmem:[#allocation2 + $0x6] sm:$0xff]
        %v2125 = vld [vmem:[#allocation2 + $0xe] sm:$0xff]
        %v2126 = vpack.c.bf16 %v2125, %v2124
        %s2127 = scalar_lea.vmem [#allocation6], 1280
        %v2128 = vld [vmem:[%s2127] sm:$0xff]
        %v2129 = vld [vmem:[%s2127 + $0x8] sm:$0xff]
        %v2130 = vld [vmem:[%s2127 + $0x10] sm:$0xff]
        %v2131 = vld [vmem:[%s2127 + $0x18] sm:$0xff]
        %v2132 = vld [vmem:[%s2127 + $0x20] sm:$0xff]
        %v2133 = vld [vmem:[%s2127 + $0x28] sm:$0xff]
        %v2134 = vld [vmem:[%s2127 + $0x30] sm:$0xff]
        %v2135 = vld [vmem:[%s2127 + $0x38] sm:$0xff]
        %v2136 = vld [vmem:[%s2127 + $0x40] sm:$0xff]
        %v2137 = vld [vmem:[%s2127 + $0x48] sm:$0xff]
        %v2138 = vld [vmem:[%s2127 + $0x50] sm:$0xff]
        %v2139 = vld [vmem:[%s2127 + $0x58] sm:$0xff]
        %v2140 = vld [vmem:[%s2127 + $0x60] sm:$0xff]
        %v2141 = vld [vmem:[%s2127 + $0x68] sm:$0xff]
        %v2142 = vld [vmem:[%s2127 + $0x70] sm:$0xff]
        %v2143 = vld [vmem:[%s2127 + $0x78] sm:$0xff]
        %v2144 = vld [vmem:[#allocation2 + $0xb] sm:$0xff]
        %v2145 = vld [vmem:[#allocation2 + $0x13] sm:$0xff]
        %v2146 = vpack.c.bf16 %v2145, %v2144
        %s2147 = scalar_lea.vmem [#allocation6], 1408
        %v2148 = vld [vmem:[%s2147] sm:$0xff]
        %v2149 = vld [vmem:[%s2147 + $0x8] sm:$0xff]
        %v2150 = vld [vmem:[%s2147 + $0x10] sm:$0xff]
        %v2151 = vld [vmem:[%s2147 + $0x18] sm:$0xff]
        %v2152 = vld [vmem:[%s2147 + $0x20] sm:$0xff]
        %v2153 = vld [vmem:[%s2147 + $0x28] sm:$0xff]
        %v2154 = vld [vmem:[%s2147 + $0x30] sm:$0xff]
        %v2155 = vld [vmem:[%s2147 + $0x38] sm:$0xff]
        %v2156 = vld [vmem:[%s2147 + $0x40] sm:$0xff]
        %v2157 = vld [vmem:[%s2147 + $0x48] sm:$0xff]
        %v2158 = vld [vmem:[%s2147 + $0x50] sm:$0xff]
        %v2159 = vld [vmem:[%s2147 + $0x58] sm:$0xff]
        %v2160 = vld [vmem:[%s2147 + $0x60] sm:$0xff]
        %v2161 = vld [vmem:[%s2147 + $0x68] sm:$0xff]
        %v2162 = vld [vmem:[%s2147 + $0x70] sm:$0xff]
        %v2163 = vld [vmem:[%s2147 + $0x78] sm:$0xff]
        %v2180 = vunpack.c.l.b16 %v2148
        %v2181 = vunpack.c.h.b16 %v2148
        %v2182 = vunpack.c.l.b16 %v2149
        %v2183 = vunpack.c.h.b16 %v2149
        %v2184 = vunpack.c.l.b16 %v2150
        %v2185 = vunpack.c.h.b16 %v2150
        %v2186 = vunpack.c.l.b16 %v2151
        %v2187 = vunpack.c.h.b16 %v2151
        %v2188 = vunpack.c.l.b16 %v2152
        %v2189 = vunpack.c.h.b16 %v2152
        %v2190 = vunpack.c.l.b16 %v2153
        %v2191 = vunpack.c.h.b16 %v2153
        %v2192 = vunpack.c.l.b16 %v2154
        %v2193 = vunpack.c.h.b16 %v2154
        %v2194 = vunpack.c.l.b16 %v2155
        %v2195 = vunpack.c.h.b16 %v2155
        %v2196 = vunpack.c.l.b16 %v2156
        %v2197 = vunpack.c.h.b16 %v2156
        %v2198 = vunpack.c.l.b16 %v2157
        %v2199 = vunpack.c.h.b16 %v2157
        %v2200 = vunpack.c.l.b16 %v2158
        %v2201 = vunpack.c.h.b16 %v2158
        %v2202 = vunpack.c.l.b16 %v2159
        %v2203 = vunpack.c.h.b16 %v2159
        %v2204 = vunpack.c.l.b16 %v2160
        %v2205 = vunpack.c.h.b16 %v2160
        %v2206 = vunpack.c.l.b16 %v2161
        %v2207 = vunpack.c.h.b16 %v2161
        %v2208 = vunpack.c.l.b16 %v2162
        %v2209 = vunpack.c.h.b16 %v2162
        %v2210 = vunpack.c.l.b16 %v2163
        %v2211 = vunpack.c.h.b16 %v2163
        %v2212 = vpack.c.b16 %v2182, %v2180
        %v2213 = vpack.c.b16 %v2183, %v2181
        %v2214 = vpack.c.b16 %v2186, %v2184
        %v2215 = vpack.c.b16 %v2187, %v2185
        %v2216 = vpack.c.b16 %v2190, %v2188
        %v2217 = vpack.c.b16 %v2191, %v2189
        %v2218 = vpack.c.b16 %v2194, %v2192
        %v2219 = vpack.c.b16 %v2195, %v2193
        %v2220 = vpack.c.b16 %v2198, %v2196
        %v2221 = vpack.c.b16 %v2199, %v2197
        %v2222 = vpack.c.b16 %v2202, %v2200
        %v2223 = vpack.c.b16 %v2203, %v2201
        %v2224 = vpack.c.b16 %v2206, %v2204
        %v2225 = vpack.c.b16 %v2207, %v2205
        %v2226 = vpack.c.b16 %v2210, %v2208
        %v2227 = vpack.c.b16 %v2211, %v2209
        %2244 = vmatprep.subr.bf16.mxu0 %v2213
        %2245 = vmatpush1.bf16.msra.mxu0 %v2212
        %2246 = vmatprep.subr.bf16.mxu0 %v2215
        %2247 = vmatpush1.bf16.msra.mxu0 %v2214
        %2248 = vmatprep.subr.bf16.mxu0 %v2217
        %2249 = vmatpush1.bf16.msra.mxu0 %v2216
        %2250 = vmatprep.subr.bf16.mxu0 %v2219
        %2251 = vmatpush1.bf16.msra.mxu0 %v2218
        %2252 = vmatprep.subr.bf16.mxu0 %v2221
        %2253 = vmatpush1.bf16.msra.mxu0 %v2220
        %2254 = vmatprep.subr.bf16.mxu0 %v2223
        %2255 = vmatpush1.bf16.msra.mxu0 %v2222
        %2256 = vmatprep.subr.bf16.mxu0 %v2225
        %2257 = vmatpush1.bf16.msra.mxu0 %v2224
        %2258 = vmatprep.subr.bf16.mxu0 %v2227
        %2259 = vmatpush1.bf16.msra.mxu0 %v2226
        %2260 = vmatprep.subr.bf16.mxu0 0
        %2261 = vmatpush1.bf16.msra.mxu0 0
        %2262 = vmatprep.subr.bf16.mxu0 0
        %2263 = vmatpush1.bf16.msra.mxu0 0
        %2264 = vmatprep.subr.bf16.mxu0 0
        %2265 = vmatpush1.bf16.msra.mxu0 0
        %2266 = vmatprep.subr.bf16.mxu0 0
        %2267 = vmatpush1.bf16.msra.mxu0 0
        %2268 = vmatprep.subr.bf16.mxu0 0
        %2269 = vmatpush1.bf16.msra.mxu0 0
        %2270 = vmatprep.subr.bf16.mxu0 0
        %2271 = vmatpush1.bf16.msra.mxu0 0
        %2272 = vmatprep.subr.bf16.mxu0 0
        %2273 = vmatpush1.bf16.msra.mxu0 0
        %2274 = vmatprep.subr.bf16.mxu0 0
        %2275 = vmatpush1.bf16.msra.mxu0 0
        %2276 = vmatprep.mubr.bf16.mxu0 0
        %2277 = vmatmul.mubr.bf16.gmra.mrb[0].mxu0 %v2146
        %v2278 = vpop.f32.mrb[0].mxu0
        %v2279 = vadd.f32 0.0, %v2278
        %v2280 = vpop.f32.mrb[0].mxu0
        %v2281 = vadd.f32 0.0, %v2280
        %v2282 = vpop.f32.mrb[0].mxu0
        %v2283 = vadd.f32 0.0, %v2282
        %v2284 = vpop.f32.mrb[0].mxu0
        %v2285 = vadd.f32 0.0, %v2284
        %2286 = vdwg.mxu0
        %v2303 = vunpack.c.l.b16 %v2128
        %v2304 = vunpack.c.h.b16 %v2128
        %v2305 = vunpack.c.l.b16 %v2129
        %v2306 = vunpack.c.h.b16 %v2129
        %v2307 = vunpack.c.l.b16 %v2130
        %v2308 = vunpack.c.h.b16 %v2130
        %v2309 = vunpack.c.l.b16 %v2131
        %v2310 = vunpack.c.h.b16 %v2131
        %v2311 = vunpack.c.l.b16 %v2132
        %v2312 = vunpack.c.h.b16 %v2132
        %v2313 = vunpack.c.l.b16 %v2133
        %v2314 = vunpack.c.h.b16 %v2133
        %v2315 = vunpack.c.l.b16 %v2134
        %v2316 = vunpack.c.h.b16 %v2134
        %v2317 = vunpack.c.l.b16 %v2135
        %v2318 = vunpack.c.h.b16 %v2135
        %v2319 = vunpack.c.l.b16 %v2136
        %v2320 = vunpack.c.h.b16 %v2136
        %v2321 = vunpack.c.l.b16 %v2137
        %v2322 = vunpack.c.h.b16 %v2137
        %v2323 = vunpack.c.l.b16 %v2138
        %v2324 = vunpack.c.h.b16 %v2138
        %v2325 = vunpack.c.l.b16 %v2139
        %v2326 = vunpack.c.h.b16 %v2139
        %v2327 = vunpack.c.l.b16 %v2140
        %v2328 = vunpack.c.h.b16 %v2140
        %v2329 = vunpack.c.l.b16 %v2141
        %v2330 = vunpack.c.h.b16 %v2141
        %v2331 = vunpack.c.l.b16 %v2142
        %v2332 = vunpack.c.h.b16 %v2142
        %v2333 = vunpack.c.l.b16 %v2143
        %v2334 = vunpack.c.h.b16 %v2143
        %v2335 = vpack.c.b16 %v2305, %v2303
        %v2336 = vpack.c.b16 %v2306, %v2304
        %v2337 = vpack.c.b16 %v2309, %v2307
        %v2338 = vpack.c.b16 %v2310, %v2308
        %v2339 = vpack.c.b16 %v2313, %v2311
        %v2340 = vpack.c.b16 %v2314, %v2312
        %v2341 = vpack.c.b16 %v2317, %v2315
        %v2342 = vpack.c.b16 %v2318, %v2316
        %v2343 = vpack.c.b16 %v2321, %v2319
        %v2344 = vpack.c.b16 %v2322, %v2320
        %v2345 = vpack.c.b16 %v2325, %v2323
        %v2346 = vpack.c.b16 %v2326, %v2324
        %v2347 = vpack.c.b16 %v2329, %v2327
        %v2348 = vpack.c.b16 %v2330, %v2328
        %v2349 = vpack.c.b16 %v2333, %v2331
        %v2350 = vpack.c.b16 %v2334, %v2332
        %2367 = vmatprep.subr.bf16.mxu0 %v2336
        %2368 = vmatpush1.bf16.msra.mxu0 %v2335
        %2369 = vmatprep.subr.bf16.mxu0 %v2338
        %2370 = vmatpush1.bf16.msra.mxu0 %v2337
        %2371 = vmatprep.subr.bf16.mxu0 %v2340
        %2372 = vmatpush1.bf16.msra.mxu0 %v2339
        %2373 = vmatprep.subr.bf16.mxu0 %v2342
        %2374 = vmatpush1.bf16.msra.mxu0 %v2341
        %2375 = vmatprep.subr.bf16.mxu0 %v2344
        %2376 = vmatpush1.bf16.msra.mxu0 %v2343
        %2377 = vmatprep.subr.bf16.mxu0 %v2346
        %2378 = vmatpush1.bf16.msra.mxu0 %v2345
        %2379 = vmatprep.subr.bf16.mxu0 %v2348
        %2380 = vmatpush1.bf16.msra.mxu0 %v2347
        %2381 = vmatprep.subr.bf16.mxu0 %v2350
        %2382 = vmatpush1.bf16.msra.mxu0 %v2349
        %2383 = vmatprep.subr.bf16.mxu0 0
        %2384 = vmatpush1.bf16.msra.mxu0 0
        %2385 = vmatprep.subr.bf16.mxu0 0
        %2386 = vmatpush1.bf16.msra.mxu0 0
        %2387 = vmatprep.subr.bf16.mxu0 0
        %2388 = vmatpush1.bf16.msra.mxu0 0
        %2389 = vmatprep.subr.bf16.mxu0 0
        %2390 = vmatpush1.bf16.msra.mxu0 0
        %2391 = vmatprep.subr.bf16.mxu0 0
        %2392 = vmatpush1.bf16.msra.mxu0 0
        %2393 = vmatprep.subr.bf16.mxu0 0
        %2394 = vmatpush1.bf16.msra.mxu0 0
        %2395 = vmatprep.subr.bf16.mxu0 0
        %2396 = vmatpush1.bf16.msra.mxu0 0
        %2397 = vmatprep.subr.bf16.mxu0 0
        %2398 = vmatpush1.bf16.msra.mxu0 0
        %2399 = vmatprep.mubr.bf16.mxu0 0
        %2400 = vmatmul.mubr.bf16.gmra.mrb[0].mxu0 %v2126
        %v2401 = vpop.f32.mrb[0].mxu0
        %v2402 = vadd.f32 %v2279, %v2401
        %v2403 = vpop.f32.mrb[0].mxu0
        %v2404 = vadd.f32 %v2281, %v2403
        %v2405 = vpop.f32.mrb[0].mxu0
        %v2406 = vadd.f32 %v2283, %v2405
        %v2407 = vpop.f32.mrb[0].mxu0
        %v2408 = vadd.f32 %v2285, %v2407
        %2409 = vdwg.mxu0
        %v2410 = vld [vmem:[#allocation2 + $0x10] sm:$0xff]
        %v2411 = vld [vmem:[#allocation2 + $0x18] sm:$0xff]
        %v2412 = vpack.c.bf16 %v2411, %v2410
        %s2413 = scalar_lea.vmem [#allocation6], 1536
        %v2414 = vld [vmem:[%s2413] sm:$0xff]
        %v2415 = vld [vmem:[%s2413 + $0x8] sm:$0xff]
        %v2416 = vld [vmem:[%s2413 + $0x10] sm:$0xff]
        %v2417 = vld [vmem:[%s2413 + $0x18] sm:$0xff]
        %v2418 = vld [vmem:[%s2413 + $0x20] sm:$0xff]
        %v2419 = vld [vmem:[%s2413 + $0x28] sm:$0xff]
        %v2420 = vld [vmem:[%s2413 + $0x30] sm:$0xff]
        %v2421 = vld [vmem:[%s2413 + $0x38] sm:$0xff]
        %v2422 = vld [vmem:[%s2413 + $0x40] sm:$0xff]
        %v2423 = vld [vmem:[%s2413 + $0x48] sm:$0xff]
        %v2424 = vld [vmem:[%s2413 + $0x50] sm:$0xff]
        %v2425 = vld [vmem:[%s2413 + $0x58] sm:$0xff]
        %v2426 = vld [vmem:[%s2413 + $0x60] sm:$0xff]
        %v2427 = vld [vmem:[%s2413 + $0x68] sm:$0xff]
        %v2428 = vld [vmem:[%s2413 + $0x70] sm:$0xff]
        %v2429 = vld [vmem:[%s2413 + $0x78] sm:$0xff]
        %v2446 = vunpack.c.l.b16 %v2414
        %v2447 = vunpack.c.h.b16 %v2414
        %v2448 = vunpack.c.l.b16 %v2415
        %v2449 = vunpack.c.h.b16 %v2415
        %v2450 = vunpack.c.l.b16 %v2416
        %v2451 = vunpack.c.h.b16 %v2416
        %v2452 = vunpack.c.l.b16 %v2417
        %v2453 = vunpack.c.h.b16 %v2417
        %v2454 = vunpack.c.l.b16 %v2418
        %v2455 = vunpack.c.h.b16 %v2418
        %v2456 = vunpack.c.l.b16 %v2419
        %v2457 = vunpack.c.h.b16 %v2419
        %v2458 = vunpack.c.l.b16 %v2420
        %v2459 = vunpack.c.h.b16 %v2420
        %v2460 = vunpack.c.l.b16 %v2421
        %v2461 = vunpack.c.h.b16 %v2421
        %v2462 = vunpack.c.l.b16 %v2422
        %v2463 = vunpack.c.h.b16 %v2422
        %v2464 = vunpack.c.l.b16 %v2423
        %v2465 = vunpack.c.h.b16 %v2423
        %v2466 = vunpack.c.l.b16 %v2424
        %v2467 = vunpack.c.h.b16 %v2424
        %v2468 = vunpack.c.l.b16 %v2425
        %v2469 = vunpack.c.h.b16 %v2425
        %v2470 = vunpack.c.l.b16 %v2426
        %v2471 = vunpack.c.h.b16 %v2426
        %v2472 = vunpack.c.l.b16 %v2427
        %v2473 = vunpack.c.h.b16 %v2427
        %v2474 = vunpack.c.l.b16 %v2428
        %v2475 = vunpack.c.h.b16 %v2428
        %v2476 = vunpack.c.l.b16 %v2429
        %v2477 = vunpack.c.h.b16 %v2429
        %v2478 = vpack.c.b16 %v2448, %v2446
        %v2479 = vpack.c.b16 %v2449, %v2447
        %v2480 = vpack.c.b16 %v2452, %v2450
        %v2481 = vpack.c.b16 %v2453, %v2451
        %v2482 = vpack.c.b16 %v2456, %v2454
        %v2483 = vpack.c.b16 %v2457, %v2455
        %v2484 = vpack.c.b16 %v2460, %v2458
        %v2485 = vpack.c.b16 %v2461, %v2459
        %v2486 = vpack.c.b16 %v2464, %v2462
        %v2487 = vpack.c.b16 %v2465, %v2463
        %v2488 = vpack.c.b16 %v2468, %v2466
        %v2489 = vpack.c.b16 %v2469, %v2467
        %v2490 = vpack.c.b16 %v2472, %v2470
        %v2491 = vpack.c.b16 %v2473, %v2471
        %v2492 = vpack.c.b16 %v2476, %v2474
        %v2493 = vpack.c.b16 %v2477, %v2475
        %2510 = vmatprep.subr.bf16.mxu0 %v2479
        %2511 = vmatpush1.bf16.msra.mxu0 %v2478
        %2512 = vmatprep.subr.bf16.mxu0 %v2481
        %2513 = vmatpush1.bf16.msra.mxu0 %v2480
        %2514 = vmatprep.subr.bf16.mxu0 %v2483
        %2515 = vmatpush1.bf16.msra.mxu0 %v2482
        %2516 = vmatprep.subr.bf16.mxu0 %v2485
        %2517 = vmatpush1.bf16.msra.mxu0 %v2484
        %2518 = vmatprep.subr.bf16.mxu0 %v2487
        %2519 = vmatpush1.bf16.msra.mxu0 %v2486
        %2520 = vmatprep.subr.bf16.mxu0 %v2489
        %2521 = vmatpush1.bf16.msra.mxu0 %v2488
        %2522 = vmatprep.subr.bf16.mxu0 %v2491
        %2523 = vmatpush1.bf16.msra.mxu0 %v2490
        %2524 = vmatprep.subr.bf16.mxu0 %v2493
        %2525 = vmatpush1.bf16.msra.mxu0 %v2492
        %2526 = vmatprep.subr.bf16.mxu0 0
        %2527 = vmatpush1.bf16.msra.mxu0 0
        %2528 = vmatprep.subr.bf16.mxu0 0
        %2529 = vmatpush1.bf16.msra.mxu0 0
        %2530 = vmatprep.subr.bf16.mxu0 0
        %2531 = vmatpush1.bf16.msra.mxu0 0
        %2532 = vmatprep.subr.bf16.mxu0 0
        %2533 = vmatpush1.bf16.msra.mxu0 0
        %2534 = vmatprep.subr.bf16.mxu0 0
        %2535 = vmatpush1.bf16.msra.mxu0 0
        %2536 = vmatprep.subr.bf16.mxu0 0
        %2537 = vmatpush1.bf16.msra.mxu0 0
        %2538 = vmatprep.subr.bf16.mxu0 0
        %2539 = vmatpush1.bf16.msra.mxu0 0
        %2540 = vmatprep.subr.bf16.mxu0 0
        %2541 = vmatpush1.bf16.msra.mxu0 0
        %2542 = vmatprep.mubr.bf16.mxu0 0
        %2543 = vmatmul.mubr.bf16.gmra.mrb[0].mxu0 %v2412
        %v2544 = vpop.f32.mrb[0].mxu0
        %v2545 = vadd.f32 0.0, %v2544
        %v2546 = vpop.f32.mrb[0].mxu0
        %v2547 = vadd.f32 0.0, %v2546
        %v2548 = vpop.f32.mrb[0].mxu0
        %v2549 = vadd.f32 0.0, %v2548
        %v2550 = vpop.f32.mrb[0].mxu0
        %v2551 = vadd.f32 0.0, %v2550
        %2552 = vdwg.mxu0
        %v2553 = vadd.f32 %v2402, %v2545
        %v2554 = vadd.f32 %v2404, %v2547
        %v2555 = vadd.f32 %v2406, %v2549
        %v2556 = vadd.f32 %v2408, %v2551
        %v2557 = vld [vmem:[#allocation2 + $0x15] sm:$0xff]
        %v2558 = vld [vmem:[#allocation2 + $0x1d] sm:$0xff]
        %v2559 = vpack.c.bf16 %v2558, %v2557
        %s2560 = scalar_lea.vmem [#allocation6], 1664
        %v2561 = vld [vmem:[%s2560] sm:$0xff]
        %v2562 = vld [vmem:[%s2560 + $0x8] sm:$0xff]
        %v2563 = vld [vmem:[%s2560 + $0x10] sm:$0xff]
        %v2564 = vld [vmem:[%s2560 + $0x18] sm:$0xff]
        %v2565 = vld [vmem:[%s2560 + $0x20] sm:$0xff]
        %v2566 = vld [vmem:[%s2560 + $0x28] sm:$0xff]
        %v2567 = vld [vmem:[%s2560 + $0x30] sm:$0xff]
        %v2568 = vld [vmem:[%s2560 + $0x38] sm:$0xff]
        %v2569 = vld [vmem:[%s2560 + $0x40] sm:$0xff]
        %v2570 = vld [vmem:[%s2560 + $0x48] sm:$0xff]
        %v2571 = vld [vmem:[%s2560 + $0x50] sm:$0xff]
        %v2572 = vld [vmem:[%s2560 + $0x58] sm:$0xff]
        %v2573 = vld [vmem:[%s2560 + $0x60] sm:$0xff]
        %v2574 = vld [vmem:[%s2560 + $0x68] sm:$0xff]
        %v2575 = vld [vmem:[%s2560 + $0x70] sm:$0xff]
        %v2576 = vld [vmem:[%s2560 + $0x78] sm:$0xff]
        %v2593 = vunpack.c.l.b16 %v2561
        %v2594 = vunpack.c.h.b16 %v2561
        %v2595 = vunpack.c.l.b16 %v2562
        %v2596 = vunpack.c.h.b16 %v2562
        %v2597 = vunpack.c.l.b16 %v2563
        %v2598 = vunpack.c.h.b16 %v2563
        %v2599 = vunpack.c.l.b16 %v2564
        %v2600 = vunpack.c.h.b16 %v2564
        %v2601 = vunpack.c.l.b16 %v2565
        %v2602 = vunpack.c.h.b16 %v2565
        %v2603 = vunpack.c.l.b16 %v2566
        %v2604 = vunpack.c.h.b16 %v2566
        %v2605 = vunpack.c.l.b16 %v2567
        %v2606 = vunpack.c.h.b16 %v2567
        %v2607 = vunpack.c.l.b16 %v2568
        %v2608 = vunpack.c.h.b16 %v2568
        %v2609 = vunpack.c.l.b16 %v2569
        %v2610 = vunpack.c.h.b16 %v2569
        %v2611 = vunpack.c.l.b16 %v2570
        %v2612 = vunpack.c.h.b16 %v2570
        %v2613 = vunpack.c.l.b16 %v2571
        %v2614 = vunpack.c.h.b16 %v2571
        %v2615 = vunpack.c.l.b16 %v2572
        %v2616 = vunpack.c.h.b16 %v2572
        %v2617 = vunpack.c.l.b16 %v2573
        %v2618 = vunpack.c.h.b16 %v2573
        %v2619 = vunpack.c.l.b16 %v2574
        %v2620 = vunpack.c.h.b16 %v2574
        %v2621 = vunpack.c.l.b16 %v2575
        %v2622 = vunpack.c.h.b16 %v2575
        %v2623 = vunpack.c.l.b16 %v2576
        %v2624 = vunpack.c.h.b16 %v2576
        %v2625 = vpack.c.b16 %v2595, %v2593
        %v2626 = vpack.c.b16 %v2596, %v2594
        %v2627 = vpack.c.b16 %v2599, %v2597
        %v2628 = vpack.c.b16 %v2600, %v2598
        %v2629 = vpack.c.b16 %v2603, %v2601
        %v2630 = vpack.c.b16 %v2604, %v2602
        %v2631 = vpack.c.b16 %v2607, %v2605
        %v2632 = vpack.c.b16 %v2608, %v2606
        %v2633 = vpack.c.b16 %v2611, %v2609
        %v2634 = vpack.c.b16 %v2612, %v2610
        %v2635 = vpack.c.b16 %v2615, %v2613
        %v2636 = vpack.c.b16 %v2616, %v2614
        %v2637 = vpack.c.b16 %v2619, %v2617
        %v2638 = vpack.c.b16 %v2620, %v2618
        %v2639 = vpack.c.b16 %v2623, %v2621
        %v2640 = vpack.c.b16 %v2624, %v2622
        %2657 = vmatprep.subr.bf16.mxu0 %v2626
        %2658 = vmatpush1.bf16.msra.mxu0 %v2625
        %2659 = vmatprep.subr.bf16.mxu0 %v2628
        %2660 = vmatpush1.bf16.msra.mxu0 %v2627
        %2661 = vmatprep.subr.bf16.mxu0 %v2630
        %2662 = vmatpush1.bf16.msra.mxu0 %v2629
        %2663 = vmatprep.subr.bf16.mxu0 %v2632
        %2664 = vmatpush1.bf16.msra.mxu0 %v2631
        %2665 = vmatprep.subr.bf16.mxu0 %v2634
        %2666 = vmatpush1.bf16.msra.mxu0 %v2633
        %2667 = vmatprep.subr.bf16.mxu0 %v2636
        %2668 = vmatpush1.bf16.msra.mxu0 %v2635
        %2669 = vmatprep.subr.bf16.mxu0 %v2638
        %2670 = vmatpush1.bf16.msra.mxu0 %v2637
        %2671 = vmatprep.subr.bf16.mxu0 %v2640
        %2672 = vmatpush1.bf16.msra.mxu0 %v2639
        %2673 = vmatprep.subr.bf16.mxu0 0
        %2674 = vmatpush1.bf16.msra.mxu0 0
        %2675 = vmatprep.subr.bf16.mxu0 0
        %2676 = vmatpush1.bf16.msra.mxu0 0
        %2677 = vmatprep.subr.bf16.mxu0 0
        %2678 = vmatpush1.bf16.msra.mxu0 0
        %2679 = vmatprep.subr.bf16.mxu0 0
        %2680 = vmatpush1.bf16.msra.mxu0 0
        %2681 = vmatprep.subr.bf16.mxu0 0
        %2682 = vmatpush1.bf16.msra.mxu0 0
        %2683 = vmatprep.subr.bf16.mxu0 0
        %2684 = vmatpush1.bf16.msra.mxu0 0
        %2685 = vmatprep.subr.bf16.mxu0 0
        %2686 = vmatpush1.bf16.msra.mxu0 0
        %2687 = vmatprep.subr.bf16.mxu0 0
        %2688 = vmatpush1.bf16.msra.mxu0 0
        %2689 = vmatprep.mubr.bf16.mxu0 0
        %2690 = vmatmul.mubr.bf16.gmra.mrb[0].mxu0 %v2559
        %v2691 = vpop.f32.mrb[0].mxu0
        %v2692 = vadd.f32 0.0, %v2691
        %v2693 = vpop.f32.mrb[0].mxu0
        %v2694 = vadd.f32 0.0, %v2693
        %v2695 = vpop.f32.mrb[0].mxu0
        %v2696 = vadd.f32 0.0, %v2695
        %v2697 = vpop.f32.mrb[0].mxu0
        %v2698 = vadd.f32 0.0, %v2697
        %2699 = vdwg.mxu0
        %v2700 = vadd.f32 %v2553, %v2692
        %v2701 = vadd.f32 %v2554, %v2694
        %v2702 = vadd.f32 %v2555, %v2696
        %v2703 = vadd.f32 %v2556, %v2698
        %v2704 = vld [vmem:[#allocation2 + $0x1a] sm:$0xff]
        %v2705 = vld [vmem:[#allocation2 + $0x22] sm:$0xff]
        %v2706 = vpack.c.bf16 %v2705, %v2704
        %s2707 = scalar_lea.vmem [#allocation6], 1792
        %v2708 = vld [vmem:[%s2707] sm:$0xff]
        %v2709 = vld [vmem:[%s2707 + $0x8] sm:$0xff]
        %v2710 = vld [vmem:[%s2707 + $0x10] sm:$0xff]
        %v2711 = vld [vmem:[%s2707 + $0x18] sm:$0xff]
        %v2712 = vld [vmem:[%s2707 + $0x20] sm:$0xff]
        %v2713 = vld [vmem:[%s2707 + $0x28] sm:$0xff]
        %v2714 = vld [vmem:[%s2707 + $0x30] sm:$0xff]
        %v2715 = vld [vmem:[%s2707 + $0x38] sm:$0xff]
        %v2716 = vld [vmem:[%s2707 + $0x40] sm:$0xff]
        %v2717 = vld [vmem:[%s2707 + $0x48] sm:$0xff]
        %v2718 = vld [vmem:[%s2707 + $0x50] sm:$0xff]
        %v2719 = vld [vmem:[%s2707 + $0x58] sm:$0xff]
        %v2720 = vld [vmem:[%s2707 + $0x60] sm:$0xff]
        %v2721 = vld [vmem:[%s2707 + $0x68] sm:$0xff]
        %v2722 = vld [vmem:[%s2707 + $0x70] sm:$0xff]
        %v2723 = vld [vmem:[%s2707 + $0x78] sm:$0xff]
        %v2740 = vunpack.c.l.b16 %v2708
        %v2741 = vunpack.c.h.b16 %v2708
        %v2742 = vunpack.c.l.b16 %v2709
        %v2743 = vunpack.c.h.b16 %v2709
        %v2744 = vunpack.c.l.b16 %v2710
        %v2745 = vunpack.c.h.b16 %v2710
        %v2746 = vunpack.c.l.b16 %v2711
        %v2747 = vunpack.c.h.b16 %v2711
        %v2748 = vunpack.c.l.b16 %v2712
        %v2749 = vunpack.c.h.b16 %v2712
        %v2750 = vunpack.c.l.b16 %v2713
        %v2751 = vunpack.c.h.b16 %v2713
        %v2752 = vunpack.c.l.b16 %v2714
        %v2753 = vunpack.c.h.b16 %v2714
        %v2754 = vunpack.c.l.b16 %v2715
        %v2755 = vunpack.c.h.b16 %v2715
        %v2756 = vunpack.c.l.b16 %v2716
        %v2757 = vunpack.c.h.b16 %v2716
        %v2758 = vunpack.c.l.b16 %v2717
        %v2759 = vunpack.c.h.b16 %v2717
        %v2760 = vunpack.c.l.b16 %v2718
        %v2761 = vunpack.c.h.b16 %v2718
        %v2762 = vunpack.c.l.b16 %v2719
        %v2763 = vunpack.c.h.b16 %v2719
        %v2764 = vunpack.c.l.b16 %v2720
        %v2765 = vunpack.c.h.b16 %v2720
        %v2766 = vunpack.c.l.b16 %v2721
        %v2767 = vunpack.c.h.b16 %v2721
        %v2768 = vunpack.c.l.b16 %v2722
        %v2769 = vunpack.c.h.b16 %v2722
        %v2770 = vunpack.c.l.b16 %v2723
        %v2771 = vunpack.c.h.b16 %v2723
        %v2772 = vpack.c.b16 %v2742, %v2740
        %v2773 = vpack.c.b16 %v2743, %v2741
        %v2774 = vpack.c.b16 %v2746, %v2744
        %v2775 = vpack.c.b16 %v2747, %v2745
        %v2776 = vpack.c.b16 %v2750, %v2748
        %v2777 = vpack.c.b16 %v2751, %v2749
        %v2778 = vpack.c.b16 %v2754, %v2752
        %v2779 = vpack.c.b16 %v2755, %v2753
        %v2780 = vpack.c.b16 %v2758, %v2756
        %v2781 = vpack.c.b16 %v2759, %v2757
        %v2782 = vpack.c.b16 %v2762, %v2760
        %v2783 = vpack.c.b16 %v2763, %v2761
        %v2784 = vpack.c.b16 %v2766, %v2764
        %v2785 = vpack.c.b16 %v2767, %v2765
        %v2786 = vpack.c.b16 %v2770, %v2768
        %v2787 = vpack.c.b16 %v2771, %v2769
        %2804 = vmatprep.subr.bf16.mxu0 %v2773
        %2805 = vmatpush1.bf16.msra.mxu0 %v2772
        %2806 = vmatprep.subr.bf16.mxu0 %v2775
        %2807 = vmatpush1.bf16.msra.mxu0 %v2774
        %2808 = vmatprep.subr.bf16.mxu0 %v2777
        %2809 = vmatpush1.bf16.msra.mxu0 %v2776
        %2810 = vmatprep.subr.bf16.mxu0 %v2779
        %2811 = vmatpush1.bf16.msra.mxu0 %v2778
        %2812 = vmatprep.subr.bf16.mxu0 %v2781
        %2813 = vmatpush1.bf16.msra.mxu0 %v2780
        %2814 = vmatprep.subr.bf16.mxu0 %v2783
        %2815 = vmatpush1.bf16.msra.mxu0 %v2782
        %2816 = vmatprep.subr.bf16.mxu0 %v2785
        %2817 = vmatpush1.bf16.msra.mxu0 %v2784
        %2818 = vmatprep.subr.bf16.mxu0 %v2787
        %2819 = vmatpush1.bf16.msra.mxu0 %v2786
        %2820 = vmatprep.subr.bf16.mxu0 0
        %2821 = vmatpush1.bf16.msra.mxu0 0
        %2822 = vmatprep.subr.bf16.mxu0 0
        %2823 = vmatpush1.bf16.msra.mxu0 0
        %2824 = vmatprep.subr.bf16.mxu0 0
        %2825 = vmatpush1.bf16.msra.mxu0 0
        %2826 = vmatprep.subr.bf16.mxu0 0
        %2827 = vmatpush1.bf16.msra.mxu0 0
        %2828 = vmatprep.subr.bf16.mxu0 0
        %2829 = vmatpush1.bf16.msra.mxu0 0
        %2830 = vmatprep.subr.bf16.mxu0 0
        %2831 = vmatpush1.bf16.msra.mxu0 0
        %2832 = vmatprep.subr.bf16.mxu0 0
        %2833 = vmatpush1.bf16.msra.mxu0 0
        %2834 = vmatprep.subr.bf16.mxu0 0
        %2835 = vmatpush1.bf16.msra.mxu0 0
        %2836 = vmatprep.mubr.bf16.mxu0 0
        %2837 = vmatmul.mubr.bf16.gmra.mrb[0].mxu0 %v2706
        %v2838 = vpop.f32.mrb[0].mxu0
        %v2839 = vadd.f32 0.0, %v2838
        %v2840 = vpop.f32.mrb[0].mxu0
        %v2841 = vadd.f32 0.0, %v2840
        %v2842 = vpop.f32.mrb[0].mxu0
        %v2843 = vadd.f32 0.0, %v2842
        %v2844 = vpop.f32.mrb[0].mxu0
        %v2845 = vadd.f32 0.0, %v2844
        %2846 = vdwg.mxu0
        %v2847 = vadd.f32 %v2700, %v2839
        %v2848 = vadd.f32 %v2701, %v2841
        %v2849 = vadd.f32 %v2702, %v2843
        %v2850 = vadd.f32 %v2703, %v2845
        %v2851 = vtanh.pop %v2847
        %v2852 = vtanh.pop %v2849
        %v2853 = vxor.u32 %v2848, 2147483648
        %v2854 = vxor.u32 %v2850, 2147483648
        %v2855 = vmul.f32 %v2853, 1.442695
        %v2856 = vpow.pop %v2855
        %v2857 = vmul.f32 %v2854, 1.442695
        %v2858 = vpow.pop %v2857
        %v2859 = vadd.f32 %v2856, 1.0
        %v2860 = vadd.f32 %v2858, 1.0
        %v2861 = vrcp.pop %v2859
        %v2862 = vmul.f32 1.0, %v2861
        %v2863 = vrcp.pop %v2860
        %v2864 = vmul.f32 1.0, %v2863
        %v2865 = vmul.f32 %v2851, %v2862
        %v2866 = vmul.f32 %v2852, %v2864
        %v2867 = vpack.c.bf16 %v2866, %v2865
        %s2868 = scalar_lea.vmem [#allocation8], 256
        %v2869 = vld [vmem:[%s2868] sm:$0xff]
        %v2870 = vld [vmem:[%s2868 + $0x8] sm:$0xff]
        %v2871 = vld [vmem:[%s2868 + $0x10] sm:$0xff]
        %v2872 = vld [vmem:[%s2868 + $0x18] sm:$0xff]
        %v2873 = vld [vmem:[%s2868 + $0x20] sm:$0xff]
        %v2874 = vld [vmem:[%s2868 + $0x28] sm:$0xff]
        %v2875 = vld [vmem:[%s2868 + $0x30] sm:$0xff]
        %v2876 = vld [vmem:[%s2868 + $0x38] sm:$0xff]
        %v2877 = vld [vmem:[%s2868 + $0x40] sm:$0xff]
        %v2878 = vld [vmem:[%s2868 + $0x48] sm:$0xff]
        %v2879 = vld [vmem:[%s2868 + $0x50] sm:$0xff]
        %v2880 = vld [vmem:[%s2868 + $0x58] sm:$0xff]
        %v2881 = vld [vmem:[%s2868 + $0x60] sm:$0xff]
        %v2882 = vld [vmem:[%s2868 + $0x68] sm:$0xff]
        %v2883 = vld [vmem:[%s2868 + $0x70] sm:$0xff]
        %v2884 = vld [vmem:[%s2868 + $0x78] sm:$0xff]
        %v2901 = vunpack.c.l.b16 %v2869
        %v2902 = vunpack.c.h.b16 %v2869
        %v2903 = vunpack.c.l.b16 %v2870
        %v2904 = vunpack.c.h.b16 %v2870
        %v2905 = vunpack.c.l.b16 %v2871
        %v2906 = vunpack.c.h.b16 %v2871
        %v2907 = vunpack.c.l.b16 %v2872
        %v2908 = vunpack.c.h.b16 %v2872
        %v2909 = vunpack.c.l.b16 %v2873
        %v2910 = vunpack.c.h.b16 %v2873
        %v2911 = vunpack.c.l.b16 %v2874
        %v2912 = vunpack.c.h.b16 %v2874
        %v2913 = vunpack.c.l.b16 %v2875
        %v2914 = vunpack.c.h.b16 %v2875
        %v2915 = vunpack.c.l.b16 %v2876
        %v2916 = vunpack.c.h.b16 %v2876
        %v2917 = vunpack.c.l.b16 %v2877
        %v2918 = vunpack.c.h.b16 %v2877
        %v2919 = vunpack.c.l.b16 %v2878
        %v2920 = vunpack.c.h.b16 %v2878
        %v2921 = vunpack.c.l.b16 %v2879
        %v2922 = vunpack.c.h.b16 %v2879
        %v2923 = vunpack.c.l.b16 %v2880
        %v2924 = vunpack.c.h.b16 %v2880
        %v2925 = vunpack.c.l.b16 %v2881
        %v2926 = vunpack.c.h.b16 %v2881
        %v2927 = vunpack.c.l.b16 %v2882
        %v2928 = vunpack.c.h.b16 %v2882
        %v2929 = vunpack.c.l.b16 %v2883
        %v2930 = vunpack.c.h.b16 %v2883
        %v2931 = vunpack.c.l.b16 %v2884
        %v2932 = vunpack.c.h.b16 %v2884
        %v2933 = vpack.c.b16 %v2903, %v2901
        %v2934 = vpack.c.b16 %v2904, %v2902
        %v2935 = vpack.c.b16 %v2907, %v2905
        %v2936 = vpack.c.b16 %v2908, %v2906
        %v2937 = vpack.c.b16 %v2911, %v2909
        %v2938 = vpack.c.b16 %v2912, %v2910
        %v2939 = vpack.c.b16 %v2915, %v2913
        %v2940 = vpack.c.b16 %v2916, %v2914
        %v2941 = vpack.c.b16 %v2919, %v2917
        %v2942 = vpack.c.b16 %v2920, %v2918
        %v2943 = vpack.c.b16 %v2923, %v2921
        %v2944 = vpack.c.b16 %v2924, %v2922
        %v2945 = vpack.c.b16 %v2927, %v2925
        %v2946 = vpack.c.b16 %v2928, %v2926
        %v2947 = vpack.c.b16 %v2931, %v2929
        %v2948 = vpack.c.b16 %v2932, %v2930
        %2965 = vmatprep.subr.bf16.mxu0 %v2934
        %2966 = vmatpush1.bf16.msra.mxu0 %v2933
        %2967 = vmatprep.subr.bf16.mxu0 %v2936
        %2968 = vmatpush1.bf16.msra.mxu0 %v2935
        %2969 = vmatprep.subr.bf16.mxu0 %v2938
        %2970 = vmatpush1.bf16.msra.mxu0 %v2937
        %2971 = vmatprep.subr.bf16.mxu0 %v2940
        %2972 = vmatpush1.bf16.msra.mxu0 %v2939
        %2973 = vmatprep.subr.bf16.mxu0 %v2942
        %2974 = vmatpush1.bf16.msra.mxu0 %v2941
        %2975 = vmatprep.subr.bf16.mxu0 %v2944
        %2976 = vmatpush1.bf16.msra.mxu0 %v2943
        %2977 = vmatprep.subr.bf16.mxu0 %v2946
        %2978 = vmatpush1.bf16.msra.mxu0 %v2945
        %2979 = vmatprep.subr.bf16.mxu0 %v2948
        %2980 = vmatpush1.bf16.msra.mxu0 %v2947
        %2981 = vmatprep.subr.bf16.mxu0 0
        %2982 = vmatpush1.bf16.msra.mxu0 0
        %2983 = vmatprep.subr.bf16.mxu0 0
        %2984 = vmatpush1.bf16.msra.mxu0 0
        %2985 = vmatprep.subr.bf16.mxu0 0
        %2986 = vmatpush1.bf16.msra.mxu0 0
        %2987 = vmatprep.subr.bf16.mxu0 0
        %2988 = vmatpush1.bf16.msra.mxu0 0
        %2989 = vmatprep.subr.bf16.mxu0 0
        %2990 = vmatpush1.bf16.msra.mxu0 0
        %2991 = vmatprep.subr.bf16.mxu0 0
        %2992 = vmatpush1.bf16.msra.mxu0 0
        %2993 = vmatprep.subr.bf16.mxu0 0
        %2994 = vmatpush1.bf16.msra.mxu0 0
        %2995 = vmatprep.subr.bf16.mxu0 0
        %2996 = vmatpush1.bf16.msra.mxu0 0
        %2997 = vmatprep.mubr.bf16.mxu0 0
        %2998 = vmatmul.mubr.bf16.gmra.mrb[0].mxu0 %v2867
        %v2999 = vpop.f32.mrb[0].mxu0
        %v3000 = vadd.f32 0.0, %v2999
        %v3001 = vpop.f32.mrb[0].mxu0
        %v3002 = vadd.f32 0.0, %v3001
        %v3003 = vpop.f32.mrb[0].mxu0
        %v3004 = vadd.f32 0.0, %v3003
        %v3005 = vpop.f32.mrb[0].mxu0
        %v3006 = vadd.f32 0.0, %v3005
        %3007 = vdwg.mxu0
        %v3008 = vadd.f32 %v3000, %v2410
        %v3009 = vadd.f32 %v3004, %v2411
        %3010 = vst [vmem:[#allocation2 + $0x10] sm:$0xff] %v3008
        %3011 = vst [vmem:[#allocation2 + $0x18] sm:$0xff] %v3009
        %v3012 = vld [vmem:[%s232] sm:$0xff]
        %v3013 = vld [vmem:[%s232 + $0x8] sm:$0xff]
        %v3014 = vadd.f32 %v3012, %v3002
        %v3015 = vadd.f32 %v3013, %v3006
        %3016 = vst [vmem:[%s232] sm:$0xff] %v3014
        %3017 = vst [vmem:[%s232 + $0x8] sm:$0xff] %v3015
        %v3018 = vld [vmem:[#allocation2 + $0xc] sm:$0xff]
        %v3019 = vld [vmem:[#allocation2 + $0x14] sm:$0xff]
        %v3020 = vpack.c.bf16 %v3019, %v3018
        %s3021 = scalar_lea.vmem [#allocation6], 1920
        %v3022 = vld [vmem:[%s3021] sm:$0xff]
        %v3023 = vld [vmem:[%s3021 + $0x8] sm:$0xff]
        %v3024 = vld [vmem:[%s3021 + $0x10] sm:$0xff]
        %v3025 = vld [vmem:[%s3021 + $0x18] sm:$0xff]
        %v3026 = vld [vmem:[%s3021 + $0x20] sm:$0xff]
        %v3027 = vld [vmem:[%s3021 + $0x28] sm:$0xff]
        %v3028 = vld [vmem:[%s3021 + $0x30] sm:$0xff]
        %v3029 = vld [vmem:[%s3021 + $0x38] sm:$0xff]
        %v3030 = vld [vmem:[%s3021 + $0x40] sm:$0xff]
        %v3031 = vld [vmem:[%s3021 + $0x48] sm:$0xff]
        %v3032 = vld [vmem:[%s3021 + $0x50] sm:$0xff]
        %v3033 = vld [vmem:[%s3021 + $0x58] sm:$0xff]
        %v3034 = vld [vmem:[%s3021 + $0x60] sm:$0xff]
        %v3035 = vld [vmem:[%s3021 + $0x68] sm:$0xff]
        %v3036 = vld [vmem:[%s3021 + $0x70] sm:$0xff]
        %v3037 = vld [vmem:[%s3021 + $0x78] sm:$0xff]
        %v3038 = vld [vmem:[#allocation2 + $0xe] sm:$0xff]
        %v3039 = vld [vmem:[#allocation2 + $0x16] sm:$0xff]
        %v3040 = vpack.c.bf16 %v3039, %v3038
        %s3041 = scalar_lea.vmem [#allocation6], 2048
        %v3042 = vld [vmem:[%s3041] sm:$0xff]
        %v3043 = vld [vmem:[%s3041 + $0x8] sm:$0xff]
        %v3044 = vld [vmem:[%s3041 + $0x10] sm:$0xff]
        %v3045 = vld [vmem:[%s3041 + $0x18] sm:$0xff]
        %v3046 = vld [vmem:[%s3041 + $0x20] sm:$0xff]
        %v3047 = vld [vmem:[%s3041 + $0x28] sm:$0xff]
        %v3048 = vld [vmem:[%s3041 + $0x30] sm:$0xff]
        %v3049 = vld [vmem:[%s3041 + $0x38] sm:$0xff]
        %v3050 = vld [vmem:[%s3041 + $0x40] sm:$0xff]
        %v3051 = vld [vmem:[%s3041 + $0x48] sm:$0xff]
        %v3052 = vld [vmem:[%s3041 + $0x50] sm:$0xff]
        %v3053 = vld [vmem:[%s3041 + $0x58] sm:$0xff]
        %v3054 = vld [vmem:[%s3041 + $0x60] sm:$0xff]
        %v3055 = vld [vmem:[%s3041 + $0x68] sm:$0xff]
        %v3056 = vld [vmem:[%s3041 + $0x70] sm:$0xff]
        %v3057 = vld [vmem:[%s3041 + $0x78] sm:$0xff]
        %v3074 = vunpack.c.l.b16 %v3042
        %v3075 = vunpack.c.h.b16 %v3042
        %v3076 = vunpack.c.l.b16 %v3043
        %v3077 = vunpack.c.h.b16 %v3043
        %v3078 = vunpack.c.l.b16 %v3044
        %v3079 = vunpack.c.h.b16 %v3044
        %v3080 = vunpack.c.l.b16 %v3045
        %v3081 = vunpack.c.h.b16 %v3045
        %v3082 = vunpack.c.l.b16 %v3046
        %v3083 = vunpack.c.h.b16 %v3046
        %v3084 = vunpack.c.l.b16 %v3047
        %v3085 = vunpack.c.h.b16 %v3047
        %v3086 = vunpack.c.l.b16 %v3048
        %v3087 = vunpack.c.h.b16 %v3048
        %v3088 = vunpack.c.l.b16 %v3049
        %v3089 = vunpack.c.h.b16 %v3049
        %v3090 = vunpack.c.l.b16 %v3050
        %v3091 = vunpack.c.h.b16 %v3050
        %v3092 = vunpack.c.l.b16 %v3051
        %v3093 = vunpack.c.h.b16 %v3051
        %v3094 = vunpack.c.l.b16 %v3052
        %v3095 = vunpack.c.h.b16 %v3052
        %v3096 = vunpack.c.l.b16 %v3053
        %v3097 = vunpack.c.h.b16 %v3053
        %v3098 = vunpack.c.l.b16 %v3054
        %v3099 = vunpack.c.h.b16 %v3054
        %v3100 = vunpack.c.l.b16 %v3055
        %v3101 = vunpack.c.h.b16 %v3055
        %v3102 = vunpack.c.l.b16 %v3056
        %v3103 = vunpack.c.h.b16 %v3056
        %v3104 = vunpack.c.l.b16 %v3057
        %v3105 = vunpack.c.h.b16 %v3057
        %v3106 = vpack.c.b16 %v3076, %v3074
        %v3107 = vpack.c.b16 %v3077, %v3075
        %v3108 = vpack.c.b16 %v3080, %v3078
        %v3109 = vpack.c.b16 %v3081, %v3079
        %v3110 = vpack.c.b16 %v3084, %v3082
        %v3111 = vpack.c.b16 %v3085, %v3083
        %v3112 = vpack.c.b16 %v3088, %v3086
        %v3113 = vpack.c.b16 %v3089, %v3087
        %v3114 = vpack.c.b16 %v3092, %v3090
        %v3115 = vpack.c.b16 %v3093, %v3091
        %v3116 = vpack.c.b16 %v3096, %v3094
        %v3117 = vpack.c.b16 %v3097, %v3095
        %v3118 = vpack.c.b16 %v3100, %v3098
        %v3119 = vpack.c.b16 %v3101, %v3099
        %v3120 = vpack.c.b16 %v3104, %v3102
        %v3121 = vpack.c.b16 %v3105, %v3103
        %3138 = vmatprep.subr.bf16.mxu0 %v3107
        %3139 = vmatpush1.bf16.msra.mxu0 %v3106
        %3140 = vmatprep.subr.bf16.mxu0 %v3109
        %3141 = vmatpush1.bf16.msra.mxu0 %v3108
        %3142 = vmatprep.subr.bf16.mxu0 %v3111
        %3143 = vmatpush1.bf16.msra.mxu0 %v3110
        %3144 = vmatprep.subr.bf16.mxu0 %v3113
        %3145 = vmatpush1.bf16.msra.mxu0 %v3112
        %3146 = vmatprep.subr.bf16.mxu0 %v3115
        %3147 = vmatpush1.bf16.msra.mxu0 %v3114
        %3148 = vmatprep.subr.bf16.mxu0 %v3117
        %3149 = vmatpush1.bf16.msra.mxu0 %v3116
        %3150 = vmatprep.subr.bf16.mxu0 %v3119
        %3151 = vmatpush1.bf16.msra.mxu0 %v3118
        %3152 = vmatprep.subr.bf16.mxu0 %v3121
        %3153 = vmatpush1.bf16.msra.mxu0 %v3120
        %3154 = vmatprep.subr.bf16.mxu0 0
        %3155 = vmatpush1.bf16.msra.mxu0 0
        %3156 = vmatprep.subr.bf16.mxu0 0
        %3157 = vmatpush1.bf16.msra.mxu0 0
        %3158 = vmatprep.subr.bf16.mxu0 0
        %3159 = vmatpush1.bf16.msra.mxu0 0
        %3160 = vmatprep.subr.bf16.mxu0 0
        %3161 = vmatpush1.bf16.msra.mxu0 0
        %3162 = vmatprep.subr.bf16.mxu0 0
        %3163 = vmatpush1.bf16.msra.mxu0 0
        %3164 = vmatprep.subr.bf16.mxu0 0
        %3165 = vmatpush1.bf16.msra.mxu0 0
        %3166 = vmatprep.subr.bf16.mxu0 0
        %3167 = vmatpush1.bf16.msra.mxu0 0
        %3168 = vmatprep.subr.bf16.mxu0 0
        %3169 = vmatpush1.bf16.msra.mxu0 0
        %3170 = vmatprep.mubr.bf16.mxu0 0
        %3171 = vmatmul.mubr.bf16.gmra.mrb[0].mxu0 %v3040
        %v3172 = vpop.f32.mrb[0].mxu0
        %v3173 = vadd.f32 0.0, %v3172
        %v3174 = vpop.f32.mrb[0].mxu0
        %v3175 = vadd.f32 0.0, %v3174
        %v3176 = vpop.f32.mrb[0].mxu0
        %v3177 = vadd.f32 0.0, %v3176
        %v3178 = vpop.f32.mrb[0].mxu0
        %v3179 = vadd.f32 0.0, %v3178
        %3180 = vdwg.mxu0
        %v3197 = vunpack.c.l.b16 %v3022
        %v3198 = vunpack.c.h.b16 %v3022
        %v3199 = vunpack.c.l.b16 %v3023
        %v3200 = vunpack.c.h.b16 %v3023
        %v3201 = vunpack.c.l.b16 %v3024
        %v3202 = vunpack.c.h.b16 %v3024
        %v3203 = vunpack.c.l.b16 %v3025
        %v3204 = vunpack.c.h.b16 %v3025
        %v3205 = vunpack.c.l.b16 %v3026
        %v3206 = vunpack.c.h.b16 %v3026
        %v3207 = vunpack.c.l.b16 %v3027
        %v3208 = vunpack.c.h.b16 %v3027
        %v3209 = vunpack.c.l.b16 %v3028
        %v3210 = vunpack.c.h.b16 %v3028
        %v3211 = vunpack.c.l.b16 %v3029
        %v3212 = vunpack.c.h.b16 %v3029
        %v3213 = vunpack.c.l.b16 %v3030
        %v3214 = vunpack.c.h.b16 %v3030
        %v3215 = vunpack.c.l.b16 %v3031
        %v3216 = vunpack.c.h.b16 %v3031
        %v3217 = vunpack.c.l.b16 %v3032
        %v3218 = vunpack.c.h.b16 %v3032
        %v3219 = vunpack.c.l.b16 %v3033
        %v3220 = vunpack.c.h.b16 %v3033
        %v3221 = vunpack.c.l.b16 %v3034
        %v3222 = vunpack.c.h.b16 %v3034
        %v3223 = vunpack.c.l.b16 %v3035
        %v3224 = vunpack.c.h.b16 %v3035
        %v3225 = vunpack.c.l.b16 %v3036
        %v3226 = vunpack.c.h.b16 %v3036
        %v3227 = vunpack.c.l.b16 %v3037
        %v3228 = vunpack.c.h.b16 %v3037
        %v3229 = vpack.c.b16 %v3199, %v3197
        %v3230 = vpack.c.b16 %v3200, %v3198
        %v3231 = vpack.c.b16 %v3203, %v3201
        %v3232 = vpack.c.b16 %v3204, %v3202
        %v3233 = vpack.c.b16 %v3207, %v3205
        %v3234 = vpack.c.b16 %v3208, %v3206
        %v3235 = vpack.c.b16 %v3211, %v3209
        %v3236 = vpack.c.b16 %v3212, %v3210
        %v3237 = vpack.c.b16 %v3215, %v3213
        %v3238 = vpack.c.b16 %v3216, %v3214
        %v3239 = vpack.c.b16 %v3219, %v3217
        %v3240 = vpack.c.b16 %v3220, %v3218
        %v3241 = vpack.c.b16 %v3223, %v3221
        %v3242 = vpack.c.b16 %v3224, %v3222
        %v3243 = vpack.c.b16 %v3227, %v3225
        %v3244 = vpack.c.b16 %v3228, %v3226
        %3261 = vmatprep.subr.bf16.mxu0 %v3230
        %3262 = vmatpush1.bf16.msra.mxu0 %v3229
        %3263 = vmatprep.subr.bf16.mxu0 %v3232
        %3264 = vmatpush1.bf16.msra.mxu0 %v3231
        %3265 = vmatprep.subr.bf16.mxu0 %v3234
        %3266 = vmatpush1.bf16.msra.mxu0 %v3233
        %3267 = vmatprep.subr.bf16.mxu0 %v3236
        %3268 = vmatpush1.bf16.msra.mxu0 %v3235
        %3269 = vmatprep.subr.bf16.mxu0 %v3238
        %3270 = vmatpush1.bf16.msra.mxu0 %v3237
        %3271 = vmatprep.subr.bf16.mxu0 %v3240
        %3272 = vmatpush1.bf16.msra.mxu0 %v3239
        %3273 = vmatprep.subr.bf16.mxu0 %v3242
        %3274 = vmatpush1.bf16.msra.mxu0 %v3241
        %3275 = vmatprep.subr.bf16.mxu0 %v3244
        %3276 = vmatpush1.bf16.msra.mxu0 %v3243
        %3277 = vmatprep.subr.bf16.mxu0 0
        %3278 = vmatpush1.bf16.msra.mxu0 0
        %3279 = vmatprep.subr.bf16.mxu0 0
        %3280 = vmatpush1.bf16.msra.mxu0 0
        %3281 = vmatprep.subr.bf16.mxu0 0
        %3282 = vmatpush1.bf16.msra.mxu0 0
        %3283 = vmatprep.subr.bf16.mxu0 0
        %3284 = vmatpush1.bf16.msra.mxu0 0
        %3285 = vmatprep.subr.bf16.mxu0 0
        %3286 = vmatpush1.bf16.msra.mxu0 0
        %3287 = vmatprep.subr.bf16.mxu0 0
        %3288 = vmatpush1.bf16.msra.mxu0 0
        %3289 = vmatprep.subr.bf16.mxu0 0
        %3290 = vmatpush1.bf16.msra.mxu0 0
        %3291 = vmatprep.subr.bf16.mxu0 0
        %3292 = vmatpush1.bf16.msra.mxu0 0
        %3293 = vmatprep.mubr.bf16.mxu0 0
        %3294 = vmatmul.mubr.bf16.gmra.mrb[0].mxu0 %v3020
        %v3295 = vpop.f32.mrb[0].mxu0
        %v3296 = vadd.f32 %v3173, %v3295
        %v3297 = vpop.f32.mrb[0].mxu0
        %v3298 = vadd.f32 %v3175, %v3297
        %v3299 = vpop.f32.mrb[0].mxu0
        %v3300 = vadd.f32 %v3177, %v3299
        %v3301 = vpop.f32.mrb[0].mxu0
        %v3302 = vadd.f32 %v3179, %v3301
        %3303 = vdwg.mxu0
        %v3304 = vld [vmem:[#allocation2 + $0x10] sm:$0xff]
        %v3305 = vld [vmem:[#allocation2 + $0x18] sm:$0xff]
        %v3306 = vpack.c.bf16 %v3305, %v3304
        %s3307 = scalar_lea.vmem [#allocation6], 2176
        %v3308 = vld [vmem:[%s3307] sm:$0xff]
        %v3309 = vld [vmem:[%s3307 + $0x8] sm:$0xff]
        %v3310 = vld [vmem:[%s3307 + $0x10] sm:$0xff]
        %v3311 = vld [vmem:[%s3307 + $0x18] sm:$0xff]
        %v3312 = vld [vmem:[%s3307 + $0x20] sm:$0xff]
        %v3313 = vld [vmem:[%s3307 + $0x28] sm:$0xff]
        %v3314 = vld [vmem:[%s3307 + $0x30] sm:$0xff]
        %v3315 = vld [vmem:[%s3307 + $0x38] sm:$0xff]
        %v3316 = vld [vmem:[%s3307 + $0x40] sm:$0xff]
        %v3317 = vld [vmem:[%s3307 + $0x48] sm:$0xff]
        %v3318 = vld [vmem:[%s3307 + $0x50] sm:$0xff]
        %v3319 = vld [vmem:[%s3307 + $0x58] sm:$0xff]
        %v3320 = vld [vmem:[%s3307 + $0x60] sm:$0xff]
        %v3321 = vld [vmem:[%s3307 + $0x68] sm:$0xff]
        %v3322 = vld [vmem:[%s3307 + $0x70] sm:$0xff]
        %v3323 = vld [vmem:[%s3307 + $0x78] sm:$0xff]
        %v3340 = vunpack.c.l.b16 %v3308
        %v3341 = vunpack.c.h.b16 %v3308
        %v3342 = vunpack.c.l.b16 %v3309
        %v3343 = vunpack.c.h.b16 %v3309
        %v3344 = vunpack.c.l.b16 %v3310
        %v3345 = vunpack.c.h.b16 %v3310
        %v3346 = vunpack.c.l.b16 %v3311
        %v3347 = vunpack.c.h.b16 %v3311
        %v3348 = vunpack.c.l.b16 %v3312
        %v3349 = vunpack.c.h.b16 %v3312
        %v3350 = vunpack.c.l.b16 %v3313
        %v3351 = vunpack.c.h.b16 %v3313
        %v3352 = vunpack.c.l.b16 %v3314
        %v3353 = vunpack.c.h.b16 %v3314
        %v3354 = vunpack.c.l.b16 %v3315
        %v3355 = vunpack.c.h.b16 %v3315
        %v3356 = vunpack.c.l.b16 %v3316
        %v3357 = vunpack.c.h.b16 %v3316
        %v3358 = vunpack.c.l.b16 %v3317
        %v3359 = vunpack.c.h.b16 %v3317
        %v3360 = vunpack.c.l.b16 %v3318
        %v3361 = vunpack.c.h.b16 %v3318
        %v3362 = vunpack.c.l.b16 %v3319
        %v3363 = vunpack.c.h.b16 %v3319
        %v3364 = vunpack.c.l.b16 %v3320
        %v3365 = vunpack.c.h.b16 %v3320
        %v3366 = vunpack.c.l.b16 %v3321
        %v3367 = vunpack.c.h.b16 %v3321
        %v3368 = vunpack.c.l.b16 %v3322
        %v3369 = vunpack.c.h.b16 %v3322
        %v3370 = vunpack.c.l.b16 %v3323
        %v3371 = vunpack.c.h.b16 %v3323
        %v3372 = vpack.c.b16 %v3342, %v3340
        %v3373 = vpack.c.b16 %v3343, %v3341
        %v3374 = vpack.c.b16 %v3346, %v3344
        %v3375 = vpack.c.b16 %v3347, %v3345
        %v3376 = vpack.c.b16 %v3350, %v3348
        %v3377 = vpack.c.b16 %v3351, %v3349
        %v3378 = vpack.c.b16 %v3354, %v3352
        %v3379 = vpack.c.b16 %v3355, %v3353
        %v3380 = vpack.c.b16 %v3358, %v3356
        %v3381 = vpack.c.b16 %v3359, %v3357
        %v3382 = vpack.c.b16 %v3362, %v3360
        %v3383 = vpack.c.b16 %v3363, %v3361
        %v3384 = vpack.c.b16 %v3366, %v3364
        %v3385 = vpack.c.b16 %v3367, %v3365
        %v3386 = vpack.c.b16 %v3370, %v3368
        %v3387 = vpack.c.b16 %v3371, %v3369
        %3404 = vmatprep.subr.bf16.mxu0 %v3373
        %3405 = vmatpush1.bf16.msra.mxu0 %v3372
        %3406 = vmatprep.subr.bf16.mxu0 %v3375
        %3407 = vmatpush1.bf16.msra.mxu0 %v3374
        %3408 = vmatprep.subr.bf16.mxu0 %v3377
        %3409 = vmatpush1.bf16.msra.mxu0 %v3376
        %3410 = vmatprep.subr.bf16.mxu0 %v3379
        %3411 = vmatpush1.bf16.msra.mxu0 %v3378
        %3412 = vmatprep.subr.bf16.mxu0 %v3381
        %3413 = vmatpush1.bf16.msra.mxu0 %v3380
        %3414 = vmatprep.subr.bf16.mxu0 %v3383
        %3415 = vmatpush1.bf16.msra.mxu0 %v3382
        %3416 = vmatprep.subr.bf16.mxu0 %v3385
        %3417 = vmatpush1.bf16.msra.mxu0 %v3384
        %3418 = vmatprep.subr.bf16.mxu0 %v3387
        %3419 = vmatpush1.bf16.msra.mxu0 %v3386
        %3420 = vmatprep.subr.bf16.mxu0 0
        %3421 = vmatpush1.bf16.msra.mxu0 0
        %3422 = vmatprep.subr.bf16.mxu0 0
        %3423 = vmatpush1.bf16.msra.mxu0 0
        %3424 = vmatprep.subr.bf16.mxu0 0
        %3425 = vmatpush1.bf16.msra.mxu0 0
        %3426 = vmatprep.subr.bf16.mxu0 0
        %3427 = vmatpush1.bf16.msra.mxu0 0
        %3428 = vmatprep.subr.bf16.mxu0 0
        %3429 = vmatpush1.bf16.msra.mxu0 0
        %3430 = vmatprep.subr.bf16.mxu0 0
        %3431 = vmatpush1.bf16.msra.mxu0 0
        %3432 = vmatprep.subr.bf16.mxu0 0
        %3433 = vmatpush1.bf16.msra.mxu0 0
        %3434 = vmatprep.subr.bf16.mxu0 0
        %3435 = vmatpush1.bf16.msra.mxu0 0
        %3436 = vmatprep.mubr.bf16.mxu0 0
        %3437 = vmatmul.mubr.bf16.gmra.mrb[0].mxu0 %v3306
        %v3438 = vpop.f32.mrb[0].mxu0
        %v3439 = vadd.f32 0.0, %v3438
        %v3440 = vpop.f32.mrb[0].mxu0
        %v3441 = vadd.f32 0.0, %v3440
        %v3442 = vpop.f32.mrb[0].mxu0
        %v3443 = vadd.f32 0.0, %v3442
        %v3444 = vpop.f32.mrb[0].mxu0
        %v3445 = vadd.f32 0.0, %v3444
        %3446 = vdwg.mxu0
        %v3447 = vadd.f32 %v3296, %v3439
        %v3448 = vadd.f32 %v3298, %v3441
        %v3449 = vadd.f32 %v3300, %v3443
        %v3450 = vadd.f32 %v3302, %v3445
        %v3451 = vld [vmem:[#allocation2 + $0x12] sm:$0xff]
        %v3452 = vld [vmem:[#allocation2 + $0x1a] sm:$0xff]
        %v3453 = vpack.c.bf16 %v3452, %v3451
        %s3454 = scalar_lea.vmem [#allocation6], 2304
        %v3455 = vld [vmem:[%s3454] sm:$0xff]
        %v3456 = vld [vmem:[%s3454 + $0x8] sm:$0xff]
        %v3457 = vld [vmem:[%s3454 + $0x10] sm:$0xff]
        %v3458 = vld [vmem:[%s3454 + $0x18] sm:$0xff]
        %v3459 = vld [vmem:[%s3454 + $0x20] sm:$0xff]
        %v3460 = vld [vmem:[%s3454 + $0x28] sm:$0xff]
        %v3461 = vld [vmem:[%s3454 + $0x30] sm:$0xff]
        %v3462 = vld [vmem:[%s3454 + $0x38] sm:$0xff]
        %v3463 = vld [vmem:[%s3454 + $0x40] sm:$0xff]
        %v3464 = vld [vmem:[%s3454 + $0x48] sm:$0xff]
        %v3465 = vld [vmem:[%s3454 + $0x50] sm:$0xff]
        %v3466 = vld [vmem:[%s3454 + $0x58] sm:$0xff]
        %v3467 = vld [vmem:[%s3454 + $0x60] sm:$0xff]
        %v3468 = vld [vmem:[%s3454 + $0x68] sm:$0xff]
        %v3469 = vld [vmem:[%s3454 + $0x70] sm:$0xff]
        %v3470 = vld [vmem:[%s3454 + $0x78] sm:$0xff]
        %v3487 = vunpack.c.l.b16 %v3455
        %v3488 = vunpack.c.h.b16 %v3455
        %v3489 = vunpack.c.l.b16 %v3456
        %v3490 = vunpack.c.h.b16 %v3456
        %v3491 = vunpack.c.l.b16 %v3457
        %v3492 = vunpack.c.h.b16 %v3457
        %v3493 = vunpack.c.l.b16 %v3458
        %v3494 = vunpack.c.h.b16 %v3458
        %v3495 = vunpack.c.l.b16 %v3459
        %v3496 = vunpack.c.h.b16 %v3459
        %v3497 = vunpack.c.l.b16 %v3460
        %v3498 = vunpack.c.h.b16 %v3460
        %v3499 = vunpack.c.l.b16 %v3461
        %v3500 = vunpack.c.h.b16 %v3461
        %v3501 = vunpack.c.l.b16 %v3462
        %v3502 = vunpack.c.h.b16 %v3462
        %v3503 = vunpack.c.l.b16 %v3463
        %v3504 = vunpack.c.h.b16 %v3463
        %v3505 = vunpack.c.l.b16 %v3464
        %v3506 = vunpack.c.h.b16 %v3464
        %v3507 = vunpack.c.l.b16 %v3465
        %v3508 = vunpack.c.h.b16 %v3465
        %v3509 = vunpack.c.l.b16 %v3466
        %v3510 = vunpack.c.h.b16 %v3466
        %v3511 = vunpack.c.l.b16 %v3467
        %v3512 = vunpack.c.h.b16 %v3467
        %v3513 = vunpack.c.l.b16 %v3468
        %v3514 = vunpack.c.h.b16 %v3468
        %v3515 = vunpack.c.l.b16 %v3469
        %v3516 = vunpack.c.h.b16 %v3469
        %v3517 = vunpack.c.l.b16 %v3470
        %v3518 = vunpack.c.h.b16 %v3470
        %v3519 = vpack.c.b16 %v3489, %v3487
        %v3520 = vpack.c.b16 %v3490, %v3488
        %v3521 = vpack.c.b16 %v3493, %v3491
        %v3522 = vpack.c.b16 %v3494, %v3492
        %v3523 = vpack.c.b16 %v3497, %v3495
        %v3524 = vpack.c.b16 %v3498, %v3496
        %v3525 = vpack.c.b16 %v3501, %v3499
        %v3526 = vpack.c.b16 %v3502, %v3500
        %v3527 = vpack.c.b16 %v3505, %v3503
        %v3528 = vpack.c.b16 %v3506, %v3504
        %v3529 = vpack.c.b16 %v3509, %v3507
        %v3530 = vpack.c.b16 %v3510, %v3508
        %v3531 = vpack.c.b16 %v3513, %v3511
        %v3532 = vpack.c.b16 %v3514, %v3512
        %v3533 = vpack.c.b16 %v3517, %v3515
        %v3534 = vpack.c.b16 %v3518, %v3516
        %3551 = vmatprep.subr.bf16.mxu0 %v3520
        %3552 = vmatpush1.bf16.msra.mxu0 %v3519
        %3553 = vmatprep.subr.bf16.mxu0 %v3522
        %3554 = vmatpush1.bf16.msra.mxu0 %v3521
        %3555 = vmatprep.subr.bf16.mxu0 %v3524
        %3556 = vmatpush1.bf16.msra.mxu0 %v3523
        %3557 = vmatprep.subr.bf16.mxu0 %v3526
        %3558 = vmatpush1.bf16.msra.mxu0 %v3525
        %3559 = vmatprep.subr.bf16.mxu0 %v3528
        %3560 = vmatpush1.bf16.msra.mxu0 %v3527
        %3561 = vmatprep.subr.bf16.mxu0 %v3530
        %3562 = vmatpush1.bf16.msra.mxu0 %v3529
        %3563 = vmatprep.subr.bf16.mxu0 %v3532
        %3564 = vmatpush1.bf16.msra.mxu0 %v3531
        %3565 = vmatprep.subr.bf16.mxu0 %v3534
        %3566 = vmatpush1.bf16.msra.mxu0 %v3533
        %3567 = vmatprep.subr.bf16.mxu0 0
        %3568 = vmatpush1.bf16.msra.mxu0 0
        %3569 = vmatprep.subr.bf16.mxu0 0
        %3570 = vmatpush1.bf16.msra.mxu0 0
        %3571 = vmatprep.subr.bf16.mxu0 0
        %3572 = vmatpush1.bf16.msra.mxu0 0
        %3573 = vmatprep.subr.bf16.mxu0 0
        %3574 = vmatpush1.bf16.msra.mxu0 0
        %3575 = vmatprep.subr.bf16.mxu0 0
        %3576 = vmatpush1.bf16.msra.mxu0 0
        %3577 = vmatprep.subr.bf16.mxu0 0
        %3578 = vmatpush1.bf16.msra.mxu0 0
        %3579 = vmatprep.subr.bf16.mxu0 0
        %3580 = vmatpush1.bf16.msra.mxu0 0
        %3581 = vmatprep.subr.bf16.mxu0 0
        %3582 = vmatpush1.bf16.msra.mxu0 0
        %3583 = vmatprep.mubr.bf16.mxu0 0
        %3584 = vmatmul.mubr.bf16.gmra.mrb[0].mxu0 %v3453
        %v3585 = vpop.f32.mrb[0].mxu0
        %v3586 = vadd.f32 0.0, %v3585
        %v3587 = vpop.f32.mrb[0].mxu0
        %v3588 = vadd.f32 0.0, %v3587
        %v3589 = vpop.f32.mrb[0].mxu0
        %v3590 = vadd.f32 0.0, %v3589
        %v3591 = vpop.f32.mrb[0].mxu0
        %v3592 = vadd.f32 0.0, %v3591
        %3593 = vdwg.mxu0
        %v3594 = vadd.f32 %v3447, %v3586
        %v3595 = vadd.f32 %v3448, %v3588
        %v3596 = vadd.f32 %v3449, %v3590
        %v3597 = vadd.f32 %v3450, %v3592
        %v3598 = vld [vmem:[#allocation2 + $0x14] sm:$0xff]
        %v3599 = vld [vmem:[#allocation2 + $0x1c] sm:$0xff]
        %v3600 = vpack.c.bf16 %v3599, %v3598
        %s3601 = scalar_lea.vmem [#allocation6], 2432
        %v3602 = vld [vmem:[%s3601] sm:$0xff]
        %v3603 = vld [vmem:[%s3601 + $0x8] sm:$0xff]
        %v3604 = vld [vmem:[%s3601 + $0x10] sm:$0xff]
        %v3605 = vld [vmem:[%s3601 + $0x18] sm:$0xff]
        %v3606 = vld [vmem:[%s3601 + $0x20] sm:$0xff]
        %v3607 = vld [vmem:[%s3601 + $0x28] sm:$0xff]
        %v3608 = vld [vmem:[%s3601 + $0x30] sm:$0xff]
        %v3609 = vld [vmem:[%s3601 + $0x38] sm:$0xff]
        %v3610 = vld [vmem:[%s3601 + $0x40] sm:$0xff]
        %v3611 = vld [vmem:[%s3601 + $0x48] sm:$0xff]
        %v3612 = vld [vmem:[%s3601 + $0x50] sm:$0xff]
        %v3613 = vld [vmem:[%s3601 + $0x58] sm:$0xff]
        %v3614 = vld [vmem:[%s3601 + $0x60] sm:$0xff]
        %v3615 = vld [vmem:[%s3601 + $0x68] sm:$0xff]
        %v3616 = vld [vmem:[%s3601 + $0x70] sm:$0xff]
        %v3617 = vld [vmem:[%s3601 + $0x78] sm:$0xff]
        %v3634 = vunpack.c.l.b16 %v3602
        %v3635 = vunpack.c.h.b16 %v3602
        %v3636 = vunpack.c.l.b16 %v3603
        %v3637 = vunpack.c.h.b16 %v3603
        %v3638 = vunpack.c.l.b16 %v3604
        %v3639 = vunpack.c.h.b16 %v3604
        %v3640 = vunpack.c.l.b16 %v3605
        %v3641 = vunpack.c.h.b16 %v3605
        %v3642 = vunpack.c.l.b16 %v3606
        %v3643 = vunpack.c.h.b16 %v3606
        %v3644 = vunpack.c.l.b16 %v3607
        %v3645 = vunpack.c.h.b16 %v3607
        %v3646 = vunpack.c.l.b16 %v3608
        %v3647 = vunpack.c.h.b16 %v3608
        %v3648 = vunpack.c.l.b16 %v3609
        %v3649 = vunpack.c.h.b16 %v3609
        %v3650 = vunpack.c.l.b16 %v3610
        %v3651 = vunpack.c.h.b16 %v3610
        %v3652 = vunpack.c.l.b16 %v3611
        %v3653 = vunpack.c.h.b16 %v3611
        %v3654 = vunpack.c.l.b16 %v3612
        %v3655 = vunpack.c.h.b16 %v3612
        %v3656 = vunpack.c.l.b16 %v3613
        %v3657 = vunpack.c.h.b16 %v3613
        %v3658 = vunpack.c.l.b16 %v3614
        %v3659 = vunpack.c.h.b16 %v3614
        %v3660 = vunpack.c.l.b16 %v3615
        %v3661 = vunpack.c.h.b16 %v3615
        %v3662 = vunpack.c.l.b16 %v3616
        %v3663 = vunpack.c.h.b16 %v3616
        %v3664 = vunpack.c.l.b16 %v3617
        %v3665 = vunpack.c.h.b16 %v3617
        %v3666 = vpack.c.b16 %v3636, %v3634
        %v3667 = vpack.c.b16 %v3637, %v3635
        %v3668 = vpack.c.b16 %v3640, %v3638
        %v3669 = vpack.c.b16 %v3641, %v3639
        %v3670 = vpack.c.b16 %v3644, %v3642
        %v3671 = vpack.c.b16 %v3645, %v3643
        %v3672 = vpack.c.b16 %v3648, %v3646
        %v3673 = vpack.c.b16 %v3649, %v3647
        %v3674 = vpack.c.b16 %v3652, %v3650
        %v3675 = vpack.c.b16 %v3653, %v3651
        %v3676 = vpack.c.b16 %v3656, %v3654
        %v3677 = vpack.c.b16 %v3657, %v3655
        %v3678 = vpack.c.b16 %v3660, %v3658
        %v3679 = vpack.c.b16 %v3661, %v3659
        %v3680 = vpack.c.b16 %v3664, %v3662
        %v3681 = vpack.c.b16 %v3665, %v3663
        %3698 = vmatprep.subr.bf16.mxu0 %v3667
        %3699 = vmatpush1.bf16.msra.mxu0 %v3666
        %3700 = vmatprep.subr.bf16.mxu0 %v3669
        %3701 = vmatpush1.bf16.msra.mxu0 %v3668
        %3702 = vmatprep.subr.bf16.mxu0 %v3671
        %3703 = vmatpush1.bf16.msra.mxu0 %v3670
        %3704 = vmatprep.subr.bf16.mxu0 %v3673
        %3705 = vmatpush1.bf16.msra.mxu0 %v3672
        %3706 = vmatprep.subr.bf16.mxu0 %v3675
        %3707 = vmatpush1.bf16.msra.mxu0 %v3674
        %3708 = vmatprep.subr.bf16.mxu0 %v3677
        %3709 = vmatpush1.bf16.msra.mxu0 %v3676
        %3710 = vmatprep.subr.bf16.mxu0 %v3679
        %3711 = vmatpush1.bf16.msra.mxu0 %v3678
        %3712 = vmatprep.subr.bf16.mxu0 %v3681
        %3713 = vmatpush1.bf16.msra.mxu0 %v3680
        %3714 = vmatprep.subr.bf16.mxu0 0
        %3715 = vmatpush1.bf16.msra.mxu0 0
        %3716 = vmatprep.subr.bf16.mxu0 0
        %3717 = vmatpush1.bf16.msra.mxu0 0
        %3718 = vmatprep.subr.bf16.mxu0 0
        %3719 = vmatpush1.bf16.msra.mxu0 0
        %3720 = vmatprep.subr.bf16.mxu0 0
        %3721 = vmatpush1.bf16.msra.mxu0 0
        %3722 = vmatprep.subr.bf16.mxu0 0
        %3723 = vmatpush1.bf16.msra.mxu0 0
        %3724 = vmatprep.subr.bf16.mxu0 0
        %3725 = vmatpush1.bf16.msra.mxu0 0
        %3726 = vmatprep.subr.bf16.mxu0 0
        %3727 = vmatpush1.bf16.msra.mxu0 0
        %3728 = vmatprep.subr.bf16.mxu0 0
        %3729 = vmatpush1.bf16.msra.mxu0 0
        %3730 = vmatprep.mubr.bf16.mxu0 0
        %3731 = vmatmul.mubr.bf16.gmra.mrb[0].mxu0 %v3600
        %v3732 = vpop.f32.mrb[0].mxu0
        %v3733 = vadd.f32 0.0, %v3732
        %v3734 = vpop.f32.mrb[0].mxu0
        %v3735 = vadd.f32 0.0, %v3734
        %v3736 = vpop.f32.mrb[0].mxu0
        %v3737 = vadd.f32 0.0, %v3736
        %v3738 = vpop.f32.mrb[0].mxu0
        %v3739 = vadd.f32 0.0, %v3738
        %3740 = vdwg.mxu0
        %v3741 = vadd.f32 %v3594, %v3733
        %v3742 = vadd.f32 %v3595, %v3735
        %v3743 = vadd.f32 %v3596, %v3737
        %v3744 = vadd.f32 %v3597, %v3739
        %v3745 = vtanh.pop %v3741
        %v3746 = vtanh.pop %v3743
        %v3747 = vxor.u32 %v3742, 2147483648
        %v3748 = vxor.u32 %v3744, 2147483648
        %v3749 = vmul.f32 %v3747, 1.442695
        %v3750 = vpow.pop %v3749
        %v3751 = vmul.f32 %v3748, 1.442695
        %v3752 = vpow.pop %v3751
        %v3753 = vadd.f32 %v3750, 1.0
        %v3754 = vadd.f32 %v3752, 1.0
        %v3755 = vrcp.pop %v3753
        %v3756 = vmul.f32 1.0, %v3755
        %v3757 = vrcp.pop %v3754
        %v3758 = vmul.f32 1.0, %v3757
        %v3759 = vmul.f32 %v3745, %v3756
        %v3760 = vmul.f32 %v3746, %v3758
        %v3761 = vpack.c.bf16 %v3760, %v3759
        %s3762 = scalar_lea.vmem [#allocation8], 384
        %v3763 = vld [vmem:[%s3762] sm:$0xff]
        %v3764 = vld [vmem:[%s3762 + $0x8] sm:$0xff]
        %v3765 = vld [vmem:[%s3762 + $0x10] sm:$0xff]
        %v3766 = vld [vmem:[%s3762 + $0x18] sm:$0xff]
        %v3767 = vld [vmem:[%s3762 + $0x20] sm:$0xff]
        %v3768 = vld [vmem:[%s3762 + $0x28] sm:$0xff]
        %v3769 = vld [vmem:[%s3762 + $0x30] sm:$0xff]
        %v3770 = vld [vmem:[%s3762 + $0x38] sm:$0xff]
        %v3771 = vld [vmem:[%s3762 + $0x40] sm:$0xff]
        %v3772 = vld [vmem:[%s3762 + $0x48] sm:$0xff]
        %v3773 = vld [vmem:[%s3762 + $0x50] sm:$0xff]
        %v3774 = vld [vmem:[%s3762 + $0x58] sm:$0xff]
        %v3775 = vld [vmem:[%s3762 + $0x60] sm:$0xff]
        %v3776 = vld [vmem:[%s3762 + $0x68] sm:$0xff]
        %v3777 = vld [vmem:[%s3762 + $0x70] sm:$0xff]
        %v3778 = vld [vmem:[%s3762 + $0x78] sm:$0xff]
        %v3795 = vunpack.c.l.b16 %v3763
        %v3796 = vunpack.c.h.b16 %v3763
        %v3797 = vunpack.c.l.b16 %v3764
        %v3798 = vunpack.c.h.b16 %v3764
        %v3799 = vunpack.c.l.b16 %v3765
        %v3800 = vunpack.c.h.b16 %v3765
        %v3801 = vunpack.c.l.b16 %v3766
        %v3802 = vunpack.c.h.b16 %v3766
        %v3803 = vunpack.c.l.b16 %v3767
        %v3804 = vunpack.c.h.b16 %v3767
        %v3805 = vunpack.c.l.b16 %v3768
        %v3806 = vunpack.c.h.b16 %v3768
        %v3807 = vunpack.c.l.b16 %v3769
        %v3808 = vunpack.c.h.b16 %v3769
        %v3809 = vunpack.c.l.b16 %v3770
        %v3810 = vunpack.c.h.b16 %v3770
        %v3811 = vunpack.c.l.b16 %v3771
        %v3812 = vunpack.c.h.b16 %v3771
        %v3813 = vunpack.c.l.b16 %v3772
        %v3814 = vunpack.c.h.b16 %v3772
        %v3815 = vunpack.c.l.b16 %v3773
        %v3816 = vunpack.c.h.b16 %v3773
        %v3817 = vunpack.c.l.b16 %v3774
        %v3818 = vunpack.c.h.b16 %v3774
        %v3819 = vunpack.c.l.b16 %v3775
        %v3820 = vunpack.c.h.b16 %v3775
        %v3821 = vunpack.c.l.b16 %v3776
        %v3822 = vunpack.c.h.b16 %v3776
        %v3823 = vunpack.c.l.b16 %v3777
        %v3824 = vunpack.c.h.b16 %v3777
        %v3825 = vunpack.c.l.b16 %v3778
        %v3826 = vunpack.c.h.b16 %v3778
        %v3827 = vpack.c.b16 %v3797, %v3795
        %v3828 = vpack.c.b16 %v3798, %v3796
        %v3829 = vpack.c.b16 %v3801, %v3799
        %v3830 = vpack.c.b16 %v3802, %v3800
        %v3831 = vpack.c.b16 %v3805, %v3803
        %v3832 = vpack.c.b16 %v3806, %v3804
        %v3833 = vpack.c.b16 %v3809, %v3807
        %v3834 = vpack.c.b16 %v3810, %v3808
        %v3835 = vpack.c.b16 %v3813, %v3811
        %v3836 = vpack.c.b16 %v3814, %v3812
        %v3837 = vpack.c.b16 %v3817, %v3815
        %v3838 = vpack.c.b16 %v3818, %v3816
        %v3839 = vpack.c.b16 %v3821, %v3819
        %v3840 = vpack.c.b16 %v3822, %v3820
        %v3841 = vpack.c.b16 %v3825, %v3823
        %v3842 = vpack.c.b16 %v3826, %v3824
        %3859 = vmatprep.subr.bf16.mxu0 %v3828
        %3860 = vmatpush1.bf16.msra.mxu0 %v3827
        %3861 = vmatprep.subr.bf16.mxu0 %v3830
        %3862 = vmatpush1.bf16.msra.mxu0 %v3829
        %3863 = vmatprep.subr.bf16.mxu0 %v3832
        %3864 = vmatpush1.bf16.msra.mxu0 %v3831
        %3865 = vmatprep.subr.bf16.mxu0 %v3834
        %3866 = vmatpush1.bf16.msra.mxu0 %v3833
        %3867 = vmatprep.subr.bf16.mxu0 %v3836
        %3868 = vmatpush1.bf16.msra.mxu0 %v3835
        %3869 = vmatprep.subr.bf16.mxu0 %v3838
        %3870 = vmatpush1.bf16.msra.mxu0 %v3837
        %3871 = vmatprep.subr.bf16.mxu0 %v3840
        %3872 = vmatpush1.bf16.msra.mxu0 %v3839
        %3873 = vmatprep.subr.bf16.mxu0 %v3842
        %3874 = vmatpush1.bf16.msra.mxu0 %v3841
        %3875 = vmatprep.subr.bf16.mxu0 0
        %3876 = vmatpush1.bf16.msra.mxu0 0
        %3877 = vmatprep.subr.bf16.mxu0 0
        %3878 = vmatpush1.bf16.msra.mxu0 0
        %3879 = vmatprep.subr.bf16.mxu0 0
        %3880 = vmatpush1.bf16.msra.mxu0 0
        %3881 = vmatprep.subr.bf16.mxu0 0
        %3882 = vmatpush1.bf16.msra.mxu0 0
        %3883 = vmatprep.subr.bf16.mxu0 0
        %3884 = vmatpush1.bf16.msra.mxu0 0
        %3885 = vmatprep.subr.bf16.mxu0 0
        %3886 = vmatpush1.bf16.msra.mxu0 0
        %3887 = vmatprep.subr.bf16.mxu0 0
        %3888 = vmatpush1.bf16.msra.mxu0 0
        %3889 = vmatprep.subr.bf16.mxu0 0
        %3890 = vmatpush1.bf16.msra.mxu0 0
        %3891 = vmatprep.mubr.bf16.mxu0 0
        %3892 = vmatmul.mubr.bf16.gmra.mrb[0].mxu0 %v3761
        %v3893 = vpop.f32.mrb[0].mxu0
        %v3894 = vadd.f32 0.0, %v3893
        %v3895 = vpop.f32.mrb[0].mxu0
        %v3896 = vadd.f32 0.0, %v3895
        %v3897 = vpop.f32.mrb[0].mxu0
        %v3898 = vadd.f32 0.0, %v3897
        %v3899 = vpop.f32.mrb[0].mxu0
        %v3900 = vadd.f32 0.0, %v3899
        %3901 = vdwg.mxu0
        %v3902 = vadd.f32 %v3894, %v3304
        %v3903 = vadd.f32 %v3898, %v3305
        %3904 = vst [vmem:[#allocation2 + $0x10] sm:$0xff] %v3902
        %3905 = vst [vmem:[#allocation2 + $0x18] sm:$0xff] %v3903
        %v3906 = vld [vmem:[%s232] sm:$0xff]
        %v3907 = vld [vmem:[%s232 + $0x8] sm:$0xff]
        %v3908 = vadd.f32 %v3906, %v3896
        %v3909 = vadd.f32 %v3907, %v3900
        %3910 = vst [vmem:[%s232] sm:$0xff] %v3908
        %3911 = vst [vmem:[%s232 + $0x8] sm:$0xff] %v3909
        %v3912 = vld [vmem:[#allocation2 + $0xc] sm:$0xff]
        %v3913 = vld [vmem:[#allocation2 + $0x14] sm:$0xff]
        %v3914 = vpack.c.bf16 %v3913, %v3912
        %s3915 = scalar_lea.vmem [#allocation6], 2560
        %v3916 = vld [vmem:[%s3915] sm:$0xff]
        %v3917 = vld [vmem:[%s3915 + $0x8] sm:$0xff]
        %v3918 = vld [vmem:[%s3915 + $0x10] sm:$0xff]
        %v3919 = vld [vmem:[%s3915 + $0x18] sm:$0xff]
        %v3920 = vld [vmem:[%s3915 + $0x20] sm:$0xff]
        %v3921 = vld [vmem:[%s3915 + $0x28] sm:$0xff]
        %v3922 = vld [vmem:[%s3915 + $0x30] sm:$0xff]
        %v3923 = vld [vmem:[%s3915 + $0x38] sm:$0xff]
        %v3924 = vld [vmem:[%s3915 + $0x40] sm:$0xff]
        %v3925 = vld [vmem:[%s3915 + $0x48] sm:$0xff]
        %v3926 = vld [vmem:[%s3915 + $0x50] sm:$0xff]
        %v3927 = vld [vmem:[%s3915 + $0x58] sm:$0xff]
        %v3928 = vld [vmem:[%s3915 + $0x60] sm:$0xff]
        %v3929 = vld [vmem:[%s3915 + $0x68] sm:$0xff]
        %v3930 = vld [vmem:[%s3915 + $0x70] sm:$0xff]
        %v3931 = vld [vmem:[%s3915 + $0x78] sm:$0xff]
        %v3932 = vld [vmem:[#allocation2 + $0xe] sm:$0xff]
        %v3933 = vld [vmem:[#allocation2 + $0x16] sm:$0xff]
        %v3934 = vpack.c.bf16 %v3933, %v3932
        %s3935 = scalar_lea.vmem [#allocation6], 2688
        %v3936 = vld [vmem:[%s3935] sm:$0xff]
        %v3937 = vld [vmem:[%s3935 + $0x8] sm:$0xff]
        %v3938 = vld [vmem:[%s3935 + $0x10] sm:$0xff]
        %v3939 = vld [vmem:[%s3935 + $0x18] sm:$0xff]
        %v3940 = vld [vmem:[%s3935 + $0x20] sm:$0xff]
        %v3941 = vld [vmem:[%s3935 + $0x28] sm:$0xff]
        %v3942 = vld [vmem:[%s3935 + $0x30] sm:$0xff]
        %v3943 = vld [vmem:[%s3935 + $0x38] sm:$0xff]
        %v3944 = vld [vmem:[%s3935 + $0x40] sm:$0xff]
        %v3945 = vld [vmem:[%s3935 + $0x48] sm:$0xff]
        %v3946 = vld [vmem:[%s3935 + $0x50] sm:$0xff]
        %v3947 = vld [vmem:[%s3935 + $0x58] sm:$0xff]
        %v3948 = vld [vmem:[%s3935 + $0x60] sm:$0xff]
        %v3949 = vld [vmem:[%s3935 + $0x68] sm:$0xff]
        %v3950 = vld [vmem:[%s3935 + $0x70] sm:$0xff]
        %v3951 = vld [vmem:[%s3935 + $0x78] sm:$0xff]
        %v3968 = vunpack.c.l.b16 %v3936
        %v3969 = vunpack.c.h.b16 %v3936
        %v3970 = vunpack.c.l.b16 %v3937
        %v3971 = vunpack.c.h.b16 %v3937
        %v3972 = vunpack.c.l.b16 %v3938
        %v3973 = vunpack.c.h.b16 %v3938
        %v3974 = vunpack.c.l.b16 %v3939
        %v3975 = vunpack.c.h.b16 %v3939
        %v3976 = vunpack.c.l.b16 %v3940
        %v3977 = vunpack.c.h.b16 %v3940
        %v3978 = vunpack.c.l.b16 %v3941
        %v3979 = vunpack.c.h.b16 %v3941
        %v3980 = vunpack.c.l.b16 %v3942
        %v3981 = vunpack.c.h.b16 %v3942
        %v3982 = vunpack.c.l.b16 %v3943
        %v3983 = vunpack.c.h.b16 %v3943
        %v3984 = vunpack.c.l.b16 %v3944
        %v3985 = vunpack.c.h.b16 %v3944
        %v3986 = vunpack.c.l.b16 %v3945
        %v3987 = vunpack.c.h.b16 %v3945
        %v3988 = vunpack.c.l.b16 %v3946
        %v3989 = vunpack.c.h.b16 %v3946
        %v3990 = vunpack.c.l.b16 %v3947
        %v3991 = vunpack.c.h.b16 %v3947
        %v3992 = vunpack.c.l.b16 %v3948
        %v3993 = vunpack.c.h.b16 %v3948
        %v3994 = vunpack.c.l.b16 %v3949
        %v3995 = vunpack.c.h.b16 %v3949
        %v3996 = vunpack.c.l.b16 %v3950
        %v3997 = vunpack.c.h.b16 %v3950
        %v3998 = vunpack.c.l.b16 %v3951
        %v3999 = vunpack.c.h.b16 %v3951
        %v4000 = vpack.c.b16 %v3970, %v3968
        %v4001 = vpack.c.b16 %v3971, %v3969
        %v4002 = vpack.c.b16 %v3974, %v3972
        %v4003 = vpack.c.b16 %v3975, %v3973
        %v4004 = vpack.c.b16 %v3978, %v3976
        %v4005 = vpack.c.b16 %v3979, %v3977
        %v4006 = vpack.c.b16 %v3982, %v3980
        %v4007 = vpack.c.b16 %v3983, %v3981
        %v4008 = vpack.c.b16 %v3986, %v3984
        %v4009 = vpack.c.b16 %v3987, %v3985
        %v4010 = vpack.c.b16 %v3990, %v3988
        %v4011 = vpack.c.b16 %v3991, %v3989
        %v4012 = vpack.c.b16 %v3994, %v3992
        %v4013 = vpack.c.b16 %v3995, %v3993
        %v4014 = vpack.c.b16 %v3998, %v3996
        %v4015 = vpack.c.b16 %v3999, %v3997
        %4032 = vmatprep.subr.bf16.mxu0 %v4001
        %4033 = vmatpush1.bf16.msra.mxu0 %v4000
        %4034 = vmatprep.subr.bf16.mxu0 %v4003
        %4035 = vmatpush1.bf16.msra.mxu0 %v4002
        %4036 = vmatprep.subr.bf16.mxu0 %v4005
        %4037 = vmatpush1.bf16.msra.mxu0 %v4004
        %4038 = vmatprep.subr.bf16.mxu0 %v4007
        %4039 = vmatpush1.bf16.msra.mxu0 %v4006
        %4040 = vmatprep.subr.bf16.mxu0 %v4009
        %4041 = vmatpush1.bf16.msra.mxu0 %v4008
        %4042 = vmatprep.subr.bf16.mxu0 %v4011
        %4043 = vmatpush1.bf16.msra.mxu0 %v4010
        %4044 = vmatprep.subr.bf16.mxu0 %v4013
        %4045 = vmatpush1.bf16.msra.mxu0 %v4012
        %4046 = vmatprep.subr.bf16.mxu0 %v4015
        %4047 = vmatpush1.bf16.msra.mxu0 %v4014
        %4048 = vmatprep.subr.bf16.mxu0 0
        %4049 = vmatpush1.bf16.msra.mxu0 0
        %4050 = vmatprep.subr.bf16.mxu0 0
        %4051 = vmatpush1.bf16.msra.mxu0 0
        %4052 = vmatprep.subr.bf16.mxu0 0
        %4053 = vmatpush1.bf16.msra.mxu0 0
        %4054 = vmatprep.subr.bf16.mxu0 0
        %4055 = vmatpush1.bf16.msra.mxu0 0
        %4056 = vmatprep.subr.bf16.mxu0 0
        %4057 = vmatpush1.bf16.msra.mxu0 0
        %4058 = vmatprep.subr.bf16.mxu0 0
        %4059 = vmatpush1.bf16.msra.mxu0 0
        %4060 = vmatprep.subr.bf16.mxu0 0
        %4061 = vmatpush1.bf16.msra.mxu0 0
        %4062 = vmatprep.subr.bf16.mxu0 0
        %4063 = vmatpush1.bf16.msra.mxu0 0
        %4064 = vmatprep.mubr.bf16.mxu0 0
        %4065 = vmatmul.mubr.bf16.gmra.mrb[0].mxu0 %v3934
        %v4066 = vpop.f32.mrb[0].mxu0
        %v4067 = vadd.f32 0.0, %v4066
        %v4068 = vpop.f32.mrb[0].mxu0
        %v4069 = vadd.f32 0.0, %v4068
        %v4070 = vpop.f32.mrb[0].mxu0
        %v4071 = vadd.f32 0.0, %v4070
        %v4072 = vpop.f32.mrb[0].mxu0
        %v4073 = vadd.f32 0.0, %v4072
        %4074 = vdwg.mxu0
        %v4091 = vunpack.c.l.b16 %v3916
        %v4092 = vunpack.c.h.b16 %v3916
        %v4093 = vunpack.c.l.b16 %v3917
        %v4094 = vunpack.c.h.b16 %v3917
        %v4095 = vunpack.c.l.b16 %v3918
        %v4096 = vunpack.c.h.b16 %v3918
        %v4097 = vunpack.c.l.b16 %v3919
        %v4098 = vunpack.c.h.b16 %v3919
        %v4099 = vunpack.c.l.b16 %v3920
        %v4100 = vunpack.c.h.b16 %v3920
        %v4101 = vunpack.c.l.b16 %v3921
        %v4102 = vunpack.c.h.b16 %v3921
        %v4103 = vunpack.c.l.b16 %v3922
        %v4104 = vunpack.c.h.b16 %v3922
        %v4105 = vunpack.c.l.b16 %v3923
        %v4106 = vunpack.c.h.b16 %v3923
        %v4107 = vunpack.c.l.b16 %v3924
        %v4108 = vunpack.c.h.b16 %v3924
        %v4109 = vunpack.c.l.b16 %v3925
        %v4110 = vunpack.c.h.b16 %v3925
        %v4111 = vunpack.c.l.b16 %v3926
        %v4112 = vunpack.c.h.b16 %v3926
        %v4113 = vunpack.c.l.b16 %v3927
        %v4114 = vunpack.c.h.b16 %v3927
        %v4115 = vunpack.c.l.b16 %v3928
        %v4116 = vunpack.c.h.b16 %v3928
        %v4117 = vunpack.c.l.b16 %v3929
        %v4118 = vunpack.c.h.b16 %v3929
        %v4119 = vunpack.c.l.b16 %v3930
        %v4120 = vunpack.c.h.b16 %v3930
        %v4121 = vunpack.c.l.b16 %v3931
        %v4122 = vunpack.c.h.b16 %v3931
        %v4123 = vpack.c.b16 %v4093, %v4091
        %v4124 = vpack.c.b16 %v4094, %v4092
        %v4125 = vpack.c.b16 %v4097, %v4095
        %v4126 = vpack.c.b16 %v4098, %v4096
        %v4127 = vpack.c.b16 %v4101, %v4099
        %v4128 = vpack.c.b16 %v4102, %v4100
        %v4129 = vpack.c.b16 %v4105, %v4103
        %v4130 = vpack.c.b16 %v4106, %v4104
        %v4131 = vpack.c.b16 %v4109, %v4107
        %v4132 = vpack.c.b16 %v4110, %v4108
        %v4133 = vpack.c.b16 %v4113, %v4111
        %v4134 = vpack.c.b16 %v4114, %v4112
        %v4135 = vpack.c.b16 %v4117, %v4115
        %v4136 = vpack.c.b16 %v4118, %v4116
        %v4137 = vpack.c.b16 %v4121, %v4119
        %v4138 = vpack.c.b16 %v4122, %v4120
        %4155 = vmatprep.subr.bf16.mxu0 %v4124
        %4156 = vmatpush1.bf16.msra.mxu0 %v4123
        %4157 = vmatprep.subr.bf16.mxu0 %v4126
        %4158 = vmatpush1.bf16.msra.mxu0 %v4125
        %4159 = vmatprep.subr.bf16.mxu0 %v4128
        %4160 = vmatpush1.bf16.msra.mxu0 %v4127
        %4161 = vmatprep.subr.bf16.mxu0 %v4130
        %4162 = vmatpush1.bf16.msra.mxu0 %v4129
        %4163 = vmatprep.subr.bf16.mxu0 %v4132
        %4164 = vmatpush1.bf16.msra.mxu0 %v4131
        %4165 = vmatprep.subr.bf16.mxu0 %v4134
        %4166 = vmatpush1.bf16.msra.mxu0 %v4133
        %4167 = vmatprep.subr.bf16.mxu0 %v4136
        %4168 = vmatpush1.bf16.msra.mxu0 %v4135
        %4169 = vmatprep.subr.bf16.mxu0 %v4138
        %4170 = vmatpush1.bf16.msra.mxu0 %v4137
        %4171 = vmatprep.subr.bf16.mxu0 0
        %4172 = vmatpush1.bf16.msra.mxu0 0
        %4173 = vmatprep.subr.bf16.mxu0 0
        %4174 = vmatpush1.bf16.msra.mxu0 0
        %4175 = vmatprep.subr.bf16.mxu0 0
        %4176 = vmatpush1.bf16.msra.mxu0 0
        %4177 = vmatprep.subr.bf16.mxu0 0
        %4178 = vmatpush1.bf16.msra.mxu0 0
        %4179 = vmatprep.subr.bf16.mxu0 0
        %4180 = vmatpush1.bf16.msra.mxu0 0
        %4181 = vmatprep.subr.bf16.mxu0 0
        %4182 = vmatpush1.bf16.msra.mxu0 0
        %4183 = vmatprep.subr.bf16.mxu0 0
        %4184 = vmatpush1.bf16.msra.mxu0 0
        %4185 = vmatprep.subr.bf16.mxu0 0
        %4186 = vmatpush1.bf16.msra.mxu0 0
        %4187 = vmatprep.mubr.bf16.mxu0 0
        %4188 = vmatmul.mubr.bf16.gmra.mrb[0].mxu0 %v3914
        %v4189 = vpop.f32.mrb[0].mxu0
        %v4190 = vadd.f32 %v4067, %v4189
        %v4191 = vpop.f32.mrb[0].mxu0
        %v4192 = vadd.f32 %v4069, %v4191
        %v4193 = vpop.f32.mrb[0].mxu0
        %v4194 = vadd.f32 %v4071, %v4193
        %v4195 = vpop.f32.mrb[0].mxu0
        %v4196 = vadd.f32 %v4073, %v4195
        %4197 = vdwg.mxu0
        %v4198 = vld [vmem:[#allocation2 + $0x10] sm:$0xff]
        %v4199 = vld [vmem:[#allocation2 + $0x18] sm:$0xff]
        %v4200 = vpack.c.bf16 %v4199, %v4198
        %s4201 = scalar_lea.vmem [#allocation6], 2816
        %v4202 = vld [vmem:[%s4201] sm:$0xff]
        %v4203 = vld [vmem:[%s4201 + $0x8] sm:$0xff]
        %v4204 = vld [vmem:[%s4201 + $0x10] sm:$0xff]
        %v4205 = vld [vmem:[%s4201 + $0x18] sm:$0xff]
        %v4206 = vld [vmem:[%s4201 + $0x20] sm:$0xff]
        %v4207 = vld [vmem:[%s4201 + $0x28] sm:$0xff]
        %v4208 = vld [vmem:[%s4201 + $0x30] sm:$0xff]
        %v4209 = vld [vmem:[%s4201 + $0x38] sm:$0xff]
        %v4210 = vld [vmem:[%s4201 + $0x40] sm:$0xff]
        %v4211 = vld [vmem:[%s4201 + $0x48] sm:$0xff]
        %v4212 = vld [vmem:[%s4201 + $0x50] sm:$0xff]
        %v4213 = vld [vmem:[%s4201 + $0x58] sm:$0xff]
        %v4214 = vld [vmem:[%s4201 + $0x60] sm:$0xff]
        %v4215 = vld [vmem:[%s4201 + $0x68] sm:$0xff]
        %v4216 = vld [vmem:[%s4201 + $0x70] sm:$0xff]
        %v4217 = vld [vmem:[%s4201 + $0x78] sm:$0xff]
        %v4234 = vunpack.c.l.b16 %v4202
        %v4235 = vunpack.c.h.b16 %v4202
        %v4236 = vunpack.c.l.b16 %v4203
        %v4237 = vunpack.c.h.b16 %v4203
        %v4238 = vunpack.c.l.b16 %v4204
        %v4239 = vunpack.c.h.b16 %v4204
        %v4240 = vunpack.c.l.b16 %v4205
        %v4241 = vunpack.c.h.b16 %v4205
        %v4242 = vunpack.c.l.b16 %v4206
        %v4243 = vunpack.c.h.b16 %v4206
        %v4244 = vunpack.c.l.b16 %v4207
        %v4245 = vunpack.c.h.b16 %v4207
        %v4246 = vunpack.c.l.b16 %v4208
        %v4247 = vunpack.c.h.b16 %v4208
        %v4248 = vunpack.c.l.b16 %v4209
        %v4249 = vunpack.c.h.b16 %v4209
        %v4250 = vunpack.c.l.b16 %v4210
        %v4251 = vunpack.c.h.b16 %v4210
        %v4252 = vunpack.c.l.b16 %v4211
        %v4253 = vunpack.c.h.b16 %v4211
        %v4254 = vunpack.c.l.b16 %v4212
        %v4255 = vunpack.c.h.b16 %v4212
        %v4256 = vunpack.c.l.b16 %v4213
        %v4257 = vunpack.c.h.b16 %v4213
        %v4258 = vunpack.c.l.b16 %v4214
        %v4259 = vunpack.c.h.b16 %v4214
        %v4260 = vunpack.c.l.b16 %v4215
        %v4261 = vunpack.c.h.b16 %v4215
        %v4262 = vunpack.c.l.b16 %v4216
        %v4263 = vunpack.c.h.b16 %v4216
        %v4264 = vunpack.c.l.b16 %v4217
        %v4265 = vunpack.c.h.b16 %v4217
        %v4266 = vpack.c.b16 %v4236, %v4234
        %v4267 = vpack.c.b16 %v4237, %v4235
        %v4268 = vpack.c.b16 %v4240, %v4238
        %v4269 = vpack.c.b16 %v4241, %v4239
        %v4270 = vpack.c.b16 %v4244, %v4242
        %v4271 = vpack.c.b16 %v4245, %v4243
        %v4272 = vpack.c.b16 %v4248, %v4246
        %v4273 = vpack.c.b16 %v4249, %v4247
        %v4274 = vpack.c.b16 %v4252, %v4250
        %v4275 = vpack.c.b16 %v4253, %v4251
        %v4276 = vpack.c.b16 %v4256, %v4254
        %v4277 = vpack.c.b16 %v4257, %v4255
        %v4278 = vpack.c.b16 %v4260, %v4258
        %v4279 = vpack.c.b16 %v4261, %v4259
        %v4280 = vpack.c.b16 %v4264, %v4262
        %v4281 = vpack.c.b16 %v4265, %v4263
        %4298 = vmatprep.subr.bf16.mxu0 %v4267
        %4299 = vmatpush1.bf16.msra.mxu0 %v4266
        %4300 = vmatprep.subr.bf16.mxu0 %v4269
        %4301 = vmatpush1.bf16.msra.mxu0 %v4268
        %4302 = vmatprep.subr.bf16.mxu0 %v4271
        %4303 = vmatpush1.bf16.msra.mxu0 %v4270
        %4304 = vmatprep.subr.bf16.mxu0 %v4273
        %4305 = vmatpush1.bf16.msra.mxu0 %v4272
        %4306 = vmatprep.subr.bf16.mxu0 %v4275
        %4307 = vmatpush1.bf16.msra.mxu0 %v4274
        %4308 = vmatprep.subr.bf16.mxu0 %v4277
        %4309 = vmatpush1.bf16.msra.mxu0 %v4276
        %4310 = vmatprep.subr.bf16.mxu0 %v4279
        %4311 = vmatpush1.bf16.msra.mxu0 %v4278
        %4312 = vmatprep.subr.bf16.mxu0 %v4281
        %4313 = vmatpush1.bf16.msra.mxu0 %v4280
        %4314 = vmatprep.subr.bf16.mxu0 0
        %4315 = vmatpush1.bf16.msra.mxu0 0
        %4316 = vmatprep.subr.bf16.mxu0 0
        %4317 = vmatpush1.bf16.msra.mxu0 0
        %4318 = vmatprep.subr.bf16.mxu0 0
        %4319 = vmatpush1.bf16.msra.mxu0 0
        %4320 = vmatprep.subr.bf16.mxu0 0
        %4321 = vmatpush1.bf16.msra.mxu0 0
        %4322 = vmatprep.subr.bf16.mxu0 0
        %4323 = vmatpush1.bf16.msra.mxu0 0
        %4324 = vmatprep.subr.bf16.mxu0 0
        %4325 = vmatpush1.bf16.msra.mxu0 0
        %4326 = vmatprep.subr.bf16.mxu0 0
        %4327 = vmatpush1.bf16.msra.mxu0 0
        %4328 = vmatprep.subr.bf16.mxu0 0
        %4329 = vmatpush1.bf16.msra.mxu0 0
        %4330 = vmatprep.mubr.bf16.mxu0 0
        %4331 = vmatmul.mubr.bf16.gmra.mrb[0].mxu0 %v4200
        %v4332 = vpop.f32.mrb[0].mxu0
        %v4333 = vadd.f32 0.0, %v4332
        %v4334 = vpop.f32.mrb[0].mxu0
        %v4335 = vadd.f32 0.0, %v4334
        %v4336 = vpop.f32.mrb[0].mxu0
        %v4337 = vadd.f32 0.0, %v4336
        %v4338 = vpop.f32.mrb[0].mxu0
        %v4339 = vadd.f32 0.0, %v4338
        %4340 = vdwg.mxu0
        %v4341 = vadd.f32 %v4190, %v4333
        %v4342 = vadd.f32 %v4192, %v4335
        %v4343 = vadd.f32 %v4194, %v4337
        %v4344 = vadd.f32 %v4196, %v4339
        %v4345 = vld [vmem:[#allocation2 + $0x12] sm:$0xff]
        %v4346 = vld [vmem:[#allocation2 + $0x1a] sm:$0xff]
        %v4347 = vpack.c.bf16 %v4346, %v4345
        %s4348 = scalar_lea.vmem [#allocation6], 2944
        %v4349 = vld [vmem:[%s4348] sm:$0xff]
        %v4350 = vld [vmem:[%s4348 + $0x8] sm:$0xff]
        %v4351 = vld [vmem:[%s4348 + $0x10] sm:$0xff]
        %v4352 = vld [vmem:[%s4348 + $0x18] sm:$0xff]
        %v4353 = vld [vmem:[%s4348 + $0x20] sm:$0xff]
        %v4354 = vld [vmem:[%s4348 + $0x28] sm:$0xff]
        %v4355 = vld [vmem:[%s4348 + $0x30] sm:$0xff]
        %v4356 = vld [vmem:[%s4348 + $0x38] sm:$0xff]
        %v4357 = vld [vmem:[%s4348 + $0x40] sm:$0xff]
        %v4358 = vld [vmem:[%s4348 + $0x48] sm:$0xff]
        %v4359 = vld [vmem:[%s4348 + $0x50] sm:$0xff]
        %v4360 = vld [vmem:[%s4348 + $0x58] sm:$0xff]
        %v4361 = vld [vmem:[%s4348 + $0x60] sm:$0xff]
        %v4362 = vld [vmem:[%s4348 + $0x68] sm:$0xff]
        %v4363 = vld [vmem:[%s4348 + $0x70] sm:$0xff]
        %v4364 = vld [vmem:[%s4348 + $0x78] sm:$0xff]
        %v4381 = vunpack.c.l.b16 %v4349
        %v4382 = vunpack.c.h.b16 %v4349
        %v4383 = vunpack.c.l.b16 %v4350
        %v4384 = vunpack.c.h.b16 %v4350
        %v4385 = vunpack.c.l.b16 %v4351
        %v4386 = vunpack.c.h.b16 %v4351
        %v4387 = vunpack.c.l.b16 %v4352
        %v4388 = vunpack.c.h.b16 %v4352
        %v4389 = vunpack.c.l.b16 %v4353
        %v4390 = vunpack.c.h.b16 %v4353
        %v4391 = vunpack.c.l.b16 %v4354
        %v4392 = vunpack.c.h.b16 %v4354
        %v4393 = vunpack.c.l.b16 %v4355
        %v4394 = vunpack.c.h.b16 %v4355
        %v4395 = vunpack.c.l.b16 %v4356
        %v4396 = vunpack.c.h.b16 %v4356
        %v4397 = vunpack.c.l.b16 %v4357
        %v4398 = vunpack.c.h.b16 %v4357
        %v4399 = vunpack.c.l.b16 %v4358
        %v4400 = vunpack.c.h.b16 %v4358
        %v4401 = vunpack.c.l.b16 %v4359
        %v4402 = vunpack.c.h.b16 %v4359
        %v4403 = vunpack.c.l.b16 %v4360
        %v4404 = vunpack.c.h.b16 %v4360
        %v4405 = vunpack.c.l.b16 %v4361
        %v4406 = vunpack.c.h.b16 %v4361
        %v4407 = vunpack.c.l.b16 %v4362
        %v4408 = vunpack.c.h.b16 %v4362
        %v4409 = vunpack.c.l.b16 %v4363
        %v4410 = vunpack.c.h.b16 %v4363
        %v4411 = vunpack.c.l.b16 %v4364
        %v4412 = vunpack.c.h.b16 %v4364
        %v4413 = vpack.c.b16 %v4383, %v4381
        %v4414 = vpack.c.b16 %v4384, %v4382
        %v4415 = vpack.c.b16 %v4387, %v4385
        %v4416 = vpack.c.b16 %v4388, %v4386
        %v4417 = vpack.c.b16 %v4391, %v4389
        %v4418 = vpack.c.b16 %v4392, %v4390
        %v4419 = vpack.c.b16 %v4395, %v4393
        %v4420 = vpack.c.b16 %v4396, %v4394
        %v4421 = vpack.c.b16 %v4399, %v4397
        %v4422 = vpack.c.b16 %v4400, %v4398
        %v4423 = vpack.c.b16 %v4403, %v4401
        %v4424 = vpack.c.b16 %v4404, %v4402
        %v4425 = vpack.c.b16 %v4407, %v4405
        %v4426 = vpack.c.b16 %v4408, %v4406
        %v4427 = vpack.c.b16 %v4411, %v4409
        %v4428 = vpack.c.b16 %v4412, %v4410
        %4445 = vmatprep.subr.bf16.mxu0 %v4414
        %4446 = vmatpush1.bf16.msra.mxu0 %v4413
        %4447 = vmatprep.subr.bf16.mxu0 %v4416
        %4448 = vmatpush1.bf16.msra.mxu0 %v4415
        %4449 = vmatprep.subr.bf16.mxu0 %v4418
        %4450 = vmatpush1.bf16.msra.mxu0 %v4417
        %4451 = vmatprep.subr.bf16.mxu0 %v4420
        %4452 = vmatpush1.bf16.msra.mxu0 %v4419
        %4453 = vmatprep.subr.bf16.mxu0 %v4422
        %4454 = vmatpush1.bf16.msra.mxu0 %v4421
        %4455 = vmatprep.subr.bf16.mxu0 %v4424
        %4456 = vmatpush1.bf16.msra.mxu0 %v4423
        %4457 = vmatprep.subr.bf16.mxu0 %v4426
        %4458 = vmatpush1.bf16.msra.mxu0 %v4425
        %4459 = vmatprep.subr.bf16.mxu0 %v4428
        %4460 = vmatpush1.bf16.msra.mxu0 %v4427
        %4461 = vmatprep.subr.bf16.mxu0 0
        %4462 = vmatpush1.bf16.msra.mxu0 0
        %4463 = vmatprep.subr.bf16.mxu0 0
        %4464 = vmatpush1.bf16.msra.mxu0 0
        %4465 = vmatprep.subr.bf16.mxu0 0
        %4466 = vmatpush1.bf16.msra.mxu0 0
        %4467 = vmatprep.subr.bf16.mxu0 0
        %4468 = vmatpush1.bf16.msra.mxu0 0
        %4469 = vmatprep.subr.bf16.mxu0 0
        %4470 = vmatpush1.bf16.msra.mxu0 0
        %4471 = vmatprep.subr.bf16.mxu0 0
        %4472 = vmatpush1.bf16.msra.mxu0 0
        %4473 = vmatprep.subr.bf16.mxu0 0
        %4474 = vmatpush1.bf16.msra.mxu0 0
        %4475 = vmatprep.subr.bf16.mxu0 0
        %4476 = vmatpush1.bf16.msra.mxu0 0
        %4477 = vmatprep.mubr.bf16.mxu0 0
        %4478 = vmatmul.mubr.bf16.gmra.mrb[0].mxu0 %v4347
        %v4479 = vpop.f32.mrb[0].mxu0
        %v4480 = vadd.f32 0.0, %v4479
        %v4481 = vpop.f32.mrb[0].mxu0
        %v4482 = vadd.f32 0.0, %v4481
        %v4483 = vpop.f32.mrb[0].mxu0
        %v4484 = vadd.f32 0.0, %v4483
        %v4485 = vpop.f32.mrb[0].mxu0
        %v4486 = vadd.f32 0.0, %v4485
        %4487 = vdwg.mxu0
        %v4488 = vadd.f32 %v4341, %v4480
        %v4489 = vadd.f32 %v4342, %v4482
        %v4490 = vadd.f32 %v4343, %v4484
        %v4491 = vadd.f32 %v4344, %v4486
        %v4492 = vld [vmem:[#allocation2 + $0x14] sm:$0xff]
        %v4493 = vld [vmem:[#allocation2 + $0x1c] sm:$0xff]
        %v4494 = vpack.c.bf16 %v4493, %v4492
        %s4495 = scalar_lea.vmem [#allocation6], 3072
        %v4496 = vld [vmem:[%s4495] sm:$0xff]
        %v4497 = vld [vmem:[%s4495 + $0x8] sm:$0xff]
        %v4498 = vld [vmem:[%s4495 + $0x10] sm:$0xff]
        %v4499 = vld [vmem:[%s4495 + $0x18] sm:$0xff]
        %v4500 = vld [vmem:[%s4495 + $0x20] sm:$0xff]
        %v4501 = vld [vmem:[%s4495 + $0x28] sm:$0xff]
        %v4502 = vld [vmem:[%s4495 + $0x30] sm:$0xff]
        %v4503 = vld [vmem:[%s4495 + $0x38] sm:$0xff]
        %v4504 = vld [vmem:[%s4495 + $0x40] sm:$0xff]
        %v4505 = vld [vmem:[%s4495 + $0x48] sm:$0xff]
        %v4506 = vld [vmem:[%s4495 + $0x50] sm:$0xff]
        %v4507 = vld [vmem:[%s4495 + $0x58] sm:$0xff]
        %v4508 = vld [vmem:[%s4495 + $0x60] sm:$0xff]
        %v4509 = vld [vmem:[%s4495 + $0x68] sm:$0xff]
        %v4510 = vld [vmem:[%s4495 + $0x70] sm:$0xff]
        %v4511 = vld [vmem:[%s4495 + $0x78] sm:$0xff]
        %v4528 = vunpack.c.l.b16 %v4496
        %v4529 = vunpack.c.h.b16 %v4496
        %v4530 = vunpack.c.l.b16 %v4497
        %v4531 = vunpack.c.h.b16 %v4497
        %v4532 = vunpack.c.l.b16 %v4498
        %v4533 = vunpack.c.h.b16 %v4498
        %v4534 = vunpack.c.l.b16 %v4499
        %v4535 = vunpack.c.h.b16 %v4499
        %v4536 = vunpack.c.l.b16 %v4500
        %v4537 = vunpack.c.h.b16 %v4500
        %v4538 = vunpack.c.l.b16 %v4501
        %v4539 = vunpack.c.h.b16 %v4501
        %v4540 = vunpack.c.l.b16 %v4502
        %v4541 = vunpack.c.h.b16 %v4502
        %v4542 = vunpack.c.l.b16 %v4503
        %v4543 = vunpack.c.h.b16 %v4503
        %v4544 = vunpack.c.l.b16 %v4504
        %v4545 = vunpack.c.h.b16 %v4504
        %v4546 = vunpack.c.l.b16 %v4505
        %v4547 = vunpack.c.h.b16 %v4505
        %v4548 = vunpack.c.l.b16 %v4506
        %v4549 = vunpack.c.h.b16 %v4506
        %v4550 = vunpack.c.l.b16 %v4507
        %v4551 = vunpack.c.h.b16 %v4507
        %v4552 = vunpack.c.l.b16 %v4508
        %v4553 = vunpack.c.h.b16 %v4508
        %v4554 = vunpack.c.l.b16 %v4509
        %v4555 = vunpack.c.h.b16 %v4509
        %v4556 = vunpack.c.l.b16 %v4510
        %v4557 = vunpack.c.h.b16 %v4510
        %v4558 = vunpack.c.l.b16 %v4511
        %v4559 = vunpack.c.h.b16 %v4511
        %v4560 = vpack.c.b16 %v4530, %v4528
        %v4561 = vpack.c.b16 %v4531, %v4529
        %v4562 = vpack.c.b16 %v4534, %v4532
        %v4563 = vpack.c.b16 %v4535, %v4533
        %v4564 = vpack.c.b16 %v4538, %v4536
        %v4565 = vpack.c.b16 %v4539, %v4537
        %v4566 = vpack.c.b16 %v4542, %v4540
        %v4567 = vpack.c.b16 %v4543, %v4541
        %v4568 = vpack.c.b16 %v4546, %v4544
        %v4569 = vpack.c.b16 %v4547, %v4545
        %v4570 = vpack.c.b16 %v4550, %v4548
        %v4571 = vpack.c.b16 %v4551, %v4549
        %v4572 = vpack.c.b16 %v4554, %v4552
        %v4573 = vpack.c.b16 %v4555, %v4553
        %v4574 = vpack.c.b16 %v4558, %v4556
        %v4575 = vpack.c.b16 %v4559, %v4557
        %4592 = vmatprep.subr.bf16.mxu0 %v4561
        %4593 = vmatpush1.bf16.msra.mxu0 %v4560
        %4594 = vmatprep.subr.bf16.mxu0 %v4563
        %4595 = vmatpush1.bf16.msra.mxu0 %v4562
        %4596 = vmatprep.subr.bf16.mxu0 %v4565
        %4597 = vmatpush1.bf16.msra.mxu0 %v4564
        %4598 = vmatprep.subr.bf16.mxu0 %v4567
        %4599 = vmatpush1.bf16.msra.mxu0 %v4566
        %4600 = vmatprep.subr.bf16.mxu0 %v4569
        %4601 = vmatpush1.bf16.msra.mxu0 %v4568
        %4602 = vmatprep.subr.bf16.mxu0 %v4571
        %4603 = vmatpush1.bf16.msra.mxu0 %v4570
        %4604 = vmatprep.subr.bf16.mxu0 %v4573
        %4605 = vmatpush1.bf16.msra.mxu0 %v4572
        %4606 = vmatprep.subr.bf16.mxu0 %v4575
        %4607 = vmatpush1.bf16.msra.mxu0 %v4574
        %4608 = vmatprep.subr.bf16.mxu0 0
        %4609 = vmatpush1.bf16.msra.mxu0 0
        %4610 = vmatprep.subr.bf16.mxu0 0
        %4611 = vmatpush1.bf16.msra.mxu0 0
        %4612 = vmatprep.subr.bf16.mxu0 0
        %4613 = vmatpush1.bf16.msra.mxu0 0
        %4614 = vmatprep.subr.bf16.mxu0 0
        %4615 = vmatpush1.bf16.msra.mxu0 0
        %4616 = vmatprep.subr.bf16.mxu0 0
        %4617 = vmatpush1.bf16.msra.mxu0 0
        %4618 = vmatprep.subr.bf16.mxu0 0
        %4619 = vmatpush1.bf16.msra.mxu0 0
        %4620 = vmatprep.subr.bf16.mxu0 0
        %4621 = vmatpush1.bf16.msra.mxu0 0
        %4622 = vmatprep.subr.bf16.mxu0 0
        %4623 = vmatpush1.bf16.msra.mxu0 0
        %4624 = vmatprep.mubr.bf16.mxu0 0
        %4625 = vmatmul.mubr.bf16.gmra.mrb[0].mxu0 %v4494
        %v4626 = vpop.f32.mrb[0].mxu0
        %v4627 = vadd.f32 0.0, %v4626
        %v4628 = vpop.f32.mrb[0].mxu0
        %v4629 = vadd.f32 0.0, %v4628
        %v4630 = vpop.f32.mrb[0].mxu0
        %v4631 = vadd.f32 0.0, %v4630
        %v4632 = vpop.f32.mrb[0].mxu0
        %v4633 = vadd.f32 0.0, %v4632
        %4634 = vdwg.mxu0
        %v4635 = vadd.f32 %v4488, %v4627
        %v4636 = vadd.f32 %v4489, %v4629
        %v4637 = vadd.f32 %v4490, %v4631
        %v4638 = vadd.f32 %v4491, %v4633
        %v4639 = vtanh.pop %v4635
        %v4640 = vtanh.pop %v4637
        %v4641 = vxor.u32 %v4636, 2147483648
        %v4642 = vxor.u32 %v4638, 2147483648
        %v4643 = vmul.f32 %v4641, 1.442695
        %v4644 = vpow.pop %v4643
        %v4645 = vmul.f32 %v4642, 1.442695
        %v4646 = vpow.pop %v4645
        %v4647 = vadd.f32 %v4644, 1.0
        %v4648 = vadd.f32 %v4646, 1.0
        %v4649 = vrcp.pop %v4647
        %v4650 = vmul.f32 1.0, %v4649
        %v4651 = vrcp.pop %v4648
        %v4652 = vmul.f32 1.0, %v4651
        %v4653 = vmul.f32 %v4639, %v4650
        %v4654 = vmul.f32 %v4640, %v4652
        %v4655 = vpack.c.bf16 %v4654, %v4653
        %s4656 = scalar_lea.vmem [#allocation8], 512
        %v4657 = vld [vmem:[%s4656] sm:$0xff]
        %v4658 = vld [vmem:[%s4656 + $0x8] sm:$0xff]
        %v4659 = vld [vmem:[%s4656 + $0x10] sm:$0xff]
        %v4660 = vld [vmem:[%s4656 + $0x18] sm:$0xff]
        %v4661 = vld [vmem:[%s4656 + $0x20] sm:$0xff]
        %v4662 = vld [vmem:[%s4656 + $0x28] sm:$0xff]
        %v4663 = vld [vmem:[%s4656 + $0x30] sm:$0xff]
        %v4664 = vld [vmem:[%s4656 + $0x38] sm:$0xff]
        %v4665 = vld [vmem:[%s4656 + $0x40] sm:$0xff]
        %v4666 = vld [vmem:[%s4656 + $0x48] sm:$0xff]
        %v4667 = vld [vmem:[%s4656 + $0x50] sm:$0xff]
        %v4668 = vld [vmem:[%s4656 + $0x58] sm:$0xff]
        %v4669 = vld [vmem:[%s4656 + $0x60] sm:$0xff]
        %v4670 = vld [vmem:[%s4656 + $0x68] sm:$0xff]
        %v4671 = vld [vmem:[%s4656 + $0x70] sm:$0xff]
        %v4672 = vld [vmem:[%s4656 + $0x78] sm:$0xff]
        %v4689 = vunpack.c.l.b16 %v4657
        %v4690 = vunpack.c.h.b16 %v4657
        %v4691 = vunpack.c.l.b16 %v4658
        %v4692 = vunpack.c.h.b16 %v4658
        %v4693 = vunpack.c.l.b16 %v4659
        %v4694 = vunpack.c.h.b16 %v4659
        %v4695 = vunpack.c.l.b16 %v4660
        %v4696 = vunpack.c.h.b16 %v4660
        %v4697 = vunpack.c.l.b16 %v4661
        %v4698 = vunpack.c.h.b16 %v4661
        %v4699 = vunpack.c.l.b16 %v4662
        %v4700 = vunpack.c.h.b16 %v4662
        %v4701 = vunpack.c.l.b16 %v4663
        %v4702 = vunpack.c.h.b16 %v4663
        %v4703 = vunpack.c.l.b16 %v4664
        %v4704 = vunpack.c.h.b16 %v4664
        %v4705 = vunpack.c.l.b16 %v4665
        %v4706 = vunpack.c.h.b16 %v4665
        %v4707 = vunpack.c.l.b16 %v4666
        %v4708 = vunpack.c.h.b16 %v4666
        %v4709 = vunpack.c.l.b16 %v4667
        %v4710 = vunpack.c.h.b16 %v4667
        %v4711 = vunpack.c.l.b16 %v4668
        %v4712 = vunpack.c.h.b16 %v4668
        %v4713 = vunpack.c.l.b16 %v4669
        %v4714 = vunpack.c.h.b16 %v4669
        %v4715 = vunpack.c.l.b16 %v4670
        %v4716 = vunpack.c.h.b16 %v4670
        %v4717 = vunpack.c.l.b16 %v4671
        %v4718 = vunpack.c.h.b16 %v4671
        %v4719 = vunpack.c.l.b16 %v4672
        %v4720 = vunpack.c.h.b16 %v4672
        %v4721 = vpack.c.b16 %v4691, %v4689
        %v4722 = vpack.c.b16 %v4692, %v4690
        %v4723 = vpack.c.b16 %v4695, %v4693
        %v4724 = vpack.c.b16 %v4696, %v4694
        %v4725 = vpack.c.b16 %v4699, %v4697
        %v4726 = vpack.c.b16 %v4700, %v4698
        %v4727 = vpack.c.b16 %v4703, %v4701
        %v4728 = vpack.c.b16 %v4704, %v4702
        %v4729 = vpack.c.b16 %v4707, %v4705
        %v4730 = vpack.c.b16 %v4708, %v4706
        %v4731 = vpack.c.b16 %v4711, %v4709
        %v4732 = vpack.c.b16 %v4712, %v4710
        %v4733 = vpack.c.b16 %v4715, %v4713
        %v4734 = vpack.c.b16 %v4716, %v4714
        %v4735 = vpack.c.b16 %v4719, %v4717
        %v4736 = vpack.c.b16 %v4720, %v4718
        %4753 = vmatprep.subr.bf16.mxu0 %v4722
        %4754 = vmatpush1.bf16.msra.mxu0 %v4721
        %4755 = vmatprep.subr.bf16.mxu0 %v4724
        %4756 = vmatpush1.bf16.msra.mxu0 %v4723
        %4757 = vmatprep.subr.bf16.mxu0 %v4726
        %4758 = vmatpush1.bf16.msra.mxu0 %v4725
        %4759 = vmatprep.subr.bf16.mxu0 %v4728
        %4760 = vmatpush1.bf16.msra.mxu0 %v4727
        %4761 = vmatprep.subr.bf16.mxu0 %v4730
        %4762 = vmatpush1.bf16.msra.mxu0 %v4729
        %4763 = vmatprep.subr.bf16.mxu0 %v4732
        %4764 = vmatpush1.bf16.msra.mxu0 %v4731
        %4765 = vmatprep.subr.bf16.mxu0 %v4734
        %4766 = vmatpush1.bf16.msra.mxu0 %v4733
        %4767 = vmatprep.subr.bf16.mxu0 %v4736
        %4768 = vmatpush1.bf16.msra.mxu0 %v4735
        %4769 = vmatprep.subr.bf16.mxu0 0
        %4770 = vmatpush1.bf16.msra.mxu0 0
        %4771 = vmatprep.subr.bf16.mxu0 0
        %4772 = vmatpush1.bf16.msra.mxu0 0
        %4773 = vmatprep.subr.bf16.mxu0 0
        %4774 = vmatpush1.bf16.msra.mxu0 0
        %4775 = vmatprep.subr.bf16.mxu0 0
        %4776 = vmatpush1.bf16.msra.mxu0 0
        %4777 = vmatprep.subr.bf16.mxu0 0
        %4778 = vmatpush1.bf16.msra.mxu0 0
        %4779 = vmatprep.subr.bf16.mxu0 0
        %4780 = vmatpush1.bf16.msra.mxu0 0
        %4781 = vmatprep.subr.bf16.mxu0 0
        %4782 = vmatpush1.bf16.msra.mxu0 0
        %4783 = vmatprep.subr.bf16.mxu0 0
        %4784 = vmatpush1.bf16.msra.mxu0 0
        %4785 = vmatprep.mubr.bf16.mxu0 0
        %4786 = vmatmul.mubr.bf16.gmra.mrb[0].mxu0 %v4655
        %v4787 = vpop.f32.mrb[0].mxu0
        %v4788 = vadd.f32 0.0, %v4787
        %v4789 = vpop.f32.mrb[0].mxu0
        %v4790 = vadd.f32 0.0, %v4789
        %v4791 = vpop.f32.mrb[0].mxu0
        %v4792 = vadd.f32 0.0, %v4791
        %v4793 = vpop.f32.mrb[0].mxu0
        %v4794 = vadd.f32 0.0, %v4793
        %4795 = vdwg.mxu0
        %v4796 = vadd.f32 %v4788, %v4198
        %v4797 = vadd.f32 %v4792, %v4199
        %4798 = vst [vmem:[#allocation2 + $0x10] sm:$0xff] %v4796
        %4799 = vst [vmem:[#allocation2 + $0x18] sm:$0xff] %v4797
        %v4800 = vld [vmem:[%s232] sm:$0xff]
        %v4801 = vld [vmem:[%s232 + $0x8] sm:$0xff]
        %v4802 = vadd.f32 %v4800, %v4790
        %v4803 = vadd.f32 %v4801, %v4794
        %4804 = vst [vmem:[%s232] sm:$0xff] %v4802
        %4805 = vst [vmem:[%s232 + $0x8] sm:$0xff] %v4803
        %v4806 = vld [vmem:[#allocation2 + $0x6] sm:$0xff]
        %v4807 = vld [vmem:[#allocation2 + $0xe] sm:$0xff]
        %v4808 = vpack.c.bf16 %v4807, %v4806
        %s4809 = scalar_lea.vmem [#allocation6], 3200
        %v4810 = vld [vmem:[%s4809] sm:$0xff]
        %v4811 = vld [vmem:[%s4809 + $0x8] sm:$0xff]
        %v4812 = vld [vmem:[%s4809 + $0x10] sm:$0xff]
        %v4813 = vld [vmem:[%s4809 + $0x18] sm:$0xff]
        %v4814 = vld [vmem:[%s4809 + $0x20] sm:$0xff]
        %v4815 = vld [vmem:[%s4809 + $0x28] sm:$0xff]
        %v4816 = vld [vmem:[%s4809 + $0x30] sm:$0xff]
        %v4817 = vld [vmem:[%s4809 + $0x38] sm:$0xff]
        %v4818 = vld [vmem:[%s4809 + $0x40] sm:$0xff]
        %v4819 = vld [vmem:[%s4809 + $0x48] sm:$0xff]
        %v4820 = vld [vmem:[%s4809 + $0x50] sm:$0xff]
        %v4821 = vld [vmem:[%s4809 + $0x58] sm:$0xff]
        %v4822 = vld [vmem:[%s4809 + $0x60] sm:$0xff]
        %v4823 = vld [vmem:[%s4809 + $0x68] sm:$0xff]
        %v4824 = vld [vmem:[%s4809 + $0x70] sm:$0xff]
        %v4825 = vld [vmem:[%s4809 + $0x78] sm:$0xff]
        %v4826 = vld [vmem:[#allocation2 + $0xb] sm:$0xff]
        %v4827 = vld [vmem:[#allocation2 + $0x13] sm:$0xff]
        %v4828 = vpack.c.bf16 %v4827, %v4826
        %s4829 = scalar_lea.vmem [#allocation6], 3328
        %v4830 = vld [vmem:[%s4829] sm:$0xff]
        %v4831 = vld [vmem:[%s4829 + $0x8] sm:$0xff]
        %v4832 = vld [vmem:[%s4829 + $0x10] sm:$0xff]
        %v4833 = vld [vmem:[%s4829 + $0x18] sm:$0xff]
        %v4834 = vld [vmem:[%s4829 + $0x20] sm:$0xff]
        %v4835 = vld [vmem:[%s4829 + $0x28] sm:$0xff]
        %v4836 = vld [vmem:[%s4829 + $0x30] sm:$0xff]
        %v4837 = vld [vmem:[%s4829 + $0x38] sm:$0xff]
        %v4838 = vld [vmem:[%s4829 + $0x40] sm:$0xff]
        %v4839 = vld [vmem:[%s4829 + $0x48] sm:$0xff]
        %v4840 = vld [vmem:[%s4829 + $0x50] sm:$0xff]
        %v4841 = vld [vmem:[%s4829 + $0x58] sm:$0xff]
        %v4842 = vld [vmem:[%s4829 + $0x60] sm:$0xff]
        %v4843 = vld [vmem:[%s4829 + $0x68] sm:$0xff]
        %v4844 = vld [vmem:[%s4829 + $0x70] sm:$0xff]
        %v4845 = vld [vmem:[%s4829 + $0x78] sm:$0xff]
        %v4862 = vunpack.c.l.b16 %v4830
        %v4863 = vunpack.c.h.b16 %v4830
        %v4864 = vunpack.c.l.b16 %v4831
        %v4865 = vunpack.c.h.b16 %v4831
        %v4866 = vunpack.c.l.b16 %v4832
        %v4867 = vunpack.c.h.b16 %v4832
        %v4868 = vunpack.c.l.b16 %v4833
        %v4869 = vunpack.c.h.b16 %v4833
        %v4870 = vunpack.c.l.b16 %v4834
        %v4871 = vunpack.c.h.b16 %v4834
        %v4872 = vunpack.c.l.b16 %v4835
        %v4873 = vunpack.c.h.b16 %v4835
        %v4874 = vunpack.c.l.b16 %v4836
        %v4875 = vunpack.c.h.b16 %v4836
        %v4876 = vunpack.c.l.b16 %v4837
        %v4877 = vunpack.c.h.b16 %v4837
        %v4878 = vunpack.c.l.b16 %v4838
        %v4879 = vunpack.c.h.b16 %v4838
        %v4880 = vunpack.c.l.b16 %v4839
        %v4881 = vunpack.c.h.b16 %v4839
        %v4882 = vunpack.c.l.b16 %v4840
        %v4883 = vunpack.c.h.b16 %v4840
        %v4884 = vunpack.c.l.b16 %v4841
        %v4885 = vunpack.c.h.b16 %v4841
        %v4886 = vunpack.c.l.b16 %v4842
        %v4887 = vunpack.c.h.b16 %v4842
        %v4888 = vunpack.c.l.b16 %v4843
        %v4889 = vunpack.c.h.b16 %v4843
        %v4890 = vunpack.c.l.b16 %v4844
        %v4891 = vunpack.c.h.b16 %v4844
        %v4892 = vunpack.c.l.b16 %v4845
        %v4893 = vunpack.c.h.b16 %v4845
        %v4894 = vpack.c.b16 %v4864, %v4862
        %v4895 = vpack.c.b16 %v4865, %v4863
        %v4896 = vpack.c.b16 %v4868, %v4866
        %v4897 = vpack.c.b16 %v4869, %v4867
        %v4898 = vpack.c.b16 %v4872, %v4870
        %v4899 = vpack.c.b16 %v4873, %v4871
        %v4900 = vpack.c.b16 %v4876, %v4874
        %v4901 = vpack.c.b16 %v4877, %v4875
        %v4902 = vpack.c.b16 %v4880, %v4878
        %v4903 = vpack.c.b16 %v4881, %v4879
        %v4904 = vpack.c.b16 %v4884, %v4882
        %v4905 = vpack.c.b16 %v4885, %v4883
        %v4906 = vpack.c.b16 %v4888, %v4886
        %v4907 = vpack.c.b16 %v4889, %v4887
        %v4908 = vpack.c.b16 %v4892, %v4890
        %v4909 = vpack.c.b16 %v4893, %v4891
        %4926 = vmatprep.subr.bf16.mxu0 %v4895
        %4927 = vmatpush1.bf16.msra.mxu0 %v4894
        %4928 = vmatprep.subr.bf16.mxu0 %v4897
        %4929 = vmatpush1.bf16.msra.mxu0 %v4896
        %4930 = vmatprep.subr.bf16.mxu0 %v4899
        %4931 = vmatpush1.bf16.msra.mxu0 %v4898
        %4932 = vmatprep.subr.bf16.mxu0 %v4901
        %4933 = vmatpush1.bf16.msra.mxu0 %v4900
        %4934 = vmatprep.subr.bf16.mxu0 %v4903
        %4935 = vmatpush1.bf16.msra.mxu0 %v4902
        %4936 = vmatprep.subr.bf16.mxu0 %v4905
        %4937 = vmatpush1.bf16.msra.mxu0 %v4904
        %4938 = vmatprep.subr.bf16.mxu0 %v4907
        %4939 = vmatpush1.bf16.msra.mxu0 %v4906
        %4940 = vmatprep.subr.bf16.mxu0 %v4909
        %4941 = vmatpush1.bf16.msra.mxu0 %v4908
        %4942 = vmatprep.subr.bf16.mxu0 0
        %4943 = vmatpush1.bf16.msra.mxu0 0
        %4944 = vmatprep.subr.bf16.mxu0 0
        %4945 = vmatpush1.bf16.msra.mxu0 0
        %4946 = vmatprep.subr.bf16.mxu0 0
        %4947 = vmatpush1.bf16.msra.mxu0 0
        %4948 = vmatprep.subr.bf16.mxu0 0
        %4949 = vmatpush1.bf16.msra.mxu0 0
        %4950 = vmatprep.subr.bf16.mxu0 0
        %4951 = vmatpush1.bf16.msra.mxu0 0
        %4952 = vmatprep.subr.bf16.mxu0 0
        %4953 = vmatpush1.bf16.msra.mxu0 0
        %4954 = vmatprep.subr.bf16.mxu0 0
        %4955 = vmatpush1.bf16.msra.mxu0 0
        %4956 = vmatprep.subr.bf16.mxu0 0
        %4957 = vmatpush1.bf16.msra.mxu0 0
        %4958 = vmatprep.mubr.bf16.mxu0 0
        %4959 = vmatmul.mubr.bf16.gmra.mrb[0].mxu0 %v4828
        %v4960 = vpop.f32.mrb[0].mxu0
        %v4961 = vadd.f32 0.0, %v4960
        %v4962 = vpop.f32.mrb[0].mxu0
        %v4963 = vadd.f32 0.0, %v4962
        %v4964 = vpop.f32.mrb[0].mxu0
        %v4965 = vadd.f32 0.0, %v4964
        %v4966 = vpop.f32.mrb[0].mxu0
        %v4967 = vadd.f32 0.0, %v4966
        %4968 = vdwg.mxu0
        %v4985 = vunpack.c.l.b16 %v4810
        %v4986 = vunpack.c.h.b16 %v4810
        %v4987 = vunpack.c.l.b16 %v4811
        %v4988 = vunpack.c.h.b16 %v4811
        %v4989 = vunpack.c.l.b16 %v4812
        %v4990 = vunpack.c.h.b16 %v4812
        %v4991 = vunpack.c.l.b16 %v4813
        %v4992 = vunpack.c.h.b16 %v4813
        %v4993 = vunpack.c.l.b16 %v4814
        %v4994 = vunpack.c.h.b16 %v4814
        %v4995 = vunpack.c.l.b16 %v4815
        %v4996 = vunpack.c.h.b16 %v4815
        %v4997 = vunpack.c.l.b16 %v4816
        %v4998 = vunpack.c.h.b16 %v4816
        %v4999 = vunpack.c.l.b16 %v4817
        %v5000 = vunpack.c.h.b16 %v4817
        %v5001 = vunpack.c.l.b16 %v4818
        %v5002 = vunpack.c.h.b16 %v4818
        %v5003 = vunpack.c.l.b16 %v4819
        %v5004 = vunpack.c.h.b16 %v4819
        %v5005 = vunpack.c.l.b16 %v4820
        %v5006 = vunpack.c.h.b16 %v4820
        %v5007 = vunpack.c.l.b16 %v4821
        %v5008 = vunpack.c.h.b16 %v4821
        %v5009 = vunpack.c.l.b16 %v4822
        %v5010 = vunpack.c.h.b16 %v4822
        %v5011 = vunpack.c.l.b16 %v4823
        %v5012 = vunpack.c.h.b16 %v4823
        %v5013 = vunpack.c.l.b16 %v4824
        %v5014 = vunpack.c.h.b16 %v4824
        %v5015 = vunpack.c.l.b16 %v4825
        %v5016 = vunpack.c.h.b16 %v4825
        %v5017 = vpack.c.b16 %v4987, %v4985
        %v5018 = vpack.c.b16 %v4988, %v4986
        %v5019 = vpack.c.b16 %v4991, %v4989
        %v5020 = vpack.c.b16 %v4992, %v4990
        %v5021 = vpack.c.b16 %v4995, %v4993
        %v5022 = vpack.c.b16 %v4996, %v4994
        %v5023 = vpack.c.b16 %v4999, %v4997
        %v5024 = vpack.c.b16 %v5000, %v4998
        %v5025 = vpack.c.b16 %v5003, %v5001
        %v5026 = vpack.c.b16 %v5004, %v5002
        %v5027 = vpack.c.b16 %v5007, %v5005
        %v5028 = vpack.c.b16 %v5008, %v5006
        %v5029 = vpack.c.b16 %v5011, %v5009
        %v5030 = vpack.c.b16 %v5012, %v5010
        %v5031 = vpack.c.b16 %v5015, %v5013
        %v5032 = vpack.c.b16 %v5016, %v5014
        %5049 = vmatprep.subr.bf16.mxu0 %v5018
        %5050 = vmatpush1.bf16.msra.mxu0 %v5017
        %5051 = vmatprep.subr.bf16.mxu0 %v5020
        %5052 = vmatpush1.bf16.msra.mxu0 %v5019
        %5053 = vmatprep.subr.bf16.mxu0 %v5022
        %5054 = vmatpush1.bf16.msra.mxu0 %v5021
        %5055 = vmatprep.subr.bf16.mxu0 %v5024
        %5056 = vmatpush1.bf16.msra.mxu0 %v5023
        %5057 = vmatprep.subr.bf16.mxu0 %v5026
        %5058 = vmatpush1.bf16.msra.mxu0 %v5025
        %5059 = vmatprep.subr.bf16.mxu0 %v5028
        %5060 = vmatpush1.bf16.msra.mxu0 %v5027
        %5061 = vmatprep.subr.bf16.mxu0 %v5030
        %5062 = vmatpush1.bf16.msra.mxu0 %v5029
        %5063 = vmatprep.subr.bf16.mxu0 %v5032
        %5064 = vmatpush1.bf16.msra.mxu0 %v5031
        %5065 = vmatprep.subr.bf16.mxu0 0
        %5066 = vmatpush1.bf16.msra.mxu0 0
        %5067 = vmatprep.subr.bf16.mxu0 0
        %5068 = vmatpush1.bf16.msra.mxu0 0
        %5069 = vmatprep.subr.bf16.mxu0 0
        %5070 = vmatpush1.bf16.msra.mxu0 0
        %5071 = vmatprep.subr.bf16.mxu0 0
        %5072 = vmatpush1.bf16.msra.mxu0 0
        %5073 = vmatprep.subr.bf16.mxu0 0
        %5074 = vmatpush1.bf16.msra.mxu0 0
        %5075 = vmatprep.subr.bf16.mxu0 0
        %5076 = vmatpush1.bf16.msra.mxu0 0
        %5077 = vmatprep.subr.bf16.mxu0 0
        %5078 = vmatpush1.bf16.msra.mxu0 0
        %5079 = vmatprep.subr.bf16.mxu0 0
        %5080 = vmatpush1.bf16.msra.mxu0 0
        %5081 = vmatprep.mubr.bf16.mxu0 0
        %5082 = vmatmul.mubr.bf16.gmra.mrb[0].mxu0 %v4808
        %v5083 = vpop.f32.mrb[0].mxu0
        %v5084 = vadd.f32 %v4961, %v5083
        %v5085 = vpop.f32.mrb[0].mxu0
        %v5086 = vadd.f32 %v4963, %v5085
        %v5087 = vpop.f32.mrb[0].mxu0
        %v5088 = vadd.f32 %v4965, %v5087
        %v5089 = vpop.f32.mrb[0].mxu0
        %v5090 = vadd.f32 %v4967, %v5089
        %5091 = vdwg.mxu0
        %v5092 = vld [vmem:[#allocation2 + $0x10] sm:$0xff]
        %v5093 = vld [vmem:[#allocation2 + $0x18] sm:$0xff]
        %v5094 = vpack.c.bf16 %v5093, %v5092
        %s5095 = scalar_lea.vmem [#allocation6], 3456
        %v5096 = vld [vmem:[%s5095] sm:$0xff]
        %v5097 = vld [vmem:[%s5095 + $0x8] sm:$0xff]
        %v5098 = vld [vmem:[%s5095 + $0x10] sm:$0xff]
        %v5099 = vld [vmem:[%s5095 + $0x18] sm:$0xff]
        %v5100 = vld [vmem:[%s5095 + $0x20] sm:$0xff]
        %v5101 = vld [vmem:[%s5095 + $0x28] sm:$0xff]
        %v5102 = vld [vmem:[%s5095 + $0x30] sm:$0xff]
        %v5103 = vld [vmem:[%s5095 + $0x38] sm:$0xff]
        %v5104 = vld [vmem:[%s5095 + $0x40] sm:$0xff]
        %v5105 = vld [vmem:[%s5095 + $0x48] sm:$0xff]
        %v5106 = vld [vmem:[%s5095 + $0x50] sm:$0xff]
        %v5107 = vld [vmem:[%s5095 + $0x58] sm:$0xff]
        %v5108 = vld [vmem:[%s5095 + $0x60] sm:$0xff]
        %v5109 = vld [vmem:[%s5095 + $0x68] sm:$0xff]
        %v5110 = vld [vmem:[%s5095 + $0x70] sm:$0xff]
        %v5111 = vld [vmem:[%s5095 + $0x78] sm:$0xff]
        %v5128 = vunpack.c.l.b16 %v5096
        %v5129 = vunpack.c.h.b16 %v5096
        %v5130 = vunpack.c.l.b16 %v5097
        %v5131 = vunpack.c.h.b16 %v5097
        %v5132 = vunpack.c.l.b16 %v5098
        %v5133 = vunpack.c.h.b16 %v5098
        %v5134 = vunpack.c.l.b16 %v5099
        %v5135 = vunpack.c.h.b16 %v5099
        %v5136 = vunpack.c.l.b16 %v5100
        %v5137 = vunpack.c.h.b16 %v5100
        %v5138 = vunpack.c.l.b16 %v5101
        %v5139 = vunpack.c.h.b16 %v5101
        %v5140 = vunpack.c.l.b16 %v5102
        %v5141 = vunpack.c.h.b16 %v5102
        %v5142 = vunpack.c.l.b16 %v5103
        %v5143 = vunpack.c.h.b16 %v5103
        %v5144 = vunpack.c.l.b16 %v5104
        %v5145 = vunpack.c.h.b16 %v5104
        %v5146 = vunpack.c.l.b16 %v5105
        %v5147 = vunpack.c.h.b16 %v5105
        %v5148 = vunpack.c.l.b16 %v5106
        %v5149 = vunpack.c.h.b16 %v5106
        %v5150 = vunpack.c.l.b16 %v5107
        %v5151 = vunpack.c.h.b16 %v5107
        %v5152 = vunpack.c.l.b16 %v5108
        %v5153 = vunpack.c.h.b16 %v5108
        %v5154 = vunpack.c.l.b16 %v5109
        %v5155 = vunpack.c.h.b16 %v5109
        %v5156 = vunpack.c.l.b16 %v5110
        %v5157 = vunpack.c.h.b16 %v5110
        %v5158 = vunpack.c.l.b16 %v5111
        %v5159 = vunpack.c.h.b16 %v5111
        %v5160 = vpack.c.b16 %v5130, %v5128
        %v5161 = vpack.c.b16 %v5131, %v5129
        %v5162 = vpack.c.b16 %v5134, %v5132
        %v5163 = vpack.c.b16 %v5135, %v5133
        %v5164 = vpack.c.b16 %v5138, %v5136
        %v5165 = vpack.c.b16 %v5139, %v5137
        %v5166 = vpack.c.b16 %v5142, %v5140
        %v5167 = vpack.c.b16 %v5143, %v5141
        %v5168 = vpack.c.b16 %v5146, %v5144
        %v5169 = vpack.c.b16 %v5147, %v5145
        %v5170 = vpack.c.b16 %v5150, %v5148
        %v5171 = vpack.c.b16 %v5151, %v5149
        %v5172 = vpack.c.b16 %v5154, %v5152
        %v5173 = vpack.c.b16 %v5155, %v5153
        %v5174 = vpack.c.b16 %v5158, %v5156
        %v5175 = vpack.c.b16 %v5159, %v5157
        %5192 = vmatprep.subr.bf16.mxu0 %v5161
        %5193 = vmatpush1.bf16.msra.mxu0 %v5160
        %5194 = vmatprep.subr.bf16.mxu0 %v5163
        %5195 = vmatpush1.bf16.msra.mxu0 %v5162
        %5196 = vmatprep.subr.bf16.mxu0 %v5165
        %5197 = vmatpush1.bf16.msra.mxu0 %v5164
        %5198 = vmatprep.subr.bf16.mxu0 %v5167
        %5199 = vmatpush1.bf16.msra.mxu0 %v5166
        %5200 = vmatprep.subr.bf16.mxu0 %v5169
        %5201 = vmatpush1.bf16.msra.mxu0 %v5168
        %5202 = vmatprep.subr.bf16.mxu0 %v5171
        %5203 = vmatpush1.bf16.msra.mxu0 %v5170
        %5204 = vmatprep.subr.bf16.mxu0 %v5173
        %5205 = vmatpush1.bf16.msra.mxu0 %v5172
        %5206 = vmatprep.subr.bf16.mxu0 %v5175
        %5207 = vmatpush1.bf16.msra.mxu0 %v5174
        %5208 = vmatprep.subr.bf16.mxu0 0
        %5209 = vmatpush1.bf16.msra.mxu0 0
        %5210 = vmatprep.subr.bf16.mxu0 0
        %5211 = vmatpush1.bf16.msra.mxu0 0
        %5212 = vmatprep.subr.bf16.mxu0 0
        %5213 = vmatpush1.bf16.msra.mxu0 0
        %5214 = vmatprep.subr.bf16.mxu0 0
        %5215 = vmatpush1.bf16.msra.mxu0 0
        %5216 = vmatprep.subr.bf16.mxu0 0
        %5217 = vmatpush1.bf16.msra.mxu0 0
        %5218 = vmatprep.subr.bf16.mxu0 0
        %5219 = vmatpush1.bf16.msra.mxu0 0
        %5220 = vmatprep.subr.bf16.mxu0 0
        %5221 = vmatpush1.bf16.msra.mxu0 0
        %5222 = vmatprep.subr.bf16.mxu0 0
        %5223 = vmatpush1.bf16.msra.mxu0 0
        %5224 = vmatprep.mubr.bf16.mxu0 0
        %5225 = vmatmul.mubr.bf16.gmra.mrb[0].mxu0 %v5094
        %v5226 = vpop.f32.mrb[0].mxu0
        %v5227 = vadd.f32 0.0, %v5226
        %v5228 = vpop.f32.mrb[0].mxu0
        %v5229 = vadd.f32 0.0, %v5228
        %v5230 = vpop.f32.mrb[0].mxu0
        %v5231 = vadd.f32 0.0, %v5230
        %v5232 = vpop.f32.mrb[0].mxu0
        %v5233 = vadd.f32 0.0, %v5232
        %5234 = vdwg.mxu0
        %v5235 = vadd.f32 %v5084, %v5227
        %v5236 = vadd.f32 %v5086, %v5229
        %v5237 = vadd.f32 %v5088, %v5231
        %v5238 = vadd.f32 %v5090, %v5233
        %v5239 = vld [vmem:[#allocation2 + $0x15] sm:$0xff]
        %v5240 = vld [vmem:[#allocation2 + $0x1d] sm:$0xff]
        %v5241 = vpack.c.bf16 %v5240, %v5239
        %s5242 = scalar_lea.vmem [#allocation6], 3584
        %v5243 = vld [vmem:[%s5242] sm:$0xff]
        %v5244 = vld [vmem:[%s5242 + $0x8] sm:$0xff]
        %v5245 = vld [vmem:[%s5242 + $0x10] sm:$0xff]
        %v5246 = vld [vmem:[%s5242 + $0x18] sm:$0xff]
        %v5247 = vld [vmem:[%s5242 + $0x20] sm:$0xff]
        %v5248 = vld [vmem:[%s5242 + $0x28] sm:$0xff]
        %v5249 = vld [vmem:[%s5242 + $0x30] sm:$0xff]
        %v5250 = vld [vmem:[%s5242 + $0x38] sm:$0xff]
        %v5251 = vld [vmem:[%s5242 + $0x40] sm:$0xff]
        %v5252 = vld [vmem:[%s5242 + $0x48] sm:$0xff]
        %v5253 = vld [vmem:[%s5242 + $0x50] sm:$0xff]
        %v5254 = vld [vmem:[%s5242 + $0x58] sm:$0xff]
        %v5255 = vld [vmem:[%s5242 + $0x60] sm:$0xff]
        %v5256 = vld [vmem:[%s5242 + $0x68] sm:$0xff]
        %v5257 = vld [vmem:[%s5242 + $0x70] sm:$0xff]
        %v5258 = vld [vmem:[%s5242 + $0x78] sm:$0xff]
        %v5275 = vunpack.c.l.b16 %v5243
        %v5276 = vunpack.c.h.b16 %v5243
        %v5277 = vunpack.c.l.b16 %v5244
        %v5278 = vunpack.c.h.b16 %v5244
        %v5279 = vunpack.c.l.b16 %v5245
        %v5280 = vunpack.c.h.b16 %v5245
        %v5281 = vunpack.c.l.b16 %v5246
        %v5282 = vunpack.c.h.b16 %v5246
        %v5283 = vunpack.c.l.b16 %v5247
        %v5284 = vunpack.c.h.b16 %v5247
        %v5285 = vunpack.c.l.b16 %v5248
        %v5286 = vunpack.c.h.b16 %v5248
        %v5287 = vunpack.c.l.b16 %v5249
        %v5288 = vunpack.c.h.b16 %v5249
        %v5289 = vunpack.c.l.b16 %v5250
        %v5290 = vunpack.c.h.b16 %v5250
        %v5291 = vunpack.c.l.b16 %v5251
        %v5292 = vunpack.c.h.b16 %v5251
        %v5293 = vunpack.c.l.b16 %v5252
        %v5294 = vunpack.c.h.b16 %v5252
        %v5295 = vunpack.c.l.b16 %v5253
        %v5296 = vunpack.c.h.b16 %v5253
        %v5297 = vunpack.c.l.b16 %v5254
        %v5298 = vunpack.c.h.b16 %v5254
        %v5299 = vunpack.c.l.b16 %v5255
        %v5300 = vunpack.c.h.b16 %v5255
        %v5301 = vunpack.c.l.b16 %v5256
        %v5302 = vunpack.c.h.b16 %v5256
        %v5303 = vunpack.c.l.b16 %v5257
        %v5304 = vunpack.c.h.b16 %v5257
        %v5305 = vunpack.c.l.b16 %v5258
        %v5306 = vunpack.c.h.b16 %v5258
        %v5307 = vpack.c.b16 %v5277, %v5275
        %v5308 = vpack.c.b16 %v5278, %v5276
        %v5309 = vpack.c.b16 %v5281, %v5279
        %v5310 = vpack.c.b16 %v5282, %v5280
        %v5311 = vpack.c.b16 %v5285, %v5283
        %v5312 = vpack.c.b16 %v5286, %v5284
        %v5313 = vpack.c.b16 %v5289, %v5287
        %v5314 = vpack.c.b16 %v5290, %v5288
        %v5315 = vpack.c.b16 %v5293, %v5291
        %v5316 = vpack.c.b16 %v5294, %v5292
        %v5317 = vpack.c.b16 %v5297, %v5295
        %v5318 = vpack.c.b16 %v5298, %v5296
        %v5319 = vpack.c.b16 %v5301, %v5299
        %v5320 = vpack.c.b16 %v5302, %v5300
        %v5321 = vpack.c.b16 %v5305, %v5303
        %v5322 = vpack.c.b16 %v5306, %v5304
        %5339 = vmatprep.subr.bf16.mxu0 %v5308
        %5340 = vmatpush1.bf16.msra.mxu0 %v5307
        %5341 = vmatprep.subr.bf16.mxu0 %v5310
        %5342 = vmatpush1.bf16.msra.mxu0 %v5309
        %5343 = vmatprep.subr.bf16.mxu0 %v5312
        %5344 = vmatpush1.bf16.msra.mxu0 %v5311
        %5345 = vmatprep.subr.bf16.mxu0 %v5314
        %5346 = vmatpush1.bf16.msra.mxu0 %v5313
        %5347 = vmatprep.subr.bf16.mxu0 %v5316
        %5348 = vmatpush1.bf16.msra.mxu0 %v5315
        %5349 = vmatprep.subr.bf16.mxu0 %v5318
        %5350 = vmatpush1.bf16.msra.mxu0 %v5317
        %5351 = vmatprep.subr.bf16.mxu0 %v5320
        %5352 = vmatpush1.bf16.msra.mxu0 %v5319
        %5353 = vmatprep.subr.bf16.mxu0 %v5322
        %5354 = vmatpush1.bf16.msra.mxu0 %v5321
        %5355 = vmatprep.subr.bf16.mxu0 0
        %5356 = vmatpush1.bf16.msra.mxu0 0
        %5357 = vmatprep.subr.bf16.mxu0 0
        %5358 = vmatpush1.bf16.msra.mxu0 0
        %5359 = vmatprep.subr.bf16.mxu0 0
        %5360 = vmatpush1.bf16.msra.mxu0 0
        %5361 = vmatprep.subr.bf16.mxu0 0
        %5362 = vmatpush1.bf16.msra.mxu0 0
        %5363 = vmatprep.subr.bf16.mxu0 0
        %5364 = vmatpush1.bf16.msra.mxu0 0
        %5365 = vmatprep.subr.bf16.mxu0 0
        %5366 = vmatpush1.bf16.msra.mxu0 0
        %5367 = vmatprep.subr.bf16.mxu0 0
        %5368 = vmatpush1.bf16.msra.mxu0 0
        %5369 = vmatprep.subr.bf16.mxu0 0
        %5370 = vmatpush1.bf16.msra.mxu0 0
        %5371 = vmatprep.mubr.bf16.mxu0 0
        %5372 = vmatmul.mubr.bf16.gmra.mrb[0].mxu0 %v5241
        %v5373 = vpop.f32.mrb[0].mxu0
        %v5374 = vadd.f32 0.0, %v5373
        %v5375 = vpop.f32.mrb[0].mxu0
        %v5376 = vadd.f32 0.0, %v5375
        %v5377 = vpop.f32.mrb[0].mxu0
        %v5378 = vadd.f32 0.0, %v5377
        %v5379 = vpop.f32.mrb[0].mxu0
        %v5380 = vadd.f32 0.0, %v5379
        %5381 = vdwg.mxu0
        %v5382 = vadd.f32 %v5235, %v5374
        %v5383 = vadd.f32 %v5236, %v5376
        %v5384 = vadd.f32 %v5237, %v5378
        %v5385 = vadd.f32 %v5238, %v5380
        %v5386 = vld [vmem:[#allocation2 + $0x1a] sm:$0xff]
        %v5387 = vld [vmem:[#allocation2 + $0x22] sm:$0xff]
        %v5388 = vpack.c.bf16 %v5387, %v5386
        %s5389 = scalar_lea.vmem [#allocation6], 3712
        %v5390 = vld [vmem:[%s5389] sm:$0xff]
        %v5391 = vld [vmem:[%s5389 + $0x8] sm:$0xff]
        %v5392 = vld [vmem:[%s5389 + $0x10] sm:$0xff]
        %v5393 = vld [vmem:[%s5389 + $0x18] sm:$0xff]
        %v5394 = vld [vmem:[%s5389 + $0x20] sm:$0xff]
        %v5395 = vld [vmem:[%s5389 + $0x28] sm:$0xff]
        %v5396 = vld [vmem:[%s5389 + $0x30] sm:$0xff]
        %v5397 = vld [vmem:[%s5389 + $0x38] sm:$0xff]
        %v5398 = vld [vmem:[%s5389 + $0x40] sm:$0xff]
        %v5399 = vld [vmem:[%s5389 + $0x48] sm:$0xff]
        %v5400 = vld [vmem:[%s5389 + $0x50] sm:$0xff]
        %v5401 = vld [vmem:[%s5389 + $0x58] sm:$0xff]
        %v5402 = vld [vmem:[%s5389 + $0x60] sm:$0xff]
        %v5403 = vld [vmem:[%s5389 + $0x68] sm:$0xff]
        %v5404 = vld [vmem:[%s5389 + $0x70] sm:$0xff]
        %v5405 = vld [vmem:[%s5389 + $0x78] sm:$0xff]
        %v5422 = vunpack.c.l.b16 %v5390
        %v5423 = vunpack.c.h.b16 %v5390
        %v5424 = vunpack.c.l.b16 %v5391
        %v5425 = vunpack.c.h.b16 %v5391
        %v5426 = vunpack.c.l.b16 %v5392
        %v5427 = vunpack.c.h.b16 %v5392
        %v5428 = vunpack.c.l.b16 %v5393
        %v5429 = vunpack.c.h.b16 %v5393
        %v5430 = vunpack.c.l.b16 %v5394
        %v5431 = vunpack.c.h.b16 %v5394
        %v5432 = vunpack.c.l.b16 %v5395
        %v5433 = vunpack.c.h.b16 %v5395
        %v5434 = vunpack.c.l.b16 %v5396
        %v5435 = vunpack.c.h.b16 %v5396
        %v5436 = vunpack.c.l.b16 %v5397
        %v5437 = vunpack.c.h.b16 %v5397
        %v5438 = vunpack.c.l.b16 %v5398
        %v5439 = vunpack.c.h.b16 %v5398
        %v5440 = vunpack.c.l.b16 %v5399
        %v5441 = vunpack.c.h.b16 %v5399
        %v5442 = vunpack.c.l.b16 %v5400
        %v5443 = vunpack.c.h.b16 %v5400
        %v5444 = vunpack.c.l.b16 %v5401
        %v5445 = vunpack.c.h.b16 %v5401
        %v5446 = vunpack.c.l.b16 %v5402
        %v5447 = vunpack.c.h.b16 %v5402
        %v5448 = vunpack.c.l.b16 %v5403
        %v5449 = vunpack.c.h.b16 %v5403
        %v5450 = vunpack.c.l.b16 %v5404
        %v5451 = vunpack.c.h.b16 %v5404
        %v5452 = vunpack.c.l.b16 %v5405
        %v5453 = vunpack.c.h.b16 %v5405
        %v5454 = vpack.c.b16 %v5424, %v5422
        %v5455 = vpack.c.b16 %v5425, %v5423
        %v5456 = vpack.c.b16 %v5428, %v5426
        %v5457 = vpack.c.b16 %v5429, %v5427
        %v5458 = vpack.c.b16 %v5432, %v5430
        %v5459 = vpack.c.b16 %v5433, %v5431
        %v5460 = vpack.c.b16 %v5436, %v5434
        %v5461 = vpack.c.b16 %v5437, %v5435
        %v5462 = vpack.c.b16 %v5440, %v5438
        %v5463 = vpack.c.b16 %v5441, %v5439
        %v5464 = vpack.c.b16 %v5444, %v5442
        %v5465 = vpack.c.b16 %v5445, %v5443
        %v5466 = vpack.c.b16 %v5448, %v5446
        %v5467 = vpack.c.b16 %v5449, %v5447
        %v5468 = vpack.c.b16 %v5452, %v5450
        %v5469 = vpack.c.b16 %v5453, %v5451
        %5486 = vmatprep.subr.bf16.mxu0 %v5455
        %5487 = vmatpush1.bf16.msra.mxu0 %v5454
        %5488 = vmatprep.subr.bf16.mxu0 %v5457
        %5489 = vmatpush1.bf16.msra.mxu0 %v5456
        %5490 = vmatprep.subr.bf16.mxu0 %v5459
        %5491 = vmatpush1.bf16.msra.mxu0 %v5458
        %5492 = vmatprep.subr.bf16.mxu0 %v5461
        %5493 = vmatpush1.bf16.msra.mxu0 %v5460
        %5494 = vmatprep.subr.bf16.mxu0 %v5463
        %5495 = vmatpush1.bf16.msra.mxu0 %v5462
        %5496 = vmatprep.subr.bf16.mxu0 %v5465
        %5497 = vmatpush1.bf16.msra.mxu0 %v5464
        %5498 = vmatprep.subr.bf16.mxu0 %v5467
        %5499 = vmatpush1.bf16.msra.mxu0 %v5466
        %5500 = vmatprep.subr.bf16.mxu0 %v5469
        %5501 = vmatpush1.bf16.msra.mxu0 %v5468
        %5502 = vmatprep.subr.bf16.mxu0 0
        %5503 = vmatpush1.bf16.msra.mxu0 0
        %5504 = vmatprep.subr.bf16.mxu0 0
        %5505 = vmatpush1.bf16.msra.mxu0 0
        %5506 = vmatprep.subr.bf16.mxu0 0
        %5507 = vmatpush1.bf16.msra.mxu0 0
        %5508 = vmatprep.subr.bf16.mxu0 0
        %5509 = vmatpush1.bf16.msra.mxu0 0
        %5510 = vmatprep.subr.bf16.mxu0 0
        %5511 = vmatpush1.bf16.msra.mxu0 0
        %5512 = vmatprep.subr.bf16.mxu0 0
        %5513 = vmatpush1.bf16.msra.mxu0 0
        %5514 = vmatprep.subr.bf16.mxu0 0
        %5515 = vmatpush1.bf16.msra.mxu0 0
        %5516 = vmatprep.subr.bf16.mxu0 0
        %5517 = vmatpush1.bf16.msra.mxu0 0
        %5518 = vmatprep.mubr.bf16.mxu0 0
        %5519 = vmatmul.mubr.bf16.gmra.mrb[0].mxu0 %v5388
        %v5520 = vpop.f32.mrb[0].mxu0
        %v5521 = vadd.f32 0.0, %v5520
        %v5522 = vpop.f32.mrb[0].mxu0
        %v5523 = vadd.f32 0.0, %v5522
        %v5524 = vpop.f32.mrb[0].mxu0
        %v5525 = vadd.f32 0.0, %v5524
        %v5526 = vpop.f32.mrb[0].mxu0
        %v5527 = vadd.f32 0.0, %v5526
        %5528 = vdwg.mxu0
        %v5529 = vadd.f32 %v5382, %v5521
        %v5530 = vadd.f32 %v5383, %v5523
        %v5531 = vadd.f32 %v5384, %v5525
        %v5532 = vadd.f32 %v5385, %v5527
        %v5533 = vtanh.pop %v5529
        %v5534 = vtanh.pop %v5531
        %v5535 = vxor.u32 %v5530, 2147483648
        %v5536 = vxor.u32 %v5532, 2147483648
        %v5537 = vmul.f32 %v5535, 1.442695
        %v5538 = vpow.pop %v5537
        %v5539 = vmul.f32 %v5536, 1.442695
        %v5540 = vpow.pop %v5539
        %v5541 = vadd.f32 %v5538, 1.0
        %v5542 = vadd.f32 %v5540, 1.0
        %v5543 = vrcp.pop %v5541
        %v5544 = vmul.f32 1.0, %v5543
        %v5545 = vrcp.pop %v5542
        %v5546 = vmul.f32 1.0, %v5545
        %v5547 = vmul.f32 %v5533, %v5544
        %v5548 = vmul.f32 %v5534, %v5546
        %v5549 = vpack.c.bf16 %v5548, %v5547
        %s5550 = scalar_lea.vmem [#allocation8], 640
        %v5551 = vld [vmem:[%s5550] sm:$0xff]
        %v5552 = vld [vmem:[%s5550 + $0x8] sm:$0xff]
        %v5553 = vld [vmem:[%s5550 + $0x10] sm:$0xff]
        %v5554 = vld [vmem:[%s5550 + $0x18] sm:$0xff]
        %v5555 = vld [vmem:[%s5550 + $0x20] sm:$0xff]
        %v5556 = vld [vmem:[%s5550 + $0x28] sm:$0xff]
        %v5557 = vld [vmem:[%s5550 + $0x30] sm:$0xff]
        %v5558 = vld [vmem:[%s5550 + $0x38] sm:$0xff]
        %v5559 = vld [vmem:[%s5550 + $0x40] sm:$0xff]
        %v5560 = vld [vmem:[%s5550 + $0x48] sm:$0xff]
        %v5561 = vld [vmem:[%s5550 + $0x50] sm:$0xff]
        %v5562 = vld [vmem:[%s5550 + $0x58] sm:$0xff]
        %v5563 = vld [vmem:[%s5550 + $0x60] sm:$0xff]
        %v5564 = vld [vmem:[%s5550 + $0x68] sm:$0xff]
        %v5565 = vld [vmem:[%s5550 + $0x70] sm:$0xff]
        %v5566 = vld [vmem:[%s5550 + $0x78] sm:$0xff]
        %v5583 = vunpack.c.l.b16 %v5551
        %v5584 = vunpack.c.h.b16 %v5551
        %v5585 = vunpack.c.l.b16 %v5552
        %v5586 = vunpack.c.h.b16 %v5552
        %v5587 = vunpack.c.l.b16 %v5553
        %v5588 = vunpack.c.h.b16 %v5553
        %v5589 = vunpack.c.l.b16 %v5554
        %v5590 = vunpack.c.h.b16 %v5554
        %v5591 = vunpack.c.l.b16 %v5555
        %v5592 = vunpack.c.h.b16 %v5555
        %v5593 = vunpack.c.l.b16 %v5556
        %v5594 = vunpack.c.h.b16 %v5556
        %v5595 = vunpack.c.l.b16 %v5557
        %v5596 = vunpack.c.h.b16 %v5557
        %v5597 = vunpack.c.l.b16 %v5558
        %v5598 = vunpack.c.h.b16 %v5558
        %v5599 = vunpack.c.l.b16 %v5559
        %v5600 = vunpack.c.h.b16 %v5559
        %v5601 = vunpack.c.l.b16 %v5560
        %v5602 = vunpack.c.h.b16 %v5560
        %v5603 = vunpack.c.l.b16 %v5561
        %v5604 = vunpack.c.h.b16 %v5561
        %v5605 = vunpack.c.l.b16 %v5562
        %v5606 = vunpack.c.h.b16 %v5562
        %v5607 = vunpack.c.l.b16 %v5563
        %v5608 = vunpack.c.h.b16 %v5563
        %v5609 = vunpack.c.l.b16 %v5564
        %v5610 = vunpack.c.h.b16 %v5564
        %v5611 = vunpack.c.l.b16 %v5565
        %v5612 = vunpack.c.h.b16 %v5565
        %v5613 = vunpack.c.l.b16 %v5566
        %v5614 = vunpack.c.h.b16 %v5566
        %v5615 = vpack.c.b16 %v5585, %v5583
        %v5616 = vpack.c.b16 %v5586, %v5584
        %v5617 = vpack.c.b16 %v5589, %v5587
        %v5618 = vpack.c.b16 %v5590, %v5588
        %v5619 = vpack.c.b16 %v5593, %v5591
        %v5620 = vpack.c.b16 %v5594, %v5592
        %v5621 = vpack.c.b16 %v5597, %v5595
        %v5622 = vpack.c.b16 %v5598, %v5596
        %v5623 = vpack.c.b16 %v5601, %v5599
        %v5624 = vpack.c.b16 %v5602, %v5600
        %v5625 = vpack.c.b16 %v5605, %v5603
        %v5626 = vpack.c.b16 %v5606, %v5604
        %v5627 = vpack.c.b16 %v5609, %v5607
        %v5628 = vpack.c.b16 %v5610, %v5608
        %v5629 = vpack.c.b16 %v5613, %v5611
        %v5630 = vpack.c.b16 %v5614, %v5612
        %5647 = vmatprep.subr.bf16.mxu0 %v5616
        %5648 = vmatpush1.bf16.msra.mxu0 %v5615
        %5649 = vmatprep.subr.bf16.mxu0 %v5618
        %5650 = vmatpush1.bf16.msra.mxu0 %v5617
        %5651 = vmatprep.subr.bf16.mxu0 %v5620
        %5652 = vmatpush1.bf16.msra.mxu0 %v5619
        %5653 = vmatprep.subr.bf16.mxu0 %v5622
        %5654 = vmatpush1.bf16.msra.mxu0 %v5621
        %5655 = vmatprep.subr.bf16.mxu0 %v5624
        %5656 = vmatpush1.bf16.msra.mxu0 %v5623
        %5657 = vmatprep.subr.bf16.mxu0 %v5626
        %5658 = vmatpush1.bf16.msra.mxu0 %v5625
        %5659 = vmatprep.subr.bf16.mxu0 %v5628
        %5660 = vmatpush1.bf16.msra.mxu0 %v5627
        %5661 = vmatprep.subr.bf16.mxu0 %v5630
        %5662 = vmatpush1.bf16.msra.mxu0 %v5629
        %5663 = vmatprep.subr.bf16.mxu0 0
        %5664 = vmatpush1.bf16.msra.mxu0 0
        %5665 = vmatprep.subr.bf16.mxu0 0
        %5666 = vmatpush1.bf16.msra.mxu0 0
        %5667 = vmatprep.subr.bf16.mxu0 0
        %5668 = vmatpush1.bf16.msra.mxu0 0
        %5669 = vmatprep.subr.bf16.mxu0 0
        %5670 = vmatpush1.bf16.msra.mxu0 0
        %5671 = vmatprep.subr.bf16.mxu0 0
        %5672 = vmatpush1.bf16.msra.mxu0 0
        %5673 = vmatprep.subr.bf16.mxu0 0
        %5674 = vmatpush1.bf16.msra.mxu0 0
        %5675 = vmatprep.subr.bf16.mxu0 0
        %5676 = vmatpush1.bf16.msra.mxu0 0
        %5677 = vmatprep.subr.bf16.mxu0 0
        %5678 = vmatpush1.bf16.msra.mxu0 0
        %5679 = vmatprep.mubr.bf16.mxu0 0
        %5680 = vmatmul.mubr.bf16.gmra.mrb[0].mxu0 %v5549
        %v5681 = vpop.f32.mrb[0].mxu0
        %v5682 = vadd.f32 0.0, %v5681
        %v5683 = vpop.f32.mrb[0].mxu0
        %v5684 = vadd.f32 0.0, %v5683
        %v5685 = vpop.f32.mrb[0].mxu0
        %v5686 = vadd.f32 0.0, %v5685
        %v5687 = vpop.f32.mrb[0].mxu0
        %v5688 = vadd.f32 0.0, %v5687
        %5689 = vdwg.mxu0
        %v5690 = vadd.f32 %v5682, %v5092
        %v5691 = vadd.f32 %v5686, %v5093
        %5692 = vst [vmem:[#allocation2 + $0x10] sm:$0xff] %v5690
        %5693 = vst [vmem:[#allocation2 + $0x18] sm:$0xff] %v5691
        %v5694 = vld [vmem:[%s232] sm:$0xff]
        %v5695 = vld [vmem:[%s232 + $0x8] sm:$0xff]
        %v5696 = vadd.f32 %v5694, %v5684
        %v5697 = vadd.f32 %v5695, %v5688
        %5698 = vst [vmem:[%s232] sm:$0xff] %v5696
        %5699 = vst [vmem:[%s232 + $0x8] sm:$0xff] %v5697
        %s5700 = sand.u32 %s117, 1
        %s5701 = scalar_lea.sflag [#allocation5], %s5700
        %s5702 = sand.u32 %s117, 1
        %s5703 = smul.addr %s5702, 16
        %s5704 = scalar_lea.vmem [#allocation9], %s5703
        // Predicated region
        $region49: #{tpu_custom_call.1} parent=35 // pred_check
          %p5705 = pneg %p127
        $region50: #{tpu_custom_call.1} parent=35 // pred_check_branch
          %5707 = sbr.rel (%p5705) target = $region52
        $region51: #{tpu_custom_call.1} parent=35 // pred_region
          %s5709 = ssub.s32 256, 256
          %5710 = vsyncadd %s5701, %s5709
          %s5711 = smul.addr %s20, 2
          %s5712 = smul.addr %s5711, 128
          %s5713 = scalar_lea.hbm %s4, %s5712
          %s5714 = sshll.u32 %s5704, 4
          %s5715 = int_to_ptr.vmem [resolvable:$true] %s5714
          %5720 = dma.vmem_to_hbm [thread:$0]  %s5715, 256, %s5713, %s5701, 128, 128, 8
        $region52: #{tpu_custom_call.1} parent=35 // pred_fallthru
          _
      $region36: #{tpu_custom_call.1} parent=5 // pred_fallthru
        _
      %p5721 = scmp.le.s32.totalorder 2, %s15
      // Predicated region
      $region53: #{tpu_custom_call.1} parent=5 // pred_check
        %p5722 = pneg %p5721
      $region54: #{tpu_custom_call.1} parent=5 // pred_check_branch
        %5724 = sbr.rel (%p5722) target = $region56
      $region55: #{tpu_custom_call.1} parent=5 // pred_region
        %s5725 = ssub.s32 %s15, 2
        // Predicated region
        $region57: #{tpu_custom_call.1} parent=55 // pred_check
          %p5726 = pneg %p133
        $region58: #{tpu_custom_call.1} parent=55 // pred_check_branch
          %5728 = sbr.rel (%p5726) target = $region60
        $region59: #{tpu_custom_call.1} parent=55 // pred_region
          %s5729 = sand.u32 %s118, 1
          %s5730 = scalar_lea.sflag [#allocation5], %s5729
          %s5731 = sand.u32 %s118, 1
          %s5732 = smul.addr %s5731, 16
          %s5733 = scalar_lea.vmem [#allocation9], %s5732
          %5734 = dma.done %s5730, 256
        $region60: #{tpu_custom_call.1} parent=55 // pred_fallthru
          _
      $region56: #{tpu_custom_call.1} parent=5 // pred_fallthru
        _
    $region6: #{tpu_custom_call.1} parent=1 // loop_footer
      %s19 = sadd.s32 1, %s15
    $region7: #{tpu_custom_call.1} parent=1 // loop_footer_branch
      %14 = sbr.rel target = $region3
    $region8: #{tpu_custom_call.1} parent=1 // loop_exit
      _
    %5735 = vsyncpa [#allocation4], 1
    %s5736 = scalar_lea.sflag [#allocation4], 1
    %5737 = vsyncpa %s5736, 1
    %5738 = vsyncpa [#allocation7], 1
    %5739 = vsyncpa [#allocation5], 1
    %s5740 = scalar_lea.sflag [#allocation5], 1
    %5741 = vsyncpa %s5740, 1

</llo_original>
